<compile_context>
chip_gen: v5e
topology: v5e:2x2
jax: 0.10.0
libtpu: 0.0.40
codegen_flags: <defaults>
</compile_context>

<pallas_src>
import jax
import jax.numpy as jnp
from jax import lax
from jax.experimental import pallas as pl
from jax.experimental.pallas import tpu as pltpu

# ----------------------------- config -----------------------------
B = 2
C = 3
IMG = 16
PATCH = 4
GRID = IMG // PATCH                 # 4
NUM_PATCHES = GRID * GRID           # 16
SEQ = NUM_PATCHES + 1               # 17 (cls token)
SEQ_PAD = 24                        # per-batch token block, multiple of 8 sublanes
CLS_OFF = NUM_PATCHES               # cls token row inside each 24-row block (16)
DIM = 32
HEADS = 4
HEAD_DIM = DIM // HEADS             # 8
MLP_HIDDEN = 4 * DIM                # 128
NUM_CLASSES = 5
NUM_CLASSES_PAD = 128               # lane-dense classifier output width
DEPTH = 2
PATCH_DIM = C * PATCH * PATCH       # 48
EPS = 1e-6
TOKENS_PAD = B * SEQ_PAD            # 48


# ----------------------------- kernel helpers -----------------------------
def _layer_norm(v, g, b):
    """f32 LayerNorm over last dim (biased variance, matches timm/PyTorch)."""
    mu = jnp.mean(v, axis=-1, keepdims=True)
    var = jnp.mean((v - mu) ** 2, axis=-1, keepdims=True)
    return (v - mu) * lax.rsqrt(var + EPS) * g + b


def _mm(a_f32, w_bf16):
    """MXU matmul: cast activation to bf16, weight is pre-cast, f32 accumulation."""
    return jnp.dot(a_f32.astype(jnp.bfloat16), w_bf16,
                   preferred_element_type=jnp.float32)


# ----------------------------- fused kernel -----------------------------
def vit_fused_kernel(patches_ref, pw_ref, tokb_ref, mask_ref,
                     ln1g_ref, ln1b_ref, wqkv_ref, bqkv_ref,
                     wproj_ref, bproj_ref, ln2g_ref, ln2b_ref,
                     w1_ref, b1_ref, w2_ref, b2_ref,
                     lng_ref, lnb_ref, wh_ref, bh_ref,
                     o_ref):
    f32 = jnp.float32
    bf16 = jnp.bfloat16

    # ---- patch embed directly into the 8-aligned (TOKENS_PAD, DIM) token layout ----
    # patches_ref is pre-padded (bf16): rows b*24+0..15 = patches, rest zero.
    x = jnp.dot(patches_ref[...], pw_ref[...], preferred_element_type=f32)
    # tok_bias folds patch bias + cls token + reordered positional embedding.
    x = x + tokb_ref[...]                                    # (TOKENS_PAD, DIM) f32

    # additive attention mask (0 for same-batch real keys, -1e9 elsewhere), hoisted
    mask = mask_ref[...]                                     # (TOKENS_PAD, TOKENS_PAD)

    # ---- transformer blocks (static unroll; block weights stacked on axis 0) ----
    for d in range(DEPTH):
        # --- attention branch: x = x + proj(MHSA(LN1(x))) ---
        xn = _layer_norm(x, ln1g_ref[d], ln1b_ref[d])        # (TOKENS_PAD, DIM) f32
        qkv = _mm(xn, wqkv_ref[d]) + bqkv_ref[d]             # (TOKENS_PAD, 3*DIM) f32
        # scale for q is folded into wqkv/bqkv; bproj folded into the accumulator.
        attn = jnp.broadcast_to(bproj_ref[d], (TOKENS_PAD, DIM))
        wproj_bf = wproj_ref[d]                              # (DIM, DIM) bf16
        for h in range(HEADS):                               # static unroll
            qh = qkv[:, h * HEAD_DIM:(h + 1) * HEAD_DIM].astype(bf16)
            kh = qkv[:, DIM + h * HEAD_DIM:DIM + (h + 1) * HEAD_DIM].astype(bf16)
            vh = qkv[:, 2 * DIM + h * HEAD_DIM:2 * DIM + (h + 1) * HEAD_DIM].astype(bf16)
            # scores over ALL tokens at once (q @ k^T, no transpose materialized);
            # cross-batch / pad-key entries are killed by the additive mask.
            s = lax.dot_general(qh, kh, (((1,), (1,)), ((), ())),
                                preferred_element_type=f32) + mask   # (48, 48)
            m = jnp.max(s, axis=-1, keepdims=True)
            e = jnp.exp(s - m)
            p = e * pl.reciprocal(jnp.sum(e, axis=-1, keepdims=True), approx=True)
            ctx = jnp.dot(p.astype(bf16), vh,
                          preferred_element_type=f32)                # (48, HEAD_DIM)
            # fold this head's slice of the output projection in directly
            attn = attn + jnp.dot(ctx.astype(bf16),
                                  wproj_bf[h * HEAD_DIM:(h + 1) * HEAD_DIM, :],
                                  preferred_element_type=f32)        # (48, DIM)
        x = x + attn

        # --- MLP branch: x = x + W2 @ GELU(W1 @ LN2(x)) ---
        xn2 = _layer_norm(x, ln2g_ref[d], ln2b_ref[d])
        h1 = _mm(xn2, w1_ref[d]) + b1_ref[d]                 # (TOKENS_PAD, MLP_HIDDEN)
        h1 = jax.nn.gelu(h1, approximate=True)   # tanh GELU -> EUP; ~1e-3 vs erf
        x = x + _mm(h1, w2_ref[d]) + b2_ref[d]

    # ---- final LayerNorm on cls tokens + lane-dense (padded) classifier head ----
    cls_mat = jnp.concatenate(
        [x[b * SEQ_PAD + CLS_OFF:b * SEQ_PAD + CLS_OFF + 1, :] for b in range(B)],
        axis=0)                                              # (B, DIM), aligned rows 16/40
    cls_n = _layer_norm(cls_mat, lng_ref[...], lnb_ref[...])
    o_ref[...] = _mm(cls_n, wh_ref[...]) + bh_ref[...]       # (B, NUM_CLASSES_PAD)


# ----------------------------- pallas wrapper -----------------------------
def _vmem_spec():
    return pl.BlockSpec(memory_space=pltpu.MemorySpace.VMEM)


def vit_forward_pallas(patches_padded, p):
    """Single fused pallas_call: patch-embed -> DEPTH blocks -> LN + head."""
    args = [
        patches_padded,
        p["patch_w"], p["tok_bias"], p["attn_mask"],
        p["ln1_g"], p["ln1_b"], p["wqkv"], p["bqkv"],
        p["wproj"], p["bproj"], p["ln2_g"], p["ln2_b"],
        p["w1"], p["b1"], p["w2"], p["b2"],
        p["ln_g"], p["ln_b"], p["head_w"], p["head_b"],
    ]
    return pl.pallas_call(
        vit_fused_kernel,
        out_shape=jax.ShapeDtypeStruct((B, NUM_CLASSES_PAD), jnp.float32),
        in_specs=[_vmem_spec() for _ in args],
        out_specs=_vmem_spec(),
    )(*args)


# ----------------------------- parameters -----------------------------
def init_params(key):
    ks = iter(jax.random.split(key, 32))
    std = 0.02
    f32 = jnp.float32
    bf16 = jnp.bfloat16

    def nrm(shape):
        return (std * jax.random.normal(next(ks), shape)).astype(f32)

    scale = HEAD_DIM ** -0.5

    # conv(3->32, k=4, s=4) expressed as a linear layer on flat patches
    patch_w = nrm((PATCH_DIM, DIM))
    patch_b = jnp.zeros((1, DIM), f32)
    cls = nrm((1, DIM))
    pos = nrm((SEQ, DIM))

    # tok_bias: per 24-row batch block -> rows 0..15 patch_b + pos[1:], row 16 cls + pos[0],
    # rows 17..23 zero (pad tokens).
    block = jnp.concatenate([
        pos[1:] + patch_b,                        # (16, DIM)
        cls + pos[0:1],                           # (1, DIM)
        jnp.zeros((SEQ_PAD - SEQ, DIM), f32),     # (7, DIM)
    ], axis=0)
    tok_bias = jnp.tile(block, (B, 1))            # (TOKENS_PAD, DIM)

    # additive attention mask: key must be a real (non-pad) token of the same batch block
    idx = jnp.arange(TOKENS_PAD)
    same_batch = (idx[:, None] // SEQ_PAD) == (idx[None, :] // SEQ_PAD)
    key_real = (idx[None, :] % SEQ_PAD) < SEQ
    attn_mask = jnp.where(same_batch & key_real, 0.0, -1e9).astype(f32)

    # block weights stacked along a leading DEPTH axis (indexed statically in-kernel)
    wqkv = nrm((DEPTH, DIM, 3 * DIM))
    bqkv = jnp.zeros((DEPTH, 1, 3 * DIM), f32)
    # fold the attention scale into the Q columns
    qscale = jnp.concatenate([jnp.full((DIM,), scale, f32),
                              jnp.ones((2 * DIM,), f32)], axis=0)
    wqkv = wqkv * qscale
    bqkv = bqkv * qscale

    head_w = jnp.zeros((DIM, NUM_CLASSES_PAD), f32)
    head_w = head_w.at[:, :NUM_CLASSES].set(nrm((DIM, NUM_CLASSES)))
    head_b = jnp.zeros((1, NUM_CLASSES_PAD), f32)

    return {
        "patch_w": patch_w.astype(bf16),
        "tok_bias": tok_bias,
        "attn_mask": attn_mask,
        "ln1_g": jnp.ones((DEPTH, 1, DIM), f32),
        "ln1_b": jnp.zeros((DEPTH, 1, DIM), f32),
        "wqkv": wqkv.astype(bf16),
        "bqkv": bqkv,
        "wproj": nrm((DEPTH, DIM, DIM)).astype(bf16),
        "bproj": jnp.zeros((DEPTH, 1, DIM), f32),
        "ln2_g": jnp.ones((DEPTH, 1, DIM), f32),
        "ln2_b": jnp.zeros((DEPTH, 1, DIM), f32),
        "w1": nrm((DEPTH, DIM, MLP_HIDDEN)).astype(bf16),
        "b1": jnp.zeros((DEPTH, 1, MLP_HIDDEN), f32),
        "w2": nrm((DEPTH, MLP_HIDDEN, DIM)).astype(bf16),
        "b2": jnp.zeros((DEPTH, 1, DIM), f32),
        "ln_g": jnp.ones((1, DIM), f32),
        "ln_b": jnp.zeros((1, DIM), f32),
        "head_w": head_w.astype(bf16),
        "head_b": head_b,
    }


# ----------------------------- forward -----------------------------
@jax.jit
def vit_forward(x_nchw, params):
    # ---- patch extraction (glue; matches Conv2d(k=PATCH, s=PATCH) weight layout (C, ph, pw)) ----
    xb = x_nchw.reshape(B, C, GRID, PATCH, GRID, PATCH)
    xb = xb.transpose(0, 2, 4, 1, 3, 5)                     # (B, gh, gw, C, ph, pw)
    patches = xb.reshape(B, NUM_PATCHES, PATCH_DIM)         # (B, 16, 48)
    # pad each batch to an 8-aligned 24-row token block (cls slot + pad rows are zero)
    pad = jnp.zeros((B, SEQ_PAD - NUM_PATCHES, PATCH_DIM), x_nchw.dtype)
    patches_padded = jnp.concatenate([patches, pad], axis=1)
    patches_padded = patches_padded.reshape(B * SEQ_PAD, PATCH_DIM).astype(jnp.bfloat16)

    # ---- everything else runs in one fused Pallas kernel ----
    logits_pad = vit_forward_pallas(patches_padded, params)  # (B, 128)
    return logits_pad[:, :NUM_CLASSES]                       # (B, 5)


# ----------------------------- main -----------------------------
if __name__ == "__main__":
    key = jax.random.PRNGKey(0)
    k_img, k_par = jax.random.split(key)
    x = jax.random.normal(k_img, (B, C, IMG, IMG), dtype=jnp.float32)   # NCHW like PyTorch
    params = init_params(k_par)

    out = vit_forward(x, params)
    out = jax.block_until_ready(out)
    assert out.shape == (B, NUM_CLASSES)
    assert jnp.all(jnp.isfinite(out))
    print("KERNEL_OK")
</pallas_src>

<mosaic_0001>
module attributes {stable_mosaic.version = 11 : i64} {
  func.func @vit_fused_kernel(%arg0: memref<48x48xbf16, #tpu.memory_space<vmem>>, %arg1: memref<48x32xbf16, #tpu.memory_space<vmem>>, %arg2: memref<48x32xf32, #tpu.memory_space<vmem>>, %arg3: memref<48x48xf32, #tpu.memory_space<vmem>>, %arg4: memref<2x1x32xf32, #tpu.memory_space<vmem>>, %arg5: memref<2x1x32xf32, #tpu.memory_space<vmem>>, %arg6: memref<2x32x96xbf16, #tpu.memory_space<vmem>>, %arg7: memref<2x1x96xf32, #tpu.memory_space<vmem>>, %arg8: memref<2x32x32xbf16, #tpu.memory_space<vmem>>, %arg9: memref<2x1x32xf32, #tpu.memory_space<vmem>>, %arg10: memref<2x1x32xf32, #tpu.memory_space<vmem>>, %arg11: memref<2x1x32xf32, #tpu.memory_space<vmem>>, %arg12: memref<2x32x128xbf16, #tpu.memory_space<vmem>>, %arg13: memref<2x1x128xf32, #tpu.memory_space<vmem>>, %arg14: memref<2x128x32xbf16, #tpu.memory_space<vmem>>, %arg15: memref<2x1x32xf32, #tpu.memory_space<vmem>>, %arg16: memref<1x32xf32, #tpu.memory_space<vmem>>, %arg17: memref<1x32xf32, #tpu.memory_space<vmem>>, %arg18: memref<32x128xbf16, #tpu.memory_space<vmem>>, %arg19: memref<1x128xf32, #tpu.memory_space<vmem>>, %arg20: memref<2x128xf32, #tpu.memory_space<vmem>>) attributes {dimension_semantics = [], scalar_prefetch = 0 : i64, scratch_operands = 0 : i64, tpu.core_type = #tpu.core_type<tc>} {
    %c0 = arith.constant 0 : index
    %c0_0 = arith.constant 0 : index
    %0 = vector.load %arg0[%c0, %c0_0] : memref<48x48xbf16, #tpu.memory_space<vmem>>, vector<48x48xbf16>
    %c0_1 = arith.constant 0 : index
    %c0_2 = arith.constant 0 : index
    %1 = vector.load %arg1[%c0_1, %c0_2] : memref<48x32xbf16, #tpu.memory_space<vmem>>, vector<48x32xbf16>
    %cst = arith.constant dense<0.000000e+00> : vector<48x32xf32>
    %2 = tpu.matmul %0, %1, %cst {dimension_numbers = #tpu.dot_dimension_numbers<[1], [0], [0], [1], [0, 0, 1, 1], [], []>} : vector<48x48xbf16>, vector<48x32xbf16>, vector<48x32xf32> -> vector<48x32xf32>
    %c0_3 = arith.constant 0 : index
    %c0_4 = arith.constant 0 : index
    %3 = vector.load %arg2[%c0_3, %c0_4] : memref<48x32xf32, #tpu.memory_space<vmem>>, vector<48x32xf32>
    %4 = arith.addf %2, %3 : vector<48x32xf32>
    %c0_5 = arith.constant 0 : index
    %c0_6 = arith.constant 0 : index
    %5 = vector.load %arg3[%c0_5, %c0_6] : memref<48x48xf32, #tpu.memory_space<vmem>>, vector<48x48xf32>
    %c0_7 = arith.constant 0 : index
    %c0_8 = arith.constant 0 : index
    %c0_9 = arith.constant 0 : index
    %6 = vector.load %arg4[%c0_7, %c0_8, %c0_9] : memref<2x1x32xf32, #tpu.memory_space<vmem>>, vector<1x1x32xf32>
    %7 = vector.shape_cast %6 : vector<1x1x32xf32> to vector<1x32xf32>
    %c0_10 = arith.constant 0 : index
    %c0_11 = arith.constant 0 : index
    %c0_12 = arith.constant 0 : index
    %8 = vector.load %arg5[%c0_10, %c0_11, %c0_12] : memref<2x1x32xf32, #tpu.memory_space<vmem>>, vector<1x1x32xf32>
    %9 = vector.shape_cast %8 : vector<1x1x32xf32> to vector<1x32xf32>
    %cst_13 = arith.constant dense<0.000000e+00> : vector<48xf32>
    %10 = vector.multi_reduction <add>, %4, %cst_13 [1] : vector<48x32xf32> to vector<48xf32>
    %11 = vector.shape_cast %10 : vector<48xf32> to vector<48x1xf32>
    %cst_14 = arith.constant 3.200000e+01 : f32
    %12 = vector.broadcast %cst_14 : f32 to vector<48x1xf32>
    %13 = arith.divf %11, %12 : vector<48x1xf32>
    %14 = vector.broadcast %13 : vector<48x1xf32> to vector<48x32xf32>
    %15 = arith.subf %4, %14 : vector<48x32xf32>
    %16 = arith.mulf %15, %15 : vector<48x32xf32>
    %cst_15 = arith.constant dense<0.000000e+00> : vector<48xf32>
    %17 = vector.multi_reduction <add>, %16, %cst_15 [1] : vector<48x32xf32> to vector<48xf32>
    %18 = vector.shape_cast %17 : vector<48xf32> to vector<48x1xf32>
    %cst_16 = arith.constant 3.200000e+01 : f32
    %19 = vector.broadcast %cst_16 : f32 to vector<48x1xf32>
    %20 = arith.divf %18, %19 : vector<48x1xf32>
    %21 = vector.broadcast %13 : vector<48x1xf32> to vector<48x32xf32>
    %22 = arith.subf %4, %21 : vector<48x32xf32>
    %cst_17 = arith.constant 9.99999997E-7 : f32
    %23 = vector.broadcast %cst_17 : f32 to vector<48x1xf32>
    %24 = arith.addf %20, %23 : vector<48x1xf32>
    %25 = math.rsqrt %24 : vector<48x1xf32>
    %26 = vector.broadcast %25 : vector<48x1xf32> to vector<48x32xf32>
    %27 = arith.mulf %22, %26 : vector<48x32xf32>
    %28 = vector.broadcast %7 : vector<1x32xf32> to vector<48x32xf32>
    %29 = arith.mulf %27, %28 : vector<48x32xf32>
    %30 = vector.broadcast %9 : vector<1x32xf32> to vector<48x32xf32>
    %31 = arith.addf %29, %30 : vector<48x32xf32>
    %c0_18 = arith.constant 0 : index
    %c0_19 = arith.constant 0 : index
    %c0_20 = arith.constant 0 : index
    %32 = vector.load %arg6[%c0_18, %c0_19, %c0_20] : memref<2x32x96xbf16, #tpu.memory_space<vmem>>, vector<1x32x96xbf16>
    %33 = vector.shape_cast %32 : vector<1x32x96xbf16> to vector<32x96xbf16>
    %34 = arith.truncf %31 : vector<48x32xf32> to vector<48x32xbf16>
    %cst_21 = arith.constant dense<0.000000e+00> : vector<48x96xf32>
    %35 = tpu.matmul %34, %33, %cst_21 {dimension_numbers = #tpu.dot_dimension_numbers<[1], [0], [0], [1], [0, 0, 1, 1], [], []>} : vector<48x32xbf16>, vector<32x96xbf16>, vector<48x96xf32> -> vector<48x96xf32>
    %c0_22 = arith.constant 0 : index
    %c0_23 = arith.constant 0 : index
    %c0_24 = arith.constant 0 : index
    %36 = vector.load %arg7[%c0_22, %c0_23, %c0_24] : memref<2x1x96xf32, #tpu.memory_space<vmem>>, vector<1x1x96xf32>
    %37 = vector.shape_cast %36 : vector<1x1x96xf32> to vector<1x96xf32>
    %38 = vector.broadcast %37 : vector<1x96xf32> to vector<48x96xf32>
    %39 = arith.addf %35, %38 : vector<48x96xf32>
    %c0_25 = arith.constant 0 : index
    %c0_26 = arith.constant 0 : index
    %c0_27 = arith.constant 0 : index
    %40 = vector.load %arg9[%c0_25, %c0_26, %c0_27] : memref<2x1x32xf32, #tpu.memory_space<vmem>>, vector<1x1x32xf32>
    %41 = vector.shape_cast %40 : vector<1x1x32xf32> to vector<1x32xf32>
    %42 = vector.shape_cast %41 : vector<1x32xf32> to vector<1x32xf32>
    %43 = vector.broadcast %42 : vector<1x32xf32> to vector<48x32xf32>
    %c0_28 = arith.constant 0 : index
    %c0_29 = arith.constant 0 : index
    %c0_30 = arith.constant 0 : index
    %44 = vector.load %arg8[%c0_28, %c0_29, %c0_30] : memref<2x32x32xbf16, #tpu.memory_space<vmem>>, vector<1x32x32xbf16>
    %45 = vector.shape_cast %44 : vector<1x32x32xbf16> to vector<32x32xbf16>
    %46 = vector.extract_strided_slice %39 {offsets = [0, 0], sizes = [48, 8], strides = [1, 1]} : vector<48x96xf32> to vector<48x8xf32>
    %47 = arith.truncf %46 : vector<48x8xf32> to vector<48x8xbf16>
    %48 = vector.extract_strided_slice %39 {offsets = [0, 32], sizes = [48, 8], strides = [1, 1]} : vector<48x96xf32> to vector<48x8xf32>
    %49 = arith.truncf %48 : vector<48x8xf32> to vector<48x8xbf16>
    %50 = vector.extract_strided_slice %39 {offsets = [0, 64], sizes = [48, 8], strides = [1, 1]} : vector<48x96xf32> to vector<48x8xf32>
    %51 = arith.truncf %50 : vector<48x8xf32> to vector<48x8xbf16>
    %cst_31 = arith.constant dense<0.000000e+00> : vector<48x48xf32>
    %52 = tpu.matmul %47, %49, %cst_31 {dimension_numbers = #tpu.dot_dimension_numbers<[1], [1], [0], [0], [0, 0, 1, 0], [], []>} : vector<48x8xbf16>, vector<48x8xbf16>, vector<48x48xf32> -> vector<48x48xf32>
    %53 = arith.addf %52, %5 : vector<48x48xf32>
    %cst_32 = arith.constant dense<0xFF800000> : vector<48xf32>
    %54 = vector.multi_reduction <maximumf>, %53, %cst_32 [1] : vector<48x48xf32> to vector<48xf32>
    %55 = vector.shape_cast %54 : vector<48xf32> to vector<48x1xf32>
    %56 = vector.broadcast %55 : vector<48x1xf32> to vector<48x48xf32>
    %57 = arith.subf %53, %56 : vector<48x48xf32>
    %58 = math.exp %57 : vector<48x48xf32>
    %cst_33 = arith.constant dense<0.000000e+00> : vector<48xf32>
    %59 = vector.multi_reduction <add>, %58, %cst_33 [1] : vector<48x48xf32> to vector<48xf32>
    %60 = vector.shape_cast %59 : vector<48xf32> to vector<48x1xf32>
    %61 = tpu.reciprocal %60 {approx = true} : vector<48x1xf32> -> vector<48x1xf32>
    %62 = vector.broadcast %61 : vector<48x1xf32> to vector<48x48xf32>
    %63 = arith.mulf %58, %62 : vector<48x48xf32>
    %64 = arith.truncf %63 : vector<48x48xf32> to vector<48x48xbf16>
    %cst_34 = arith.constant dense<0.000000e+00> : vector<48x8xf32>
    %65 = tpu.matmul %64, %51, %cst_34 {dimension_numbers = #tpu.dot_dimension_numbers<[1], [0], [0], [1], [0, 0, 1, 1], [], []>} : vector<48x48xbf16>, vector<48x8xbf16>, vector<48x8xf32> -> vector<48x8xf32>
    %66 = arith.truncf %65 : vector<48x8xf32> to vector<48x8xbf16>
    %67 = vector.extract_strided_slice %45 {offsets = [0, 0], sizes = [8, 32], strides = [1, 1]} : vector<32x32xbf16> to vector<8x32xbf16>
    %cst_35 = arith.constant dense<0.000000e+00> : vector<48x32xf32>
    %68 = tpu.matmul %66, %67, %cst_35 {dimension_numbers = #tpu.dot_dimension_numbers<[1], [0], [0], [1], [0, 0, 1, 1], [], []>} : vector<48x8xbf16>, vector<8x32xbf16>, vector<48x32xf32> -> vector<48x32xf32>
    %69 = arith.addf %43, %68 : vector<48x32xf32>
    %70 = vector.extract_strided_slice %39 {offsets = [0, 8], sizes = [48, 8], strides = [1, 1]} : vector<48x96xf32> to vector<48x8xf32>
    %71 = arith.truncf %70 : vector<48x8xf32> to vector<48x8xbf16>
    %72 = vector.extract_strided_slice %39 {offsets = [0, 40], sizes = [48, 8], strides = [1, 1]} : vector<48x96xf32> to vector<48x8xf32>
    %73 = arith.truncf %72 : vector<48x8xf32> to vector<48x8xbf16>
    %74 = vector.extract_strided_slice %39 {offsets = [0, 72], sizes = [48, 8], strides = [1, 1]} : vector<48x96xf32> to vector<48x8xf32>
    %75 = arith.truncf %74 : vector<48x8xf32> to vector<48x8xbf16>
    %cst_36 = arith.constant dense<0.000000e+00> : vector<48x48xf32>
    %76 = tpu.matmul %71, %73, %cst_36 {dimension_numbers = #tpu.dot_dimension_numbers<[1], [1], [0], [0], [0, 0, 1, 0], [], []>} : vector<48x8xbf16>, vector<48x8xbf16>, vector<48x48xf32> -> vector<48x48xf32>
    %77 = arith.addf %76, %5 : vector<48x48xf32>
    %cst_37 = arith.constant dense<0xFF800000> : vector<48xf32>
    %78 = vector.multi_reduction <maximumf>, %77, %cst_37 [1] : vector<48x48xf32> to vector<48xf32>
    %79 = vector.shape_cast %78 : vector<48xf32> to vector<48x1xf32>
    %80 = vector.broadcast %79 : vector<48x1xf32> to vector<48x48xf32>
    %81 = arith.subf %77, %80 : vector<48x48xf32>
    %82 = math.exp %81 : vector<48x48xf32>
    %cst_38 = arith.constant dense<0.000000e+00> : vector<48xf32>
    %83 = vector.multi_reduction <add>, %82, %cst_38 [1] : vector<48x48xf32> to vector<48xf32>
    %84 = vector.shape_cast %83 : vector<48xf32> to vector<48x1xf32>
    %85 = tpu.reciprocal %84 {approx = true} : vector<48x1xf32> -> vector<48x1xf32>
    %86 = vector.broadcast %85 : vector<48x1xf32> to vector<48x48xf32>
    %87 = arith.mulf %82, %86 : vector<48x48xf32>
    %88 = arith.truncf %87 : vector<48x48xf32> to vector<48x48xbf16>
    %cst_39 = arith.constant dense<0.000000e+00> : vector<48x8xf32>
    %89 = tpu.matmul %88, %75, %cst_39 {dimension_numbers = #tpu.dot_dimension_numbers<[1], [0], [0], [1], [0, 0, 1, 1], [], []>} : vector<48x48xbf16>, vector<48x8xbf16>, vector<48x8xf32> -> vector<48x8xf32>
    %90 = arith.truncf %89 : vector<48x8xf32> to vector<48x8xbf16>
    %91 = vector.extract_strided_slice %45 {offsets = [8, 0], sizes = [8, 32], strides = [1, 1]} : vector<32x32xbf16> to vector<8x32xbf16>
    %cst_40 = arith.constant dense<0.000000e+00> : vector<48x32xf32>
    %92 = tpu.matmul %90, %91, %cst_40 {dimension_numbers = #tpu.dot_dimension_numbers<[1], [0], [0], [1], [0, 0, 1, 1], [], []>} : vector<48x8xbf16>, vector<8x32xbf16>, vector<48x32xf32> -> vector<48x32xf32>
    %93 = arith.addf %69, %92 : vector<48x32xf32>
    %94 = vector.extract_strided_slice %39 {offsets = [0, 16], sizes = [48, 8], strides = [1, 1]} : vector<48x96xf32> to vector<48x8xf32>
    %95 = arith.truncf %94 : vector<48x8xf32> to vector<48x8xbf16>
    %96 = vector.extract_strided_slice %39 {offsets = [0, 48], sizes = [48, 8], strides = [1, 1]} : vector<48x96xf32> to vector<48x8xf32>
    %97 = arith.truncf %96 : vector<48x8xf32> to vector<48x8xbf16>
    %98 = vector.extract_strided_slice %39 {offsets = [0, 80], sizes = [48, 8], strides = [1, 1]} : vector<48x96xf32> to vector<48x8xf32>
    %99 = arith.truncf %98 : vector<48x8xf32> to vector<48x8xbf16>
    %cst_41 = arith.constant dense<0.000000e+00> : vector<48x48xf32>
    %100 = tpu.matmul %95, %97, %cst_41 {dimension_numbers = #tpu.dot_dimension_numbers<[1], [1], [0], [0], [0, 0, 1, 0], [], []>} : vector<48x8xbf16>, vector<48x8xbf16>, vector<48x48xf32> -> vector<48x48xf32>
    %101 = arith.addf %100, %5 : vector<48x48xf32>
    %cst_42 = arith.constant dense<0xFF800000> : vector<48xf32>
    %102 = vector.multi_reduction <maximumf>, %101, %cst_42 [1] : vector<48x48xf32> to vector<48xf32>
    %103 = vector.shape_cast %102 : vector<48xf32> to vector<48x1xf32>
    %104 = vector.broadcast %103 : vector<48x1xf32> to vector<48x48xf32>
    %105 = arith.subf %101, %104 : vector<48x48xf32>
    %106 = math.exp %105 : vector<48x48xf32>
    %cst_43 = arith.constant dense<0.000000e+00> : vector<48xf32>
    %107 = vector.multi_reduction <add>, %106, %cst_43 [1] : vector<48x48xf32> to vector<48xf32>
    %108 = vector.shape_cast %107 : vector<48xf32> to vector<48x1xf32>
    %109 = tpu.reciprocal %108 {approx = true} : vector<48x1xf32> -> vector<48x1xf32>
    %110 = vector.broadcast %109 : vector<48x1xf32> to vector<48x48xf32>
    %111 = arith.mulf %106, %110 : vector<48x48xf32>
    %112 = arith.truncf %111 : vector<48x48xf32> to vector<48x48xbf16>
    %cst_44 = arith.constant dense<0.000000e+00> : vector<48x8xf32>
    %113 = tpu.matmul %112, %99, %cst_44 {dimension_numbers = #tpu.dot_dimension_numbers<[1], [0], [0], [1], [0, 0, 1, 1], [], []>} : vector<48x48xbf16>, vector<48x8xbf16>, vector<48x8xf32> -> vector<48x8xf32>
    %114 = arith.truncf %113 : vector<48x8xf32> to vector<48x8xbf16>
    %115 = vector.extract_strided_slice %45 {offsets = [16, 0], sizes = [8, 32], strides = [1, 1]} : vector<32x32xbf16> to vector<8x32xbf16>
    %cst_45 = arith.constant dense<0.000000e+00> : vector<48x32xf32>
    %116 = tpu.matmul %114, %115, %cst_45 {dimension_numbers = #tpu.dot_dimension_numbers<[1], [0], [0], [1], [0, 0, 1, 1], [], []>} : vector<48x8xbf16>, vector<8x32xbf16>, vector<48x32xf32> -> vector<48x32xf32>
    %117 = arith.addf %93, %116 : vector<48x32xf32>
    %118 = vector.extract_strided_slice %39 {offsets = [0, 24], sizes = [48, 8], strides = [1, 1]} : vector<48x96xf32> to vector<48x8xf32>
    %119 = arith.truncf %118 : vector<48x8xf32> to vector<48x8xbf16>
    %120 = vector.extract_strided_slice %39 {offsets = [0, 56], sizes = [48, 8], strides = [1, 1]} : vector<48x96xf32> to vector<48x8xf32>
    %121 = arith.truncf %120 : vector<48x8xf32> to vector<48x8xbf16>
    %122 = vector.extract_strided_slice %39 {offsets = [0, 88], sizes = [48, 8], strides = [1, 1]} : vector<48x96xf32> to vector<48x8xf32>
    %123 = arith.truncf %122 : vector<48x8xf32> to vector<48x8xbf16>
    %cst_46 = arith.constant dense<0.000000e+00> : vector<48x48xf32>
    %124 = tpu.matmul %119, %121, %cst_46 {dimension_numbers = #tpu.dot_dimension_numbers<[1], [1], [0], [0], [0, 0, 1, 0], [], []>} : vector<48x8xbf16>, vector<48x8xbf16>, vector<48x48xf32> -> vector<48x48xf32>
    %125 = arith.addf %124, %5 : vector<48x48xf32>
    %cst_47 = arith.constant dense<0xFF800000> : vector<48xf32>
    %126 = vector.multi_reduction <maximumf>, %125, %cst_47 [1] : vector<48x48xf32> to vector<48xf32>
    %127 = vector.shape_cast %126 : vector<48xf32> to vector<48x1xf32>
    %128 = vector.broadcast %127 : vector<48x1xf32> to vector<48x48xf32>
    %129 = arith.subf %125, %128 : vector<48x48xf32>
    %130 = math.exp %129 : vector<48x48xf32>
    %cst_48 = arith.constant dense<0.000000e+00> : vector<48xf32>
    %131 = vector.multi_reduction <add>, %130, %cst_48 [1] : vector<48x48xf32> to vector<48xf32>
    %132 = vector.shape_cast %131 : vector<48xf32> to vector<48x1xf32>
    %133 = tpu.reciprocal %132 {approx = true} : vector<48x1xf32> -> vector<48x1xf32>
    %134 = vector.broadcast %133 : vector<48x1xf32> to vector<48x48xf32>
    %135 = arith.mulf %130, %134 : vector<48x48xf32>
    %136 = arith.truncf %135 : vector<48x48xf32> to vector<48x48xbf16>
    %cst_49 = arith.constant dense<0.000000e+00> : vector<48x8xf32>
    %137 = tpu.matmul %136, %123, %cst_49 {dimension_numbers = #tpu.dot_dimension_numbers<[1], [0], [0], [1], [0, 0, 1, 1], [], []>} : vector<48x48xbf16>, vector<48x8xbf16>, vector<48x8xf32> -> vector<48x8xf32>
    %138 = arith.truncf %137 : vector<48x8xf32> to vector<48x8xbf16>
    %139 = vector.extract_strided_slice %45 {offsets = [24, 0], sizes = [8, 32], strides = [1, 1]} : vector<32x32xbf16> to vector<8x32xbf16>
    %cst_50 = arith.constant dense<0.000000e+00> : vector<48x32xf32>
    %140 = tpu.matmul %138, %139, %cst_50 {dimension_numbers = #tpu.dot_dimension_numbers<[1], [0], [0], [1], [0, 0, 1, 1], [], []>} : vector<48x8xbf16>, vector<8x32xbf16>, vector<48x32xf32> -> vector<48x32xf32>
    %141 = arith.addf %117, %140 : vector<48x32xf32>
    %142 = arith.addf %4, %141 : vector<48x32xf32>
    %c0_51 = arith.constant 0 : index
    %c0_52 = arith.constant 0 : index
    %c0_53 = arith.constant 0 : index
    %143 = vector.load %arg10[%c0_51, %c0_52, %c0_53] : memref<2x1x32xf32, #tpu.memory_space<vmem>>, vector<1x1x32xf32>
    %144 = vector.shape_cast %143 : vector<1x1x32xf32> to vector<1x32xf32>
    %c0_54 = arith.constant 0 : index
    %c0_55 = arith.constant 0 : index
    %c0_56 = arith.constant 0 : index
    %145 = vector.load %arg11[%c0_54, %c0_55, %c0_56] : memref<2x1x32xf32, #tpu.memory_space<vmem>>, vector<1x1x32xf32>
    %146 = vector.shape_cast %145 : vector<1x1x32xf32> to vector<1x32xf32>
    %cst_57 = arith.constant dense<0.000000e+00> : vector<48xf32>
    %147 = vector.multi_reduction <add>, %142, %cst_57 [1] : vector<48x32xf32> to vector<48xf32>
    %148 = vector.shape_cast %147 : vector<48xf32> to vector<48x1xf32>
    %cst_58 = arith.constant 3.200000e+01 : f32
    %149 = vector.broadcast %cst_58 : f32 to vector<48x1xf32>
    %150 = arith.divf %148, %149 : vector<48x1xf32>
    %151 = vector.broadcast %150 : vector<48x1xf32> to vector<48x32xf32>
    %152 = arith.subf %142, %151 : vector<48x32xf32>
    %153 = arith.mulf %152, %152 : vector<48x32xf32>
    %cst_59 = arith.constant dense<0.000000e+00> : vector<48xf32>
    %154 = vector.multi_reduction <add>, %153, %cst_59 [1] : vector<48x32xf32> to vector<48xf32>
    %155 = vector.shape_cast %154 : vector<48xf32> to vector<48x1xf32>
    %cst_60 = arith.constant 3.200000e+01 : f32
    %156 = vector.broadcast %cst_60 : f32 to vector<48x1xf32>
    %157 = arith.divf %155, %156 : vector<48x1xf32>
    %158 = vector.broadcast %150 : vector<48x1xf32> to vector<48x32xf32>
    %159 = arith.subf %142, %158 : vector<48x32xf32>
    %cst_61 = arith.constant 9.99999997E-7 : f32
    %160 = vector.broadcast %cst_61 : f32 to vector<48x1xf32>
    %161 = arith.addf %157, %160 : vector<48x1xf32>
    %162 = math.rsqrt %161 : vector<48x1xf32>
    %163 = vector.broadcast %162 : vector<48x1xf32> to vector<48x32xf32>
    %164 = arith.mulf %159, %163 : vector<48x32xf32>
    %165 = vector.broadcast %144 : vector<1x32xf32> to vector<48x32xf32>
    %166 = arith.mulf %164, %165 : vector<48x32xf32>
    %167 = vector.broadcast %146 : vector<1x32xf32> to vector<48x32xf32>
    %168 = arith.addf %166, %167 : vector<48x32xf32>
    %c0_62 = arith.constant 0 : index
    %c0_63 = arith.constant 0 : index
    %c0_64 = arith.constant 0 : index
    %169 = vector.load %arg12[%c0_62, %c0_63, %c0_64] : memref<2x32x128xbf16, #tpu.memory_space<vmem>>, vector<1x32x128xbf16>
    %170 = vector.shape_cast %169 : vector<1x32x128xbf16> to vector<32x128xbf16>
    %171 = arith.truncf %168 : vector<48x32xf32> to vector<48x32xbf16>
    %cst_65 = arith.constant dense<0.000000e+00> : vector<48x128xf32>
    %172 = tpu.matmul %171, %170, %cst_65 {dimension_numbers = #tpu.dot_dimension_numbers<[1], [0], [0], [1], [0, 0, 1, 1], [], []>} : vector<48x32xbf16>, vector<32x128xbf16>, vector<48x128xf32> -> vector<48x128xf32>
    %c0_66 = arith.constant 0 : index
    %c0_67 = arith.constant 0 : index
    %c0_68 = arith.constant 0 : index
    %173 = vector.load %arg13[%c0_66, %c0_67, %c0_68] : memref<2x1x128xf32, #tpu.memory_space<vmem>>, vector<1x1x128xf32>
    %174 = vector.shape_cast %173 : vector<1x1x128xf32> to vector<1x128xf32>
    %175 = vector.broadcast %174 : vector<1x128xf32> to vector<48x128xf32>
    %176 = arith.addf %172, %175 : vector<48x128xf32>
    %177 = arith.mulf %176, %176 : vector<48x128xf32>
    %178 = arith.mulf %176, %177 : vector<48x128xf32>
    %cst_69 = arith.constant 4.471500e-02 : f32
    %179 = vector.broadcast %cst_69 : f32 to vector<48x128xf32>
    %180 = arith.mulf %179, %178 : vector<48x128xf32>
    %181 = arith.addf %176, %180 : vector<48x128xf32>
    %cst_70 = arith.constant 0.797884583 : f32
    %182 = vector.broadcast %cst_70 : f32 to vector<48x128xf32>
    %183 = arith.mulf %182, %181 : vector<48x128xf32>
    %184 = math.tanh %183 : vector<48x128xf32>
    %cst_71 = arith.constant 1.000000e+00 : f32
    %185 = vector.broadcast %cst_71 : f32 to vector<48x128xf32>
    %186 = arith.addf %185, %184 : vector<48x128xf32>
    %cst_72 = arith.constant 5.000000e-01 : f32
    %187 = vector.broadcast %cst_72 : f32 to vector<48x128xf32>
    %188 = arith.mulf %187, %186 : vector<48x128xf32>
    %189 = arith.mulf %176, %188 : vector<48x128xf32>
    %c0_73 = arith.constant 0 : index
    %c0_74 = arith.constant 0 : index
    %c0_75 = arith.constant 0 : index
    %190 = vector.load %arg14[%c0_73, %c0_74, %c0_75] : memref<2x128x32xbf16, #tpu.memory_space<vmem>>, vector<1x128x32xbf16>
    %191 = vector.shape_cast %190 : vector<1x128x32xbf16> to vector<128x32xbf16>
    %192 = arith.truncf %189 : vector<48x128xf32> to vector<48x128xbf16>
    %cst_76 = arith.constant dense<0.000000e+00> : vector<48x32xf32>
    %193 = tpu.matmul %192, %191, %cst_76 {dimension_numbers = #tpu.dot_dimension_numbers<[1], [0], [0], [1], [0, 0, 1, 1], [], []>} : vector<48x128xbf16>, vector<128x32xbf16>, vector<48x32xf32> -> vector<48x32xf32>
    %194 = arith.addf %142, %193 : vector<48x32xf32>
    %c0_77 = arith.constant 0 : index
    %c0_78 = arith.constant 0 : index
    %c0_79 = arith.constant 0 : index
    %195 = vector.load %arg15[%c0_77, %c0_78, %c0_79] : memref<2x1x32xf32, #tpu.memory_space<vmem>>, vector<1x1x32xf32>
    %196 = vector.shape_cast %195 : vector<1x1x32xf32> to vector<1x32xf32>
    %197 = vector.broadcast %196 : vector<1x32xf32> to vector<48x32xf32>
    %198 = arith.addf %194, %197 : vector<48x32xf32>
    %c1 = arith.constant 1 : index
    %c0_80 = arith.constant 0 : index
    %c0_81 = arith.constant 0 : index
    %199 = vector.load %arg4[%c1, %c0_80, %c0_81] : memref<2x1x32xf32, #tpu.memory_space<vmem>>, vector<1x1x32xf32>
    %200 = vector.shape_cast %199 : vector<1x1x32xf32> to vector<1x32xf32>
    %c1_82 = arith.constant 1 : index
    %c0_83 = arith.constant 0 : index
    %c0_84 = arith.constant 0 : index
    %201 = vector.load %arg5[%c1_82, %c0_83, %c0_84] : memref<2x1x32xf32, #tpu.memory_space<vmem>>, vector<1x1x32xf32>
    %202 = vector.shape_cast %201 : vector<1x1x32xf32> to vector<1x32xf32>
    %cst_85 = arith.constant dense<0.000000e+00> : vector<48xf32>
    %203 = vector.multi_reduction <add>, %198, %cst_85 [1] : vector<48x32xf32> to vector<48xf32>
    %204 = vector.shape_cast %203 : vector<48xf32> to vector<48x1xf32>
    %cst_86 = arith.constant 3.200000e+01 : f32
    %205 = vector.broadcast %cst_86 : f32 to vector<48x1xf32>
    %206 = arith.divf %204, %205 : vector<48x1xf32>
    %207 = vector.broadcast %206 : vector<48x1xf32> to vector<48x32xf32>
    %208 = arith.subf %198, %207 : vector<48x32xf32>
    %209 = arith.mulf %208, %208 : vector<48x32xf32>
    %cst_87 = arith.constant dense<0.000000e+00> : vector<48xf32>
    %210 = vector.multi_reduction <add>, %209, %cst_87 [1] : vector<48x32xf32> to vector<48xf32>
    %211 = vector.shape_cast %210 : vector<48xf32> to vector<48x1xf32>
    %cst_88 = arith.constant 3.200000e+01 : f32
    %212 = vector.broadcast %cst_88 : f32 to vector<48x1xf32>
    %213 = arith.divf %211, %212 : vector<48x1xf32>
    %214 = vector.broadcast %206 : vector<48x1xf32> to vector<48x32xf32>
    %215 = arith.subf %198, %214 : vector<48x32xf32>
    %cst_89 = arith.constant 9.99999997E-7 : f32
    %216 = vector.broadcast %cst_89 : f32 to vector<48x1xf32>
    %217 = arith.addf %213, %216 : vector<48x1xf32>
    %218 = math.rsqrt %217 : vector<48x1xf32>
    %219 = vector.broadcast %218 : vector<48x1xf32> to vector<48x32xf32>
    %220 = arith.mulf %215, %219 : vector<48x32xf32>
    %221 = vector.broadcast %200 : vector<1x32xf32> to vector<48x32xf32>
    %222 = arith.mulf %220, %221 : vector<48x32xf32>
    %223 = vector.broadcast %202 : vector<1x32xf32> to vector<48x32xf32>
    %224 = arith.addf %222, %223 : vector<48x32xf32>
    %c1_90 = arith.constant 1 : index
    %c0_91 = arith.constant 0 : index
    %c0_92 = arith.constant 0 : index
    %225 = vector.load %arg6[%c1_90, %c0_91, %c0_92] : memref<2x32x96xbf16, #tpu.memory_space<vmem>>, vector<1x32x96xbf16>
    %226 = vector.shape_cast %225 : vector<1x32x96xbf16> to vector<32x96xbf16>
    %227 = arith.truncf %224 : vector<48x32xf32> to vector<48x32xbf16>
    %cst_93 = arith.constant dense<0.000000e+00> : vector<48x96xf32>
    %228 = tpu.matmul %227, %226, %cst_93 {dimension_numbers = #tpu.dot_dimension_numbers<[1], [0], [0], [1], [0, 0, 1, 1], [], []>} : vector<48x32xbf16>, vector<32x96xbf16>, vector<48x96xf32> -> vector<48x96xf32>
    %c1_94 = arith.constant 1 : index
    %c0_95 = arith.constant 0 : index
    %c0_96 = arith.constant 0 : index
    %229 = vector.load %arg7[%c1_94, %c0_95, %c0_96] : memref<2x1x96xf32, #tpu.memory_space<vmem>>, vector<1x1x96xf32>
    %230 = vector.shape_cast %229 : vector<1x1x96xf32> to vector<1x96xf32>
    %231 = vector.broadcast %230 : vector<1x96xf32> to vector<48x96xf32>
    %232 = arith.addf %228, %231 : vector<48x96xf32>
    %c1_97 = arith.constant 1 : index
    %c0_98 = arith.constant 0 : index
    %c0_99 = arith.constant 0 : index
    %233 = vector.load %arg9[%c1_97, %c0_98, %c0_99] : memref<2x1x32xf32, #tpu.memory_space<vmem>>, vector<1x1x32xf32>
    %234 = vector.shape_cast %233 : vector<1x1x32xf32> to vector<1x32xf32>
    %235 = vector.shape_cast %234 : vector<1x32xf32> to vector<1x32xf32>
    %236 = vector.broadcast %235 : vector<1x32xf32> to vector<48x32xf32>
    %c1_100 = arith.constant 1 : index
    %c0_101 = arith.constant 0 : index
    %c0_102 = arith.constant 0 : index
    %237 = vector.load %arg8[%c1_100, %c0_101, %c0_102] : memref<2x32x32xbf16, #tpu.memory_space<vmem>>, vector<1x32x32xbf16>
    %238 = vector.shape_cast %237 : vector<1x32x32xbf16> to vector<32x32xbf16>
    %239 = vector.extract_strided_slice %232 {offsets = [0, 0], sizes = [48, 8], strides = [1, 1]} : vector<48x96xf32> to vector<48x8xf32>
    %240 = arith.truncf %239 : vector<48x8xf32> to vector<48x8xbf16>
    %241 = vector.extract_strided_slice %232 {offsets = [0, 32], sizes = [48, 8], strides = [1, 1]} : vector<48x96xf32> to vector<48x8xf32>
    %242 = arith.truncf %241 : vector<48x8xf32> to vector<48x8xbf16>
    %243 = vector.extract_strided_slice %232 {offsets = [0, 64], sizes = [48, 8], strides = [1, 1]} : vector<48x96xf32> to vector<48x8xf32>
    %244 = arith.truncf %243 : vector<48x8xf32> to vector<48x8xbf16>
    %cst_103 = arith.constant dense<0.000000e+00> : vector<48x48xf32>
    %245 = tpu.matmul %240, %242, %cst_103 {dimension_numbers = #tpu.dot_dimension_numbers<[1], [1], [0], [0], [0, 0, 1, 0], [], []>} : vector<48x8xbf16>, vector<48x8xbf16>, vector<48x48xf32> -> vector<48x48xf32>
    %246 = arith.addf %245, %5 : vector<48x48xf32>
    %cst_104 = arith.constant dense<0xFF800000> : vector<48xf32>
    %247 = vector.multi_reduction <maximumf>, %246, %cst_104 [1] : vector<48x48xf32> to vector<48xf32>
    %248 = vector.shape_cast %247 : vector<48xf32> to vector<48x1xf32>
    %249 = vector.broadcast %248 : vector<48x1xf32> to vector<48x48xf32>
    %250 = arith.subf %246, %249 : vector<48x48xf32>
    %251 = math.exp %250 : vector<48x48xf32>
    %cst_105 = arith.constant dense<0.000000e+00> : vector<48xf32>
    %252 = vector.multi_reduction <add>, %251, %cst_105 [1] : vector<48x48xf32> to vector<48xf32>
    %253 = vector.shape_cast %252 : vector<48xf32> to vector<48x1xf32>
    %254 = tpu.reciprocal %253 {approx = true} : vector<48x1xf32> -> vector<48x1xf32>
    %255 = vector.broadcast %254 : vector<48x1xf32> to vector<48x48xf32>
    %256 = arith.mulf %251, %255 : vector<48x48xf32>
    %257 = arith.truncf %256 : vector<48x48xf32> to vector<48x48xbf16>
    %cst_106 = arith.constant dense<0.000000e+00> : vector<48x8xf32>
    %258 = tpu.matmul %257, %244, %cst_106 {dimension_numbers = #tpu.dot_dimension_numbers<[1], [0], [0], [1], [0, 0, 1, 1], [], []>} : vector<48x48xbf16>, vector<48x8xbf16>, vector<48x8xf32> -> vector<48x8xf32>
    %259 = arith.truncf %258 : vector<48x8xf32> to vector<48x8xbf16>
    %260 = vector.extract_strided_slice %238 {offsets = [0, 0], sizes = [8, 32], strides = [1, 1]} : vector<32x32xbf16> to vector<8x32xbf16>
    %cst_107 = arith.constant dense<0.000000e+00> : vector<48x32xf32>
    %261 = tpu.matmul %259, %260, %cst_107 {dimension_numbers = #tpu.dot_dimension_numbers<[1], [0], [0], [1], [0, 0, 1, 1], [], []>} : vector<48x8xbf16>, vector<8x32xbf16>, vector<48x32xf32> -> vector<48x32xf32>
    %262 = arith.addf %236, %261 : vector<48x32xf32>
    %263 = vector.extract_strided_slice %232 {offsets = [0, 8], sizes = [48, 8], strides = [1, 1]} : vector<48x96xf32> to vector<48x8xf32>
    %264 = arith.truncf %263 : vector<48x8xf32> to vector<48x8xbf16>
    %265 = vector.extract_strided_slice %232 {offsets = [0, 40], sizes = [48, 8], strides = [1, 1]} : vector<48x96xf32> to vector<48x8xf32>
    %266 = arith.truncf %265 : vector<48x8xf32> to vector<48x8xbf16>
    %267 = vector.extract_strided_slice %232 {offsets = [0, 72], sizes = [48, 8], strides = [1, 1]} : vector<48x96xf32> to vector<48x8xf32>
    %268 = arith.truncf %267 : vector<48x8xf32> to vector<48x8xbf16>
    %cst_108 = arith.constant dense<0.000000e+00> : vector<48x48xf32>
    %269 = tpu.matmul %264, %266, %cst_108 {dimension_numbers = #tpu.dot_dimension_numbers<[1], [1], [0], [0], [0, 0, 1, 0], [], []>} : vector<48x8xbf16>, vector<48x8xbf16>, vector<48x48xf32> -> vector<48x48xf32>
    %270 = arith.addf %269, %5 : vector<48x48xf32>
    %cst_109 = arith.constant dense<0xFF800000> : vector<48xf32>
    %271 = vector.multi_reduction <maximumf>, %270, %cst_109 [1] : vector<48x48xf32> to vector<48xf32>
    %272 = vector.shape_cast %271 : vector<48xf32> to vector<48x1xf32>
    %273 = vector.broadcast %272 : vector<48x1xf32> to vector<48x48xf32>
    %274 = arith.subf %270, %273 : vector<48x48xf32>
    %275 = math.exp %274 : vector<48x48xf32>
    %cst_110 = arith.constant dense<0.000000e+00> : vector<48xf32>
    %276 = vector.multi_reduction <add>, %275, %cst_110 [1] : vector<48x48xf32> to vector<48xf32>
    %277 = vector.shape_cast %276 : vector<48xf32> to vector<48x1xf32>
    %278 = tpu.reciprocal %277 {approx = true} : vector<48x1xf32> -> vector<48x1xf32>
    %279 = vector.broadcast %278 : vector<48x1xf32> to vector<48x48xf32>
    %280 = arith.mulf %275, %279 : vector<48x48xf32>
    %281 = arith.truncf %280 : vector<48x48xf32> to vector<48x48xbf16>
    %cst_111 = arith.constant dense<0.000000e+00> : vector<48x8xf32>
    %282 = tpu.matmul %281, %268, %cst_111 {dimension_numbers = #tpu.dot_dimension_numbers<[1], [0], [0], [1], [0, 0, 1, 1], [], []>} : vector<48x48xbf16>, vector<48x8xbf16>, vector<48x8xf32> -> vector<48x8xf32>
    %283 = arith.truncf %282 : vector<48x8xf32> to vector<48x8xbf16>
    %284 = vector.extract_strided_slice %238 {offsets = [8, 0], sizes = [8, 32], strides = [1, 1]} : vector<32x32xbf16> to vector<8x32xbf16>
    %cst_112 = arith.constant dense<0.000000e+00> : vector<48x32xf32>
    %285 = tpu.matmul %283, %284, %cst_112 {dimension_numbers = #tpu.dot_dimension_numbers<[1], [0], [0], [1], [0, 0, 1, 1], [], []>} : vector<48x8xbf16>, vector<8x32xbf16>, vector<48x32xf32> -> vector<48x32xf32>
    %286 = arith.addf %262, %285 : vector<48x32xf32>
    %287 = vector.extract_strided_slice %232 {offsets = [0, 16], sizes = [48, 8], strides = [1, 1]} : vector<48x96xf32> to vector<48x8xf32>
    %288 = arith.truncf %287 : vector<48x8xf32> to vector<48x8xbf16>
    %289 = vector.extract_strided_slice %232 {offsets = [0, 48], sizes = [48, 8], strides = [1, 1]} : vector<48x96xf32> to vector<48x8xf32>
    %290 = arith.truncf %289 : vector<48x8xf32> to vector<48x8xbf16>
    %291 = vector.extract_strided_slice %232 {offsets = [0, 80], sizes = [48, 8], strides = [1, 1]} : vector<48x96xf32> to vector<48x8xf32>
    %292 = arith.truncf %291 : vector<48x8xf32> to vector<48x8xbf16>
    %cst_113 = arith.constant dense<0.000000e+00> : vector<48x48xf32>
    %293 = tpu.matmul %288, %290, %cst_113 {dimension_numbers = #tpu.dot_dimension_numbers<[1], [1], [0], [0], [0, 0, 1, 0], [], []>} : vector<48x8xbf16>, vector<48x8xbf16>, vector<48x48xf32> -> vector<48x48xf32>
    %294 = arith.addf %293, %5 : vector<48x48xf32>
    %cst_114 = arith.constant dense<0xFF800000> : vector<48xf32>
    %295 = vector.multi_reduction <maximumf>, %294, %cst_114 [1] : vector<48x48xf32> to vector<48xf32>
    %296 = vector.shape_cast %295 : vector<48xf32> to vector<48x1xf32>
    %297 = vector.broadcast %296 : vector<48x1xf32> to vector<48x48xf32>
    %298 = arith.subf %294, %297 : vector<48x48xf32>
    %299 = math.exp %298 : vector<48x48xf32>
    %cst_115 = arith.constant dense<0.000000e+00> : vector<48xf32>
    %300 = vector.multi_reduction <add>, %299, %cst_115 [1] : vector<48x48xf32> to vector<48xf32>
    %301 = vector.shape_cast %300 : vector<48xf32> to vector<48x1xf32>
    %302 = tpu.reciprocal %301 {approx = true} : vector<48x1xf32> -> vector<48x1xf32>
    %303 = vector.broadcast %302 : vector<48x1xf32> to vector<48x48xf32>
    %304 = arith.mulf %299, %303 : vector<48x48xf32>
    %305 = arith.truncf %304 : vector<48x48xf32> to vector<48x48xbf16>
    %cst_116 = arith.constant dense<0.000000e+00> : vector<48x8xf32>
    %306 = tpu.matmul %305, %292, %cst_116 {dimension_numbers = #tpu.dot_dimension_numbers<[1], [0], [0], [1], [0, 0, 1, 1], [], []>} : vector<48x48xbf16>, vector<48x8xbf16>, vector<48x8xf32> -> vector<48x8xf32>
    %307 = arith.truncf %306 : vector<48x8xf32> to vector<48x8xbf16>
    %308 = vector.extract_strided_slice %238 {offsets = [16, 0], sizes = [8, 32], strides = [1, 1]} : vector<32x32xbf16> to vector<8x32xbf16>
    %cst_117 = arith.constant dense<0.000000e+00> : vector<48x32xf32>
    %309 = tpu.matmul %307, %308, %cst_117 {dimension_numbers = #tpu.dot_dimension_numbers<[1], [0], [0], [1], [0, 0, 1, 1], [], []>} : vector<48x8xbf16>, vector<8x32xbf16>, vector<48x32xf32> -> vector<48x32xf32>
    %310 = arith.addf %286, %309 : vector<48x32xf32>
    %311 = vector.extract_strided_slice %232 {offsets = [0, 24], sizes = [48, 8], strides = [1, 1]} : vector<48x96xf32> to vector<48x8xf32>
    %312 = arith.truncf %311 : vector<48x8xf32> to vector<48x8xbf16>
    %313 = vector.extract_strided_slice %232 {offsets = [0, 56], sizes = [48, 8], strides = [1, 1]} : vector<48x96xf32> to vector<48x8xf32>
    %314 = arith.truncf %313 : vector<48x8xf32> to vector<48x8xbf16>
    %315 = vector.extract_strided_slice %232 {offsets = [0, 88], sizes = [48, 8], strides = [1, 1]} : vector<48x96xf32> to vector<48x8xf32>
    %316 = arith.truncf %315 : vector<48x8xf32> to vector<48x8xbf16>
    %cst_118 = arith.constant dense<0.000000e+00> : vector<48x48xf32>
    %317 = tpu.matmul %312, %314, %cst_118 {dimension_numbers = #tpu.dot_dimension_numbers<[1], [1], [0], [0], [0, 0, 1, 0], [], []>} : vector<48x8xbf16>, vector<48x8xbf16>, vector<48x48xf32> -> vector<48x48xf32>
    %318 = arith.addf %317, %5 : vector<48x48xf32>
    %cst_119 = arith.constant dense<0xFF800000> : vector<48xf32>
    %319 = vector.multi_reduction <maximumf>, %318, %cst_119 [1] : vector<48x48xf32> to vector<48xf32>
    %320 = vector.shape_cast %319 : vector<48xf32> to vector<48x1xf32>
    %321 = vector.broadcast %320 : vector<48x1xf32> to vector<48x48xf32>
    %322 = arith.subf %318, %321 : vector<48x48xf32>
    %323 = math.exp %322 : vector<48x48xf32>
    %cst_120 = arith.constant dense<0.000000e+00> : vector<48xf32>
    %324 = vector.multi_reduction <add>, %323, %cst_120 [1] : vector<48x48xf32> to vector<48xf32>
    %325 = vector.shape_cast %324 : vector<48xf32> to vector<48x1xf32>
    %326 = tpu.reciprocal %325 {approx = true} : vector<48x1xf32> -> vector<48x1xf32>
    %327 = vector.broadcast %326 : vector<48x1xf32> to vector<48x48xf32>
    %328 = arith.mulf %323, %327 : vector<48x48xf32>
    %329 = arith.truncf %328 : vector<48x48xf32> to vector<48x48xbf16>
    %cst_121 = arith.constant dense<0.000000e+00> : vector<48x8xf32>
    %330 = tpu.matmul %329, %316, %cst_121 {dimension_numbers = #tpu.dot_dimension_numbers<[1], [0], [0], [1], [0, 0, 1, 1], [], []>} : vector<48x48xbf16>, vector<48x8xbf16>, vector<48x8xf32> -> vector<48x8xf32>
    %331 = arith.truncf %330 : vector<48x8xf32> to vector<48x8xbf16>
    %332 = vector.extract_strided_slice %238 {offsets = [24, 0], sizes = [8, 32], strides = [1, 1]} : vector<32x32xbf16> to vector<8x32xbf16>
    %cst_122 = arith.constant dense<0.000000e+00> : vector<48x32xf32>
    %333 = tpu.matmul %331, %332, %cst_122 {dimension_numbers = #tpu.dot_dimension_numbers<[1], [0], [0], [1], [0, 0, 1, 1], [], []>} : vector<48x8xbf16>, vector<8x32xbf16>, vector<48x32xf32> -> vector<48x32xf32>
    %334 = arith.addf %310, %333 : vector<48x32xf32>
    %335 = arith.addf %198, %334 : vector<48x32xf32>
    %c1_123 = arith.constant 1 : index
    %c0_124 = arith.constant 0 : index
    %c0_125 = arith.constant 0 : index
    %336 = vector.load %arg10[%c1_123, %c0_124, %c0_125] : memref<2x1x32xf32, #tpu.memory_space<vmem>>, vector<1x1x32xf32>
    %337 = vector.shape_cast %336 : vector<1x1x32xf32> to vector<1x32xf32>
    %c1_126 = arith.constant 1 : index
    %c0_127 = arith.constant 0 : index
    %c0_128 = arith.constant 0 : index
    %338 = vector.load %arg11[%c1_126, %c0_127, %c0_128] : memref<2x1x32xf32, #tpu.memory_space<vmem>>, vector<1x1x32xf32>
    %339 = vector.shape_cast %338 : vector<1x1x32xf32> to vector<1x32xf32>
    %cst_129 = arith.constant dense<0.000000e+00> : vector<48xf32>
    %340 = vector.multi_reduction <add>, %335, %cst_129 [1] : vector<48x32xf32> to vector<48xf32>
    %341 = vector.shape_cast %340 : vector<48xf32> to vector<48x1xf32>
    %cst_130 = arith.constant 3.200000e+01 : f32
    %342 = vector.broadcast %cst_130 : f32 to vector<48x1xf32>
    %343 = arith.divf %341, %342 : vector<48x1xf32>
    %344 = vector.broadcast %343 : vector<48x1xf32> to vector<48x32xf32>
    %345 = arith.subf %335, %344 : vector<48x32xf32>
    %346 = arith.mulf %345, %345 : vector<48x32xf32>
    %cst_131 = arith.constant dense<0.000000e+00> : vector<48xf32>
    %347 = vector.multi_reduction <add>, %346, %cst_131 [1] : vector<48x32xf32> to vector<48xf32>
    %348 = vector.shape_cast %347 : vector<48xf32> to vector<48x1xf32>
    %cst_132 = arith.constant 3.200000e+01 : f32
    %349 = vector.broadcast %cst_132 : f32 to vector<48x1xf32>
    %350 = arith.divf %348, %349 : vector<48x1xf32>
    %351 = vector.broadcast %343 : vector<48x1xf32> to vector<48x32xf32>
    %352 = arith.subf %335, %351 : vector<48x32xf32>
    %cst_133 = arith.constant 9.99999997E-7 : f32
    %353 = vector.broadcast %cst_133 : f32 to vector<48x1xf32>
    %354 = arith.addf %350, %353 : vector<48x1xf32>
    %355 = math.rsqrt %354 : vector<48x1xf32>
    %356 = vector.broadcast %355 : vector<48x1xf32> to vector<48x32xf32>
    %357 = arith.mulf %352, %356 : vector<48x32xf32>
    %358 = vector.broadcast %337 : vector<1x32xf32> to vector<48x32xf32>
    %359 = arith.mulf %357, %358 : vector<48x32xf32>
    %360 = vector.broadcast %339 : vector<1x32xf32> to vector<48x32xf32>
    %361 = arith.addf %359, %360 : vector<48x32xf32>
    %c1_134 = arith.constant 1 : index
    %c0_135 = arith.constant 0 : index
    %c0_136 = arith.constant 0 : index
    %362 = vector.load %arg12[%c1_134, %c0_135, %c0_136] : memref<2x32x128xbf16, #tpu.memory_space<vmem>>, vector<1x32x128xbf16>
    %363 = vector.shape_cast %362 : vector<1x32x128xbf16> to vector<32x128xbf16>
    %364 = arith.truncf %361 : vector<48x32xf32> to vector<48x32xbf16>
    %cst_137 = arith.constant dense<0.000000e+00> : vector<48x128xf32>
    %365 = tpu.matmul %364, %363, %cst_137 {dimension_numbers = #tpu.dot_dimension_numbers<[1], [0], [0], [1], [0, 0, 1, 1], [], []>} : vector<48x32xbf16>, vector<32x128xbf16>, vector<48x128xf32> -> vector<48x128xf32>
    %c1_138 = arith.constant 1 : index
    %c0_139 = arith.constant 0 : index
    %c0_140 = arith.constant 0 : index
    %366 = vector.load %arg13[%c1_138, %c0_139, %c0_140] : memref<2x1x128xf32, #tpu.memory_space<vmem>>, vector<1x1x128xf32>
    %367 = vector.shape_cast %366 : vector<1x1x128xf32> to vector<1x128xf32>
    %368 = vector.broadcast %367 : vector<1x128xf32> to vector<48x128xf32>
    %369 = arith.addf %365, %368 : vector<48x128xf32>
    %370 = arith.mulf %369, %369 : vector<48x128xf32>
    %371 = arith.mulf %369, %370 : vector<48x128xf32>
    %cst_141 = arith.constant 4.471500e-02 : f32
    %372 = vector.broadcast %cst_141 : f32 to vector<48x128xf32>
    %373 = arith.mulf %372, %371 : vector<48x128xf32>
    %374 = arith.addf %369, %373 : vector<48x128xf32>
    %cst_142 = arith.constant 0.797884583 : f32
    %375 = vector.broadcast %cst_142 : f32 to vector<48x128xf32>
    %376 = arith.mulf %375, %374 : vector<48x128xf32>
    %377 = math.tanh %376 : vector<48x128xf32>
    %cst_143 = arith.constant 1.000000e+00 : f32
    %378 = vector.broadcast %cst_143 : f32 to vector<48x128xf32>
    %379 = arith.addf %378, %377 : vector<48x128xf32>
    %cst_144 = arith.constant 5.000000e-01 : f32
    %380 = vector.broadcast %cst_144 : f32 to vector<48x128xf32>
    %381 = arith.mulf %380, %379 : vector<48x128xf32>
    %382 = arith.mulf %369, %381 : vector<48x128xf32>
    %c1_145 = arith.constant 1 : index
    %c0_146 = arith.constant 0 : index
    %c0_147 = arith.constant 0 : index
    %383 = vector.load %arg14[%c1_145, %c0_146, %c0_147] : memref<2x128x32xbf16, #tpu.memory_space<vmem>>, vector<1x128x32xbf16>
    %384 = vector.shape_cast %383 : vector<1x128x32xbf16> to vector<128x32xbf16>
    %385 = arith.truncf %382 : vector<48x128xf32> to vector<48x128xbf16>
    %cst_148 = arith.constant dense<0.000000e+00> : vector<48x32xf32>
    %386 = tpu.matmul %385, %384, %cst_148 {dimension_numbers = #tpu.dot_dimension_numbers<[1], [0], [0], [1], [0, 0, 1, 1], [], []>} : vector<48x128xbf16>, vector<128x32xbf16>, vector<48x32xf32> -> vector<48x32xf32>
    %387 = arith.addf %335, %386 : vector<48x32xf32>
    %c1_149 = arith.constant 1 : index
    %c0_150 = arith.constant 0 : index
    %c0_151 = arith.constant 0 : index
    %388 = vector.load %arg15[%c1_149, %c0_150, %c0_151] : memref<2x1x32xf32, #tpu.memory_space<vmem>>, vector<1x1x32xf32>
    %389 = vector.shape_cast %388 : vector<1x1x32xf32> to vector<1x32xf32>
    %390 = vector.broadcast %389 : vector<1x32xf32> to vector<48x32xf32>
    %391 = arith.addf %387, %390 : vector<48x32xf32>
    %392 = vector.extract_strided_slice %391 {offsets = [16, 0], sizes = [1, 32], strides = [1, 1]} : vector<48x32xf32> to vector<1x32xf32>
    %393 = vector.extract_strided_slice %391 {offsets = [40, 0], sizes = [1, 32], strides = [1, 1]} : vector<48x32xf32> to vector<1x32xf32>
    %394 = tpu.concatenate %392, %393 in 0 : vector<1x32xf32>, vector<1x32xf32> -> vector<2x32xf32>
    %c0_152 = arith.constant 0 : index
    %c0_153 = arith.constant 0 : index
    %395 = vector.load %arg16[%c0_152, %c0_153] : memref<1x32xf32, #tpu.memory_space<vmem>>, vector<1x32xf32>
    %c0_154 = arith.constant 0 : index
    %c0_155 = arith.constant 0 : index
    %396 = vector.load %arg17[%c0_154, %c0_155] : memref<1x32xf32, #tpu.memory_space<vmem>>, vector<1x32xf32>
    %cst_156 = arith.constant dense<0.000000e+00> : vector<2xf32>
    %397 = vector.multi_reduction <add>, %394, %cst_156 [1] : vector<2x32xf32> to vector<2xf32>
    %398 = vector.shape_cast %397 : vector<2xf32> to vector<2x1xf32>
    %cst_157 = arith.constant 3.200000e+01 : f32
    %399 = vector.broadcast %cst_157 : f32 to vector<2x1xf32>
    %400 = arith.divf %398, %399 : vector<2x1xf32>
    %401 = vector.broadcast %400 : vector<2x1xf32> to vector<2x32xf32>
    %402 = arith.subf %394, %401 : vector<2x32xf32>
    %403 = arith.mulf %402, %402 : vector<2x32xf32>
    %cst_158 = arith.constant dense<0.000000e+00> : vector<2xf32>
    %404 = vector.multi_reduction <add>, %403, %cst_158 [1] : vector<2x32xf32> to vector<2xf32>
    %405 = vector.shape_cast %404 : vector<2xf32> to vector<2x1xf32>
    %cst_159 = arith.constant 3.200000e+01 : f32
    %406 = vector.broadcast %cst_159 : f32 to vector<2x1xf32>
    %407 = arith.divf %405, %406 : vector<2x1xf32>
    %408 = vector.broadcast %400 : vector<2x1xf32> to vector<2x32xf32>
    %409 = arith.subf %394, %408 : vector<2x32xf32>
    %cst_160 = arith.constant 9.99999997E-7 : f32
    %410 = vector.broadcast %cst_160 : f32 to vector<2x1xf32>
    %411 = arith.addf %407, %410 : vector<2x1xf32>
    %412 = math.rsqrt %411 : vector<2x1xf32>
    %413 = vector.broadcast %412 : vector<2x1xf32> to vector<2x32xf32>
    %414 = arith.mulf %409, %413 : vector<2x32xf32>
    %415 = vector.broadcast %395 : vector<1x32xf32> to vector<2x32xf32>
    %416 = arith.mulf %414, %415 : vector<2x32xf32>
    %417 = vector.broadcast %396 : vector<1x32xf32> to vector<2x32xf32>
    %418 = arith.addf %416, %417 : vector<2x32xf32>
    %c0_161 = arith.constant 0 : index
    %c0_162 = arith.constant 0 : index
    %419 = vector.load %arg18[%c0_161, %c0_162] : memref<32x128xbf16, #tpu.memory_space<vmem>>, vector<32x128xbf16>
    %420 = arith.truncf %418 : vector<2x32xf32> to vector<2x32xbf16>
    %cst_163 = arith.constant dense<0.000000e+00> : vector<2x128xf32>
    %421 = tpu.matmul %420, %419, %cst_163 {dimension_numbers = #tpu.dot_dimension_numbers<[1], [0], [0], [1], [0, 0, 1, 1], [], []>} : vector<2x32xbf16>, vector<32x128xbf16>, vector<2x128xf32> -> vector<2x128xf32>
    %c0_164 = arith.constant 0 : index
    %c0_165 = arith.constant 0 : index
    %422 = vector.load %arg19[%c0_164, %c0_165] : memref<1x128xf32, #tpu.memory_space<vmem>>, vector<1x128xf32>
    %423 = vector.broadcast %422 : vector<1x128xf32> to vector<2x128xf32>
    %424 = arith.addf %421, %423 : vector<2x128xf32>
    %c0_166 = arith.constant 0 : index
    %c0_167 = arith.constant 0 : index
    %425 = vector.load %arg20[%c0_166, %c0_167] : memref<2x128xf32, #tpu.memory_space<vmem>>, vector<2x128xf32>
    tpu.vector_store %arg20[%c0_166, %c0_167], %424 {strides = array<i32>} : memref<2x128xf32, #tpu.memory_space<vmem>>, vector<2x128xf32>,
    return
  }
}

</mosaic_0001>

<llo_original>
// kernel: vit_forward.1
$region0: #{vit_forward.1}
  #allocation0 [shape = 'u32[]', space=smem, size = 0x4, offset = 0x4, fixed_abs, tag = 'smem constant byte address 0x4 - core index']
  #allocation1 [shape = 'u32[72,128]{1,0:T(1,128)}', space=vmem, size = 0x9000, scoped, tag = 'internal scratch']
  %s0 = inlined_call_operand.vmem [shape: bf16[48,48], index: 0, kind: input, shape index: {}]
  %s1 = inlined_call_operand.vmem [shape: bf16[48,32], index: 1, kind: input, shape index: {}]
  %s2 = inlined_call_operand.vmem [shape: f32[48,32], index: 2, kind: input, shape index: {}]
  %s3 = inlined_call_operand.vmem [shape: f32[48,48], index: 3, kind: input, shape index: {}]
  %s4 = inlined_call_operand.vmem [shape: f32[2,1,32], index: 4, kind: input, shape index: {}]
  %s5 = inlined_call_operand.vmem [shape: f32[2,1,32], index: 5, kind: input, shape index: {}]
  %s6 = inlined_call_operand.vmem [shape: bf16[2,32,96], index: 6, kind: input, shape index: {}]
  %s7 = inlined_call_operand.vmem [shape: f32[2,1,96], index: 7, kind: input, shape index: {}]
  %s8 = inlined_call_operand.vmem [shape: bf16[2,32,32], index: 8, kind: input, shape index: {}]
  %s9 = inlined_call_operand.vmem [shape: f32[2,1,32], index: 9, kind: input, shape index: {}]
  %s10 = inlined_call_operand.vmem [shape: f32[2,1,32], index: 10, kind: input, shape index: {}]
  %s11 = inlined_call_operand.vmem [shape: f32[2,1,32], index: 11, kind: input, shape index: {}]
  %s12 = inlined_call_operand.vmem [shape: bf16[2,32,128], index: 12, kind: input, shape index: {}]
  %s13 = inlined_call_operand.vmem [shape: f32[2,1,128], index: 13, kind: input, shape index: {}]
  %s14 = inlined_call_operand.vmem [shape: bf16[2,128,32], index: 14, kind: input, shape index: {}]
  %s15 = inlined_call_operand.vmem [shape: f32[2,1,32], index: 15, kind: input, shape index: {}]
  %s16 = inlined_call_operand.vmem [shape: f32[1,32], index: 16, kind: input, shape index: {}]
  %s17 = inlined_call_operand.vmem [shape: f32[1,32], index: 17, kind: input, shape index: {}]
  %s18 = inlined_call_operand.vmem [shape: bf16[32,128], index: 18, kind: input, shape index: {}]
  %s19 = inlined_call_operand.vmem [shape: f32[1,128], index: 19, kind: input, shape index: {}]
  %s20 = inlined_call_operand.hbm [shape: f32[2,128], index: 20, kind: output, shape index: {}]
  %s21 = sld [smem:[#allocation0]]
  $region90: #{vit_forward.1} parent=0
    _
  %s23 = ssub.s32 1, %s21
  %s24 = scalar_select 0, %s23, %s21
  $region1: #{vit_forward.1} parent=0
    #allocation2 [shape = 'u8[1024]{0}', space=vmem, size = 0x400, scoped, tag = 'output window, operand 0, single buffered']
    #allocation3 [shape = 's32[1]{0}', space=sflag, size = 0x4, scoped, tag = 'scoped memory for vit_forward.1']
    %25 = vsyncpa [#allocation3], 0
    // Predicated region
    $region2: #{vit_forward.1} parent=1 // pred_check
      _
    $region3: #{vit_forward.1} parent=1 // pred_check_branch
      %27 = sbr.rel (0) target = $region5
    $region4: #{vit_forward.1} parent=1 // pred_region
      _
    $region5: #{vit_forward.1} parent=1 // pred_fallthru
      _
    // Predicated region
    $region6: #{vit_forward.1} parent=1 // pred_check
      _
    $region7: #{vit_forward.1} parent=1 // pred_check_branch
      %29 = sbr.rel (0) target = $region9
    $region8: #{vit_forward.1} parent=1 // pred_region
      _
    $region9: #{vit_forward.1} parent=1 // pred_fallthru
      _
    // Predicated region
    $region10: #{vit_forward.1} parent=1 // pred_check
      _
    $region11: #{vit_forward.1} parent=1 // pred_check_branch
      %31 = sbr.rel (0) target = $region13
    $region12: #{vit_forward.1} parent=1 // pred_region
      _
    $region13: #{vit_forward.1} parent=1 // pred_fallthru
      _
    // Predicated region
    $region14: #{vit_forward.1} parent=1 // pred_check
      _
    $region15: #{vit_forward.1} parent=1 // pred_check_branch
      %33 = sbr.rel (0) target = $region17
    $region16: #{vit_forward.1} parent=1 // pred_region
      _
    $region17: #{vit_forward.1} parent=1 // pred_fallthru
      _
    // Predicated region
    $region18: #{vit_forward.1} parent=1 // pred_check
      _
    $region19: #{vit_forward.1} parent=1 // pred_check_branch
      %35 = sbr.rel (0) target = $region21
    $region20: #{vit_forward.1} parent=1 // pred_region
      _
    $region21: #{vit_forward.1} parent=1 // pred_fallthru
      _
    // Predicated region
    $region22: #{vit_forward.1} parent=1 // pred_check
      _
    $region23: #{vit_forward.1} parent=1 // pred_check_branch
      %37 = sbr.rel (0) target = $region25
    $region24: #{vit_forward.1} parent=1 // pred_region
      _
    $region25: #{vit_forward.1} parent=1 // pred_fallthru
      _
    // Predicated region
    $region26: #{vit_forward.1} parent=1 // pred_check
      _
    $region27: #{vit_forward.1} parent=1 // pred_check_branch
      %39 = sbr.rel (0) target = $region29
    $region28: #{vit_forward.1} parent=1 // pred_region
      _
    $region29: #{vit_forward.1} parent=1 // pred_fallthru
      _
    // Predicated region
    $region30: #{vit_forward.1} parent=1 // pred_check
      _
    $region31: #{vit_forward.1} parent=1 // pred_check_branch
      %41 = sbr.rel (0) target = $region33
    $region32: #{vit_forward.1} parent=1 // pred_region
      _
    $region33: #{vit_forward.1} parent=1 // pred_fallthru
      _
    // Predicated region
    $region34: #{vit_forward.1} parent=1 // pred_check
      _
    $region35: #{vit_forward.1} parent=1 // pred_check_branch
      %43 = sbr.rel (0) target = $region37
    $region36: #{vit_forward.1} parent=1 // pred_region
      _
    $region37: #{vit_forward.1} parent=1 // pred_fallthru
      _
    // Predicated region
    $region38: #{vit_forward.1} parent=1 // pred_check
      _
    $region39: #{vit_forward.1} parent=1 // pred_check_branch
      %45 = sbr.rel (0) target = $region41
    $region40: #{vit_forward.1} parent=1 // pred_region
      _
    $region41: #{vit_forward.1} parent=1 // pred_fallthru
      _
    // Predicated region
    $region42: #{vit_forward.1} parent=1 // pred_check
      _
    $region43: #{vit_forward.1} parent=1 // pred_check_branch
      %47 = sbr.rel (0) target = $region45
    $region44: #{vit_forward.1} parent=1 // pred_region
      _
    $region45: #{vit_forward.1} parent=1 // pred_fallthru
      _
    // Predicated region
    $region46: #{vit_forward.1} parent=1 // pred_check
      _
    $region47: #{vit_forward.1} parent=1 // pred_check_branch
      %49 = sbr.rel (0) target = $region49
    $region48: #{vit_forward.1} parent=1 // pred_region
      _
    $region49: #{vit_forward.1} parent=1 // pred_fallthru
      _
    // Predicated region
    $region50: #{vit_forward.1} parent=1 // pred_check
      _
    $region51: #{vit_forward.1} parent=1 // pred_check_branch
      %51 = sbr.rel (0) target = $region53
    $region52: #{vit_forward.1} parent=1 // pred_region
      _
    $region53: #{vit_forward.1} parent=1 // pred_fallthru
      _
    // Predicated region
    $region54: #{vit_forward.1} parent=1 // pred_check
      _
    $region55: #{vit_forward.1} parent=1 // pred_check_branch
      %53 = sbr.rel (0) target = $region57
    $region56: #{vit_forward.1} parent=1 // pred_region
      _
    $region57: #{vit_forward.1} parent=1 // pred_fallthru
      _
    // Predicated region
    $region58: #{vit_forward.1} parent=1 // pred_check
      _
    $region59: #{vit_forward.1} parent=1 // pred_check_branch
      %55 = sbr.rel (0) target = $region61
    $region60: #{vit_forward.1} parent=1 // pred_region
      _
    $region61: #{vit_forward.1} parent=1 // pred_fallthru
      _
    // Predicated region
    $region62: #{vit_forward.1} parent=1 // pred_check
      _
    $region63: #{vit_forward.1} parent=1 // pred_check_branch
      %57 = sbr.rel (0) target = $region65
    $region64: #{vit_forward.1} parent=1 // pred_region
      _
    $region65: #{vit_forward.1} parent=1 // pred_fallthru
      _
    // Predicated region
    $region66: #{vit_forward.1} parent=1 // pred_check
      _
    $region67: #{vit_forward.1} parent=1 // pred_check_branch
      %59 = sbr.rel (0) target = $region69
    $region68: #{vit_forward.1} parent=1 // pred_region
      _
    $region69: #{vit_forward.1} parent=1 // pred_fallthru
      _
    // Predicated region
    $region70: #{vit_forward.1} parent=1 // pred_check
      _
    $region71: #{vit_forward.1} parent=1 // pred_check_branch
      %61 = sbr.rel (0) target = $region73
    $region72: #{vit_forward.1} parent=1 // pred_region
      _
    $region73: #{vit_forward.1} parent=1 // pred_fallthru
      _
    // Predicated region
    $region74: #{vit_forward.1} parent=1 // pred_check
      _
    $region75: #{vit_forward.1} parent=1 // pred_check_branch
      %63 = sbr.rel (0) target = $region77
    $region76: #{vit_forward.1} parent=1 // pred_region
      _
    $region77: #{vit_forward.1} parent=1 // pred_fallthru
      _
    // Predicated region
    $region78: #{vit_forward.1} parent=1 // pred_check
      _
    $region79: #{vit_forward.1} parent=1 // pred_check_branch
      %65 = sbr.rel (0) target = $region81
    $region80: #{vit_forward.1} parent=1 // pred_region
      _
    $region81: #{vit_forward.1} parent=1 // pred_fallthru
      _
    %v67 = vld [vmem:[%s0] sm:$0xf]
    %v68 = vld [vmem:[%s0 + $0x4] sm:$0xf]
    %v69 = vld [vmem:[%s0 + $0x8] sm:$0xf]
    %v70 = vld [vmem:[%s0 + $0xc] sm:$0xf]
    %v71 = vld [vmem:[%s0 + $0x10] sm:$0xf]
    %v72 = vld [vmem:[%s0 + $0x14] sm:$0xf]
    %v73 = vld [vmem:[%s1] sm:$0xf]
    %v74 = vld [vmem:[%s1 + $0x4] sm:$0xf]
    %v75 = vld [vmem:[%s1 + $0x8] sm:$0xf]
    %v76 = vld [vmem:[%s1 + $0xc] sm:$0xf]
    %v77 = vld [vmem:[%s1 + $0x10] sm:$0xf]
    %v78 = vld [vmem:[%s1 + $0x14] sm:$0xf]
    %v79 = vld [vmem:[%s2] sm:$0xff]
    %v80 = vld [vmem:[%s2 + $0x8] sm:$0xff]
    %v81 = vld [vmem:[%s2 + $0x10] sm:$0xff]
    %v82 = vld [vmem:[%s2 + $0x18] sm:$0xff]
    %v83 = vld [vmem:[%s2 + $0x20] sm:$0xff]
    %v84 = vld [vmem:[%s2 + $0x28] sm:$0xff]
    %v91 = vunpack.c.l.b16 %v67
    %v92 = vunpack.c.l.b16 %v68
    %v93 = vunpack.c.l.b16 %v69
    %v94 = vunpack.c.l.b16 %v70
    %v95 = vunpack.c.l.b16 %v71
    %v96 = vunpack.c.l.b16 %v72
    %v97 = vpack.c.b16 %v92, %v91
    %v98 = vpack.c.b16 %v94, %v93
    %v99 = vpack.c.b16 %v96, %v95
    %v106 = vunpack.c.l.b16 %v73
    %v107 = vunpack.c.l.b16 %v74
    %v108 = vunpack.c.l.b16 %v75
    %v109 = vunpack.c.l.b16 %v76
    %v110 = vunpack.c.l.b16 %v77
    %v111 = vunpack.c.l.b16 %v78
    %v112 = vpack.c.b16 %v107, %v106
    %v113 = vpack.c.b16 %v109, %v108
    %v114 = vpack.c.b16 %v111, %v110
    %vm118 = vcmask 392192
    %v120 = vsel %vm118, %v97, 0
    %v123 = vsel %vm118, %v98, 0
    %v126 = vsel %vm118, %v99, 0
    %128 = vmatpush.bf16.msra.mxu0 0
    %129 = vmatpush.bf16.msra.mxu0 0
    %130 = vmatpush.bf16.msra.mxu0 0
    %131 = vmatpush.bf16.msra.mxu0 0
    %132 = vmatpush.bf16.msra.mxu0 0
    %133 = vmatpush.bf16.msra.mxu0 %v114
    %134 = vmatpush.bf16.msra.mxu0 %v113
    %135 = vmatpush.bf16.msra.mxu0 %v112
    %136 = vmatmul.bf16.gmra.mxu0 %v120
    %v137 = vpop.f32.mrf.mxu0
    %v138 = vadd.f32 %v79, %v137
    %v139 = vpop.f32.mrf.mxu0
    %v140 = vadd.f32 %v80, %v139
    %141 = vmatmul.bf16.gmra.mxu0 %v123
    %v142 = vpop.f32.mrf.mxu0
    %v143 = vadd.f32 %v81, %v142
    %v144 = vpop.f32.mrf.mxu0
    %v145 = vadd.f32 %v82, %v144
    %146 = vmatmul.bf16.gmra.mxu0 %v126
    %v147 = vpop.f32.mrf.mxu0
    %v148 = vadd.f32 %v83, %v147
    %v149 = vpop.f32.mrf.mxu0
    %v150 = vadd.f32 %v84, %v149
    %151 = vdwg.mxu0
    %v152 = vld [vmem:[%s3] sm:$0xff]
    %v153 = vld [vmem:[%s3 + $0x8] sm:$0xff]
    %v154 = vld [vmem:[%s3 + $0x10] sm:$0xff]
    %v155 = vld [vmem:[%s3 + $0x18] sm:$0xff]
    %v156 = vld [vmem:[%s3 + $0x20] sm:$0xff]
    %v157 = vld [vmem:[%s3 + $0x28] sm:$0xff]
    %v158 = vld [vmem:[%s4] sm:$0x1]
    %v159 = vld [vmem:[%s5] sm:$0x1]
    %vm160 = vcmask 261120
    %v161 = vsel %vm160, %v138, 0.0
    %162 = vadd.xlane.f32.xlu0 %v161
    %v163 = vpop.xlane.xlu0 %162
    %v164 = vsel %vm160, %v140, 0.0
    %165 = vadd.xlane.f32.xlu0 %v164
    %v166 = vpop.xlane.xlu0 %165
    %v167 = vsel %vm160, %v143, 0.0
    %168 = vadd.xlane.f32.xlu0 %v167
    %v169 = vpop.xlane.xlu0 %168
    %v170 = vsel %vm160, %v145, 0.0
    %171 = vadd.xlane.f32.xlu0 %v170
    %v172 = vpop.xlane.xlu0 %171
    %v173 = vsel %vm160, %v148, 0.0
    %174 = vadd.xlane.f32.xlu0 %v173
    %v175 = vpop.xlane.xlu0 %174
    %v176 = vsel %vm160, %v150, 0.0
    %177 = vadd.xlane.f32.xlu0 %v176
    %v178 = vpop.xlane.xlu0 %177
    %v179 = vrcp.pop 32.0
    %v180 = vmul.f32 32.0, %v179
    %v181 = vsub.f32 1.0, %v180
    %v182 = vmul.f32 %v179, %v181
    %v183 = vadd.f32 %v179, %v182
    %vm184 = vweird.f32 %v179
    %v185 = vsel %vm184, %v179, %v183
    %v186 = vmul.f32 %v163, %v185
    %v187 = vmul.f32 %v166, %v185
    %v188 = vmul.f32 %v169, %v185
    %v189 = vmul.f32 %v172, %v185
    %v190 = vmul.f32 %v175, %v185
    %v191 = vmul.f32 %v178, %v185
    %v192 = vsub.f32 %v138, %v186
    %v193 = vsub.f32 %v140, %v187
    %v194 = vsub.f32 %v143, %v188
    %v195 = vsub.f32 %v145, %v189
    %v196 = vsub.f32 %v148, %v190
    %v197 = vsub.f32 %v150, %v191
    %v198 = vmul.f32 %v192, %v192
    %v199 = vmul.f32 %v193, %v193
    %v200 = vmul.f32 %v194, %v194
    %v201 = vmul.f32 %v195, %v195
    %v202 = vmul.f32 %v196, %v196
    %v203 = vmul.f32 %v197, %v197
    %v204 = vsel %vm160, %v198, 0.0
    %205 = vadd.xlane.f32.xlu0 %v204
    %v206 = vpop.xlane.xlu0 %205
    %v207 = vsel %vm160, %v199, 0.0
    %208 = vadd.xlane.f32.xlu0 %v207
    %v209 = vpop.xlane.xlu0 %208
    %v210 = vsel %vm160, %v200, 0.0
    %211 = vadd.xlane.f32.xlu0 %v210
    %v212 = vpop.xlane.xlu0 %211
    %v213 = vsel %vm160, %v201, 0.0
    %214 = vadd.xlane.f32.xlu0 %v213
    %v215 = vpop.xlane.xlu0 %214
    %v216 = vsel %vm160, %v202, 0.0
    %217 = vadd.xlane.f32.xlu0 %v216
    %v218 = vpop.xlane.xlu0 %217
    %v219 = vsel %vm160, %v203, 0.0
    %220 = vadd.xlane.f32.xlu0 %v219
    %v221 = vpop.xlane.xlu0 %220
    %v222 = vmul.f32 %v206, %v185
    %v223 = vmul.f32 %v209, %v185
    %v224 = vmul.f32 %v212, %v185
    %v225 = vmul.f32 %v215, %v185
    %v226 = vmul.f32 %v218, %v185
    %v227 = vmul.f32 %v221, %v185
    %v228 = vadd.f32 %v222, 1e-06
    %v229 = vadd.f32 %v223, 1e-06
    %v230 = vadd.f32 %v224, 1e-06
    %v231 = vadd.f32 %v225, 1e-06
    %v232 = vadd.f32 %v226, 1e-06
    %v233 = vadd.f32 %v227, 1e-06
    %v234 = vrsqrt.pop %v228
    %v235 = vmul.f32 %v234, %v228
    %v236 = vmul.f32 %v235, %v234
    %v237 = vmul.f32 0.5, %v236
    %v238 = vsub.f32 1.5, %v237
    %v239 = vmul.f32 %v234, %v238
    %vm240 = vweird.f32 %v228
    %vm241 = vweird.f32 %v234
    %vm242 = vmor %vm240, %vm241
    %v243 = vsel %vm242, %v234, %v239
    %v244 = vrsqrt.pop %v229
    %v245 = vmul.f32 %v244, %v229
    %v246 = vmul.f32 %v245, %v244
    %v247 = vmul.f32 0.5, %v246
    %v248 = vsub.f32 1.5, %v247
    %v249 = vmul.f32 %v244, %v248
    %vm250 = vweird.f32 %v229
    %vm251 = vweird.f32 %v244
    %vm252 = vmor %vm250, %vm251
    %v253 = vsel %vm252, %v244, %v249
    %v254 = vrsqrt.pop %v230
    %v255 = vmul.f32 %v254, %v230
    %v256 = vmul.f32 %v255, %v254
    %v257 = vmul.f32 0.5, %v256
    %v258 = vsub.f32 1.5, %v257
    %v259 = vmul.f32 %v254, %v258
    %vm260 = vweird.f32 %v230
    %vm261 = vweird.f32 %v254
    %vm262 = vmor %vm260, %vm261
    %v263 = vsel %vm262, %v254, %v259
    %v264 = vrsqrt.pop %v231
    %v265 = vmul.f32 %v264, %v231
    %v266 = vmul.f32 %v265, %v264
    %v267 = vmul.f32 0.5, %v266
    %v268 = vsub.f32 1.5, %v267
    %v269 = vmul.f32 %v264, %v268
    %vm270 = vweird.f32 %v231
    %vm271 = vweird.f32 %v264
    %vm272 = vmor %vm270, %vm271
    %v273 = vsel %vm272, %v264, %v269
    %v274 = vrsqrt.pop %v232
    %v275 = vmul.f32 %v274, %v232
    %v276 = vmul.f32 %v275, %v274
    %v277 = vmul.f32 0.5, %v276
    %v278 = vsub.f32 1.5, %v277
    %v279 = vmul.f32 %v274, %v278
    %vm280 = vweird.f32 %v232
    %vm281 = vweird.f32 %v274
    %vm282 = vmor %vm280, %vm281
    %v283 = vsel %vm282, %v274, %v279
    %v284 = vrsqrt.pop %v233
    %v285 = vmul.f32 %v284, %v233
    %v286 = vmul.f32 %v285, %v284
    %v287 = vmul.f32 0.5, %v286
    %v288 = vsub.f32 1.5, %v287
    %v289 = vmul.f32 %v284, %v288
    %vm290 = vweird.f32 %v233
    %vm291 = vweird.f32 %v284
    %vm292 = vmor %vm290, %vm291
    %v293 = vsel %vm292, %v284, %v289
    %v294 = vmul.f32 %v192, %v243
    %v295 = vmul.f32 %v193, %v253
    %v296 = vmul.f32 %v194, %v263
    %v297 = vmul.f32 %v195, %v273
    %v298 = vmul.f32 %v196, %v283
    %v299 = vmul.f32 %v197, %v293
    %v301 = vperm.slane %v158, 0
    %v303 = vmul.f32 %v294, %v301
    %v304 = vmul.f32 %v295, %v301
    %v305 = vmul.f32 %v296, %v301
    %v306 = vmul.f32 %v297, %v301
    %v307 = vmul.f32 %v298, %v301
    %v308 = vmul.f32 %v299, %v301
    %v310 = vperm.slane %v159, 0
    %v312 = vadd.f32 %v303, %v310
    %v313 = vadd.f32 %v304, %v310
    %v314 = vadd.f32 %v305, %v310
    %v315 = vadd.f32 %v306, %v310
    %v316 = vadd.f32 %v307, %v310
    %v317 = vadd.f32 %v308, %v310
    %v318 = vld [vmem:[%s6] sm:$0xf]
    %v319 = vld [vmem:[%s6 + $0x4] sm:$0xf]
    %v320 = vld [vmem:[%s6 + $0x8] sm:$0xf]
    %v321 = vld [vmem:[%s6 + $0xc] sm:$0xf]
    %v322 = vpack.c.bf16 %v313, %v312
    %v323 = vpack.c.bf16 %v315, %v314
    %v324 = vpack.c.bf16 %v317, %v316
    %v325 = vld [vmem:[%s7] sm:$0x1]
    %v327 = vperm.slane %v325, 0
    %v333 = vunpack.c.l.b16 %v318
    %v334 = vunpack.c.l.b16 %v319
    %v335 = vunpack.c.l.b16 %v320
    %v336 = vunpack.c.l.b16 %v321
    %v337 = vpack.c.b16 %v334, %v333
    %v338 = vpack.c.b16 %v336, %v335
    %v342 = vsel %vm160, %v322, 0
    %v345 = vsel %vm160, %v323, 0
    %v348 = vsel %vm160, %v324, 0
    %350 = vmatpush.bf16.msra.mxu0 0
    %351 = vmatpush.bf16.msra.mxu0 0
    %352 = vmatpush.bf16.msra.mxu0 0
    %353 = vmatpush.bf16.msra.mxu0 0
    %354 = vmatpush.bf16.msra.mxu0 0
    %355 = vmatpush.bf16.msra.mxu0 0
    %356 = vmatpush.bf16.msra.mxu0 %v338
    %357 = vmatpush.bf16.msra.mxu0 %v337
    %358 = vmatmul.bf16.gmra.mxu0 %v342
    %v359 = vpop.f32.mrf.mxu0
    %v360 = vadd.f32 %v327, %v359
    %v361 = vpop.f32.mrf.mxu0
    %v362 = vadd.f32 %v327, %v361
    %363 = vmatmul.bf16.gmra.mxu0 %v345
    %v364 = vpop.f32.mrf.mxu0
    %v365 = vadd.f32 %v327, %v364
    %v366 = vpop.f32.mrf.mxu0
    %v367 = vadd.f32 %v327, %v366
    %368 = vmatmul.bf16.gmra.mxu0 %v348
    %v369 = vpop.f32.mrf.mxu0
    %v370 = vadd.f32 %v327, %v369
    %v371 = vpop.f32.mrf.mxu0
    %v372 = vadd.f32 %v327, %v371
    %373 = vdwg.mxu0
    %v374 = vld [vmem:[%s9] sm:$0x1]
    %v376 = vperm.slane %v374, 0
    %v378 = vld [vmem:[%s8] sm:$0xf]
    %v379 = vld [vmem:[%s8 + $0x4] sm:$0xf]
    %v380 = vld [vmem:[%s8 + $0x8] sm:$0xf]
    %v381 = vld [vmem:[%s8 + $0xc] sm:$0xf]
    %v382 = vpack.c.bf16 %v362, %v360
    %v383 = vpack.c.bf16 %v367, %v365
    %v384 = vpack.c.bf16 %v372, %v370
    %388 = vrot.lane.b32.xlu0 %v382, 96
    %v389 = vpop.permute.xlu0 %388
    %390 = vrot.lane.b32.xlu0 %v383, 96
    %v391 = vpop.permute.xlu0 %390
    %392 = vrot.lane.b32.xlu0 %v384, 96
    %v393 = vpop.permute.xlu0 %392
    %vm394 = vcmask 64512
    %v396 = vsel %vm394, %v382, 0
    %v399 = vsel %vm394, %v383, 0
    %v402 = vsel %vm394, %v384, 0
    %v405 = vsel %vm394, %v389, 0
    %v408 = vsel %vm394, %v391, 0
    %v411 = vsel %vm394, %v393, 0
    %413 = vmatpush.bf16.xpose.msra.mxu0 0
    %414 = vmatpush.bf16.xpose.msra.mxu0 0
    %415 = vmatpush.bf16.xpose.msra.mxu0 0
    %416 = vmatpush.bf16.xpose.msra.mxu0 0
    %417 = vmatpush.bf16.xpose.msra.mxu0 0
    %418 = vmatpush.bf16.xpose.msra.mxu0 %v411
    %419 = vmatpush.bf16.xpose.msra.mxu0 %v408
    %420 = vmatpush.bf16.xpose.msra.mxu0 %v405
    %421 = vmatmul.bf16.gmra.mxu0 %v396
    %v422 = vpop.f32.mrf.mxu0
    %v423 = vadd.f32 %v152, %v422
    %v424 = vpop.f32.mrf.mxu0
    %v425 = vadd.f32 %v153, %v424
    %426 = vmatmul.bf16.gmra.mxu0 %v399
    %v427 = vpop.f32.mrf.mxu0
    %v428 = vadd.f32 %v154, %v427
    %v429 = vpop.f32.mrf.mxu0
    %v430 = vadd.f32 %v155, %v429
    %431 = vmatmul.bf16.gmra.mxu0 %v402
    %v432 = vpop.f32.mrf.mxu0
    %v433 = vadd.f32 %v156, %v432
    %v434 = vpop.f32.mrf.mxu0
    %v435 = vadd.f32 %v157, %v434
    %436 = vdwg.mxu0
    %v437 = vsel %vm118, %v423, -inf
    %438 = vmax.xlane.f32.xlu0 %v437
    %v439 = vpop.xlane.xlu0 %438
    %v440 = vsel %vm118, %v425, -inf
    %441 = vmax.xlane.f32.xlu0 %v440
    %v442 = vpop.xlane.xlu0 %441
    %v443 = vsel %vm118, %v428, -inf
    %444 = vmax.xlane.f32.xlu0 %v443
    %v445 = vpop.xlane.xlu0 %444
    %v446 = vsel %vm118, %v430, -inf
    %447 = vmax.xlane.f32.xlu0 %v446
    %v448 = vpop.xlane.xlu0 %447
    %v449 = vsel %vm118, %v433, -inf
    %450 = vmax.xlane.f32.xlu0 %v449
    %v451 = vpop.xlane.xlu0 %450
    %v452 = vsel %vm118, %v435, -inf
    %453 = vmax.xlane.f32.xlu0 %v452
    %v454 = vpop.xlane.xlu0 %453
    %v455 = vsub.f32 %v423, %v439
    %v456 = vsub.f32 %v425, %v442
    %v457 = vsub.f32 %v428, %v445
    %v458 = vsub.f32 %v430, %v448
    %v459 = vsub.f32 %v433, %v451
    %v460 = vsub.f32 %v435, %v454
    %v461 = vmul.f32 %v455, 1.442695
    %v462 = vpow.pop %v461
    %v463 = vmul.f32 %v456, 1.442695
    %v464 = vpow.pop %v463
    %v465 = vmul.f32 %v457, 1.442695
    %v466 = vpow.pop %v465
    %v467 = vmul.f32 %v458, 1.442695
    %v468 = vpow.pop %v467
    %v469 = vmul.f32 %v459, 1.442695
    %v470 = vpow.pop %v469
    %v471 = vmul.f32 %v460, 1.442695
    %v472 = vpow.pop %v471
    %v473 = vsel %vm118, %v462, 0.0
    %474 = vadd.xlane.f32.xlu0 %v473
    %v475 = vpop.xlane.xlu0 %474
    %v476 = vsel %vm118, %v464, 0.0
    %477 = vadd.xlane.f32.xlu0 %v476
    %v478 = vpop.xlane.xlu0 %477
    %v479 = vsel %vm118, %v466, 0.0
    %480 = vadd.xlane.f32.xlu0 %v479
    %v481 = vpop.xlane.xlu0 %480
    %v482 = vsel %vm118, %v468, 0.0
    %483 = vadd.xlane.f32.xlu0 %v482
    %v484 = vpop.xlane.xlu0 %483
    %v485 = vsel %vm118, %v470, 0.0
    %486 = vadd.xlane.f32.xlu0 %v485
    %v487 = vpop.xlane.xlu0 %486
    %v488 = vsel %vm118, %v472, 0.0
    %489 = vadd.xlane.f32.xlu0 %v488
    %v490 = vpop.xlane.xlu0 %489
    %v491 = vrcp.pop %v475
    %v492 = vrcp.pop %v478
    %v493 = vrcp.pop %v481
    %v494 = vrcp.pop %v484
    %v495 = vrcp.pop %v487
    %v496 = vrcp.pop %v490
    %v497 = vmul.f32 %v462, %v491
    %v498 = vmul.f32 %v464, %v492
    %v499 = vmul.f32 %v466, %v493
    %v500 = vmul.f32 %v468, %v494
    %v501 = vmul.f32 %v470, %v495
    %v502 = vmul.f32 %v472, %v496
    %v503 = vpack.c.bf16 %v498, %v497
    %v504 = vpack.c.bf16 %v500, %v499
    %v505 = vpack.c.bf16 %v502, %v501
    %506 = vrot.lane.b32.xlu0 %v382, 64
    %v507 = vpop.permute.xlu0 %506
    %508 = vrot.lane.b32.xlu0 %v383, 64
    %v509 = vpop.permute.xlu0 %508
    %510 = vrot.lane.b32.xlu0 %v384, 64
    %v511 = vpop.permute.xlu0 %510
    %v516 = vsel %vm118, %v503, 0
    %v519 = vsel %vm118, %v504, 0
    %v522 = vsel %vm118, %v505, 0
    %524 = vmatpush.bf16.msra.mxu0 0
    %525 = vmatpush.bf16.msra.mxu0 0
    %526 = vmatpush.bf16.msra.mxu0 0
    %527 = vmatpush.bf16.msra.mxu0 0
    %528 = vmatpush.bf16.msra.mxu0 0
    %529 = vmatpush.bf16.msra.mxu0 %v511
    %530 = vmatpush.bf16.msra.mxu0 %v509
    %531 = vmatpush.bf16.msra.mxu0 %v507
    %532 = vmatmul.bf16.gmra.mxu0 %v516
    %v533 = vpop.f32.mrf.mxu0
    %v534 = vadd.f32 0.0, %v533
    %v535 = vpop.f32.mrf.mxu0
    %v536 = vadd.f32 0.0, %v535
    %537 = vmatmul.bf16.gmra.mxu0 %v519
    %v538 = vpop.f32.mrf.mxu0
    %v539 = vadd.f32 0.0, %v538
    %v540 = vpop.f32.mrf.mxu0
    %v541 = vadd.f32 0.0, %v540
    %542 = vmatmul.bf16.gmra.mxu0 %v522
    %v543 = vpop.f32.mrf.mxu0
    %v544 = vadd.f32 0.0, %v543
    %v545 = vpop.f32.mrf.mxu0
    %v546 = vadd.f32 0.0, %v545
    %547 = vdwg.mxu0
    %v548 = vpack.c.bf16 %v536, %v534
    %v549 = vpack.c.bf16 %v541, %v539
    %v550 = vpack.c.bf16 %v546, %v544
    %v552 = vsel %vm394, %v548, 0
    %v555 = vsel %vm394, %v549, 0
    %v558 = vsel %vm394, %v550, 0
    %vm560 = vcmask 1043456
    %v562 = vsel %vm560, %v378, 0
    %564 = vmatpush.bf16.msra.mxu0 0
    %565 = vmatpush.bf16.msra.mxu0 0
    %566 = vmatpush.bf16.msra.mxu0 0
    %567 = vmatpush.bf16.msra.mxu0 0
    %568 = vmatpush.bf16.msra.mxu0 0
    %569 = vmatpush.bf16.msra.mxu0 0
    %570 = vmatpush.bf16.msra.mxu0 0
    %571 = vmatpush.bf16.msra.mxu0 %v562
    %572 = vmatmul.bf16.gmra.mxu0 %v552
    %v573 = vpop.f32.mrf.mxu0
    %v574 = vadd.f32 0.0, %v573
    %v575 = vpop.f32.mrf.mxu0
    %v576 = vadd.f32 0.0, %v575
    %577 = vmatmul.bf16.gmra.mxu0 %v555
    %v578 = vpop.f32.mrf.mxu0
    %v579 = vadd.f32 0.0, %v578
    %v580 = vpop.f32.mrf.mxu0
    %v581 = vadd.f32 0.0, %v580
    %582 = vmatmul.bf16.gmra.mxu0 %v558
    %v583 = vpop.f32.mrf.mxu0
    %v584 = vadd.f32 0.0, %v583
    %v585 = vpop.f32.mrf.mxu0
    %v586 = vadd.f32 0.0, %v585
    %587 = vdwg.mxu0
    %v588 = vadd.f32 %v376, %v574
    %v589 = vadd.f32 %v376, %v576
    %v590 = vadd.f32 %v376, %v579
    %v591 = vadd.f32 %v376, %v581
    %v592 = vadd.f32 %v376, %v584
    %v593 = vadd.f32 %v376, %v586
    %594 = vrot.lane.b32.xlu0 %v382, 120
    %v595 = vpop.permute.xlu0 %594
    %596 = vrot.lane.b32.xlu0 %v383, 120
    %v597 = vpop.permute.xlu0 %596
    %598 = vrot.lane.b32.xlu0 %v384, 120
    %v599 = vpop.permute.xlu0 %598
    %600 = vrot.lane.b32.xlu0 %v382, 88
    %v601 = vpop.permute.xlu0 %600
    %602 = vrot.lane.b32.xlu0 %v383, 88
    %v603 = vpop.permute.xlu0 %602
    %604 = vrot.lane.b32.xlu0 %v384, 88
    %v605 = vpop.permute.xlu0 %604
    %v607 = vsel %vm394, %v595, 0
    %v610 = vsel %vm394, %v597, 0
    %v613 = vsel %vm394, %v599, 0
    %v616 = vsel %vm394, %v601, 0
    %v619 = vsel %vm394, %v603, 0
    %v622 = vsel %vm394, %v605, 0
    %624 = vmatpush.bf16.xpose.msra.mxu0 0
    %625 = vmatpush.bf16.xpose.msra.mxu0 0
    %626 = vmatpush.bf16.xpose.msra.mxu0 0
    %627 = vmatpush.bf16.xpose.msra.mxu0 0
    %628 = vmatpush.bf16.xpose.msra.mxu0 0
    %629 = vmatpush.bf16.xpose.msra.mxu0 %v622
    %630 = vmatpush.bf16.xpose.msra.mxu0 %v619
    %631 = vmatpush.bf16.xpose.msra.mxu0 %v616
    %632 = vmatmul.bf16.gmra.mxu0 %v607
    %v633 = vpop.f32.mrf.mxu0
    %v634 = vadd.f32 %v152, %v633
    %v635 = vpop.f32.mrf.mxu0
    %v636 = vadd.f32 %v153, %v635
    %637 = vmatmul.bf16.gmra.mxu0 %v610
    %v638 = vpop.f32.mrf.mxu0
    %v639 = vadd.f32 %v154, %v638
    %v640 = vpop.f32.mrf.mxu0
    %v641 = vadd.f32 %v155, %v640
    %642 = vmatmul.bf16.gmra.mxu0 %v613
    %v643 = vpop.f32.mrf.mxu0
    %v644 = vadd.f32 %v156, %v643
    %v645 = vpop.f32.mrf.mxu0
    %v646 = vadd.f32 %v157, %v645
    %647 = vdwg.mxu0
    %v648 = vsel %vm118, %v634, -inf
    %649 = vmax.xlane.f32.xlu0 %v648
    %v650 = vpop.xlane.xlu0 %649
    %v651 = vsel %vm118, %v636, -inf
    %652 = vmax.xlane.f32.xlu0 %v651
    %v653 = vpop.xlane.xlu0 %652
    %v654 = vsel %vm118, %v639, -inf
    %655 = vmax.xlane.f32.xlu0 %v654
    %v656 = vpop.xlane.xlu0 %655
    %v657 = vsel %vm118, %v641, -inf
    %658 = vmax.xlane.f32.xlu0 %v657
    %v659 = vpop.xlane.xlu0 %658
    %v660 = vsel %vm118, %v644, -inf
    %661 = vmax.xlane.f32.xlu0 %v660
    %v662 = vpop.xlane.xlu0 %661
    %v663 = vsel %vm118, %v646, -inf
    %664 = vmax.xlane.f32.xlu0 %v663
    %v665 = vpop.xlane.xlu0 %664
    %v666 = vsub.f32 %v634, %v650
    %v667 = vsub.f32 %v636, %v653
    %v668 = vsub.f32 %v639, %v656
    %v669 = vsub.f32 %v641, %v659
    %v670 = vsub.f32 %v644, %v662
    %v671 = vsub.f32 %v646, %v665
    %v672 = vmul.f32 %v666, 1.442695
    %v673 = vpow.pop %v672
    %v674 = vmul.f32 %v667, 1.442695
    %v675 = vpow.pop %v674
    %v676 = vmul.f32 %v668, 1.442695
    %v677 = vpow.pop %v676
    %v678 = vmul.f32 %v669, 1.442695
    %v679 = vpow.pop %v678
    %v680 = vmul.f32 %v670, 1.442695
    %v681 = vpow.pop %v680
    %v682 = vmul.f32 %v671, 1.442695
    %v683 = vpow.pop %v682
    %v684 = vsel %vm118, %v673, 0.0
    %685 = vadd.xlane.f32.xlu0 %v684
    %v686 = vpop.xlane.xlu0 %685
    %v687 = vsel %vm118, %v675, 0.0
    %688 = vadd.xlane.f32.xlu0 %v687
    %v689 = vpop.xlane.xlu0 %688
    %v690 = vsel %vm118, %v677, 0.0
    %691 = vadd.xlane.f32.xlu0 %v690
    %v692 = vpop.xlane.xlu0 %691
    %v693 = vsel %vm118, %v679, 0.0
    %694 = vadd.xlane.f32.xlu0 %v693
    %v695 = vpop.xlane.xlu0 %694
    %v696 = vsel %vm118, %v681, 0.0
    %697 = vadd.xlane.f32.xlu0 %v696
    %v698 = vpop.xlane.xlu0 %697
    %v699 = vsel %vm118, %v683, 0.0
    %700 = vadd.xlane.f32.xlu0 %v699
    %v701 = vpop.xlane.xlu0 %700
    %v702 = vrcp.pop %v686
    %v703 = vrcp.pop %v689
    %v704 = vrcp.pop %v692
    %v705 = vrcp.pop %v695
    %v706 = vrcp.pop %v698
    %v707 = vrcp.pop %v701
    %v708 = vmul.f32 %v673, %v702
    %v709 = vmul.f32 %v675, %v703
    %v710 = vmul.f32 %v677, %v704
    %v711 = vmul.f32 %v679, %v705
    %v712 = vmul.f32 %v681, %v706
    %v713 = vmul.f32 %v683, %v707
    %v714 = vpack.c.bf16 %v709, %v708
    %v715 = vpack.c.bf16 %v711, %v710
    %v716 = vpack.c.bf16 %v713, %v712
    %717 = vrot.lane.b32.xlu0 %v382, 56
    %v718 = vpop.permute.xlu0 %717
    %719 = vrot.lane.b32.xlu0 %v383, 56
    %v720 = vpop.permute.xlu0 %719
    %721 = vrot.lane.b32.xlu0 %v384, 56
    %v722 = vpop.permute.xlu0 %721
    %v727 = vsel %vm118, %v714, 0
    %v730 = vsel %vm118, %v715, 0
    %v733 = vsel %vm118, %v716, 0
    %735 = vmatpush.bf16.msra.mxu0 0
    %736 = vmatpush.bf16.msra.mxu0 0
    %737 = vmatpush.bf16.msra.mxu0 0
    %738 = vmatpush.bf16.msra.mxu0 0
    %739 = vmatpush.bf16.msra.mxu0 0
    %740 = vmatpush.bf16.msra.mxu0 %v722
    %741 = vmatpush.bf16.msra.mxu0 %v720
    %742 = vmatpush.bf16.msra.mxu0 %v718
    %743 = vmatmul.bf16.gmra.mxu0 %v727
    %v744 = vpop.f32.mrf.mxu0
    %v745 = vadd.f32 0.0, %v744
    %v746 = vpop.f32.mrf.mxu0
    %v747 = vadd.f32 0.0, %v746
    %748 = vmatmul.bf16.gmra.mxu0 %v730
    %v749 = vpop.f32.mrf.mxu0
    %v750 = vadd.f32 0.0, %v749
    %v751 = vpop.f32.mrf.mxu0
    %v752 = vadd.f32 0.0, %v751
    %753 = vmatmul.bf16.gmra.mxu0 %v733
    %v754 = vpop.f32.mrf.mxu0
    %v755 = vadd.f32 0.0, %v754
    %v756 = vpop.f32.mrf.mxu0
    %v757 = vadd.f32 0.0, %v756
    %758 = vdwg.mxu0
    %v759 = vpack.c.bf16 %v747, %v745
    %v760 = vpack.c.bf16 %v752, %v750
    %v761 = vpack.c.bf16 %v757, %v755
    %v763 = vsel %vm394, %v759, 0
    %v766 = vsel %vm394, %v760, 0
    %v769 = vsel %vm394, %v761, 0
    %v772 = vsel %vm560, %v379, 0
    %774 = vmatpush.bf16.msra.mxu0 0
    %775 = vmatpush.bf16.msra.mxu0 0
    %776 = vmatpush.bf16.msra.mxu0 0
    %777 = vmatpush.bf16.msra.mxu0 0
    %778 = vmatpush.bf16.msra.mxu0 0
    %779 = vmatpush.bf16.msra.mxu0 0
    %780 = vmatpush.bf16.msra.mxu0 0
    %781 = vmatpush.bf16.msra.mxu0 %v772
    %782 = vmatmul.bf16.gmra.mxu0 %v763
    %v783 = vpop.f32.mrf.mxu0
    %v784 = vadd.f32 0.0, %v783
    %v785 = vpop.f32.mrf.mxu0
    %v786 = vadd.f32 0.0, %v785
    %787 = vmatmul.bf16.gmra.mxu0 %v766
    %v788 = vpop.f32.mrf.mxu0
    %v789 = vadd.f32 0.0, %v788
    %v790 = vpop.f32.mrf.mxu0
    %v791 = vadd.f32 0.0, %v790
    %792 = vmatmul.bf16.gmra.mxu0 %v769
    %v793 = vpop.f32.mrf.mxu0
    %v794 = vadd.f32 0.0, %v793
    %v795 = vpop.f32.mrf.mxu0
    %v796 = vadd.f32 0.0, %v795
    %797 = vdwg.mxu0
    %v798 = vadd.f32 %v588, %v784
    %v799 = vadd.f32 %v589, %v786
    %v800 = vadd.f32 %v590, %v789
    %v801 = vadd.f32 %v591, %v791
    %v802 = vadd.f32 %v592, %v794
    %v803 = vadd.f32 %v593, %v796
    %804 = vrot.lane.b32.xlu0 %v382, 112
    %v805 = vpop.permute.xlu0 %804
    %806 = vrot.lane.b32.xlu0 %v383, 112
    %v807 = vpop.permute.xlu0 %806
    %808 = vrot.lane.b32.xlu0 %v384, 112
    %v809 = vpop.permute.xlu0 %808
    %810 = vrot.lane.b32.xlu0 %v382, 80
    %v811 = vpop.permute.xlu0 %810
    %812 = vrot.lane.b32.xlu0 %v383, 80
    %v813 = vpop.permute.xlu0 %812
    %814 = vrot.lane.b32.xlu0 %v384, 80
    %v815 = vpop.permute.xlu0 %814
    %v817 = vsel %vm394, %v805, 0
    %v820 = vsel %vm394, %v807, 0
    %v823 = vsel %vm394, %v809, 0
    %v826 = vsel %vm394, %v811, 0
    %v829 = vsel %vm394, %v813, 0
    %v832 = vsel %vm394, %v815, 0
    %834 = vmatpush.bf16.xpose.msra.mxu0 0
    %835 = vmatpush.bf16.xpose.msra.mxu0 0
    %836 = vmatpush.bf16.xpose.msra.mxu0 0
    %837 = vmatpush.bf16.xpose.msra.mxu0 0
    %838 = vmatpush.bf16.xpose.msra.mxu0 0
    %839 = vmatpush.bf16.xpose.msra.mxu0 %v832
    %840 = vmatpush.bf16.xpose.msra.mxu0 %v829
    %841 = vmatpush.bf16.xpose.msra.mxu0 %v826
    %842 = vmatmul.bf16.gmra.mxu0 %v817
    %v843 = vpop.f32.mrf.mxu0
    %v844 = vadd.f32 %v152, %v843
    %v845 = vpop.f32.mrf.mxu0
    %v846 = vadd.f32 %v153, %v845
    %847 = vmatmul.bf16.gmra.mxu0 %v820
    %v848 = vpop.f32.mrf.mxu0
    %v849 = vadd.f32 %v154, %v848
    %v850 = vpop.f32.mrf.mxu0
    %v851 = vadd.f32 %v155, %v850
    %852 = vmatmul.bf16.gmra.mxu0 %v823
    %v853 = vpop.f32.mrf.mxu0
    %v854 = vadd.f32 %v156, %v853
    %v855 = vpop.f32.mrf.mxu0
    %v856 = vadd.f32 %v157, %v855
    %857 = vdwg.mxu0
    %v858 = vsel %vm118, %v844, -inf
    %859 = vmax.xlane.f32.xlu0 %v858
    %v860 = vpop.xlane.xlu0 %859
    %v861 = vsel %vm118, %v846, -inf
    %862 = vmax.xlane.f32.xlu0 %v861
    %v863 = vpop.xlane.xlu0 %862
    %v864 = vsel %vm118, %v849, -inf
    %865 = vmax.xlane.f32.xlu0 %v864
    %v866 = vpop.xlane.xlu0 %865
    %v867 = vsel %vm118, %v851, -inf
    %868 = vmax.xlane.f32.xlu0 %v867
    %v869 = vpop.xlane.xlu0 %868
    %v870 = vsel %vm118, %v854, -inf
    %871 = vmax.xlane.f32.xlu0 %v870
    %v872 = vpop.xlane.xlu0 %871
    %v873 = vsel %vm118, %v856, -inf
    %874 = vmax.xlane.f32.xlu0 %v873
    %v875 = vpop.xlane.xlu0 %874
    %v876 = vsub.f32 %v844, %v860
    %v877 = vsub.f32 %v846, %v863
    %v878 = vsub.f32 %v849, %v866
    %v879 = vsub.f32 %v851, %v869
    %v880 = vsub.f32 %v854, %v872
    %v881 = vsub.f32 %v856, %v875
    %v882 = vmul.f32 %v876, 1.442695
    %v883 = vpow.pop %v882
    %v884 = vmul.f32 %v877, 1.442695
    %v885 = vpow.pop %v884
    %v886 = vmul.f32 %v878, 1.442695
    %v887 = vpow.pop %v886
    %v888 = vmul.f32 %v879, 1.442695
    %v889 = vpow.pop %v888
    %v890 = vmul.f32 %v880, 1.442695
    %v891 = vpow.pop %v890
    %v892 = vmul.f32 %v881, 1.442695
    %v893 = vpow.pop %v892
    %v894 = vsel %vm118, %v883, 0.0
    %895 = vadd.xlane.f32.xlu0 %v894
    %v896 = vpop.xlane.xlu0 %895
    %v897 = vsel %vm118, %v885, 0.0
    %898 = vadd.xlane.f32.xlu0 %v897
    %v899 = vpop.xlane.xlu0 %898
    %v900 = vsel %vm118, %v887, 0.0
    %901 = vadd.xlane.f32.xlu0 %v900
    %v902 = vpop.xlane.xlu0 %901
    %v903 = vsel %vm118, %v889, 0.0
    %904 = vadd.xlane.f32.xlu0 %v903
    %v905 = vpop.xlane.xlu0 %904
    %v906 = vsel %vm118, %v891, 0.0
    %907 = vadd.xlane.f32.xlu0 %v906
    %v908 = vpop.xlane.xlu0 %907
    %v909 = vsel %vm118, %v893, 0.0
    %910 = vadd.xlane.f32.xlu0 %v909
    %v911 = vpop.xlane.xlu0 %910
    %v912 = vrcp.pop %v896
    %v913 = vrcp.pop %v899
    %v914 = vrcp.pop %v902
    %v915 = vrcp.pop %v905
    %v916 = vrcp.pop %v908
    %v917 = vrcp.pop %v911
    %v918 = vmul.f32 %v883, %v912
    %v919 = vmul.f32 %v885, %v913
    %v920 = vmul.f32 %v887, %v914
    %v921 = vmul.f32 %v889, %v915
    %v922 = vmul.f32 %v891, %v916
    %v923 = vmul.f32 %v893, %v917
    %v924 = vpack.c.bf16 %v919, %v918
    %v925 = vpack.c.bf16 %v921, %v920
    %v926 = vpack.c.bf16 %v923, %v922
    %927 = vrot.lane.b32.xlu0 %v382, 48
    %v928 = vpop.permute.xlu0 %927
    %929 = vrot.lane.b32.xlu0 %v383, 48
    %v930 = vpop.permute.xlu0 %929
    %931 = vrot.lane.b32.xlu0 %v384, 48
    %v932 = vpop.permute.xlu0 %931
    %v937 = vsel %vm118, %v924, 0
    %v940 = vsel %vm118, %v925, 0
    %v943 = vsel %vm118, %v926, 0
    %945 = vmatpush.bf16.msra.mxu0 0
    %946 = vmatpush.bf16.msra.mxu0 0
    %947 = vmatpush.bf16.msra.mxu0 0
    %948 = vmatpush.bf16.msra.mxu0 0
    %949 = vmatpush.bf16.msra.mxu0 0
    %950 = vmatpush.bf16.msra.mxu0 %v932
    %951 = vmatpush.bf16.msra.mxu0 %v930
    %952 = vmatpush.bf16.msra.mxu0 %v928
    %953 = vmatmul.bf16.gmra.mxu0 %v937
    %v954 = vpop.f32.mrf.mxu0
    %v955 = vadd.f32 0.0, %v954
    %v956 = vpop.f32.mrf.mxu0
    %v957 = vadd.f32 0.0, %v956
    %958 = vmatmul.bf16.gmra.mxu0 %v940
    %v959 = vpop.f32.mrf.mxu0
    %v960 = vadd.f32 0.0, %v959
    %v961 = vpop.f32.mrf.mxu0
    %v962 = vadd.f32 0.0, %v961
    %963 = vmatmul.bf16.gmra.mxu0 %v943
    %v964 = vpop.f32.mrf.mxu0
    %v965 = vadd.f32 0.0, %v964
    %v966 = vpop.f32.mrf.mxu0
    %v967 = vadd.f32 0.0, %v966
    %968 = vdwg.mxu0
    %v969 = vpack.c.bf16 %v957, %v955
    %v970 = vpack.c.bf16 %v962, %v960
    %v971 = vpack.c.bf16 %v967, %v965
    %v973 = vsel %vm394, %v969, 0
    %v976 = vsel %vm394, %v970, 0
    %v979 = vsel %vm394, %v971, 0
    %v982 = vsel %vm560, %v380, 0
    %984 = vmatpush.bf16.msra.mxu0 0
    %985 = vmatpush.bf16.msra.mxu0 0
    %986 = vmatpush.bf16.msra.mxu0 0
    %987 = vmatpush.bf16.msra.mxu0 0
    %988 = vmatpush.bf16.msra.mxu0 0
    %989 = vmatpush.bf16.msra.mxu0 0
    %990 = vmatpush.bf16.msra.mxu0 0
    %991 = vmatpush.bf16.msra.mxu0 %v982
    %992 = vmatmul.bf16.gmra.mxu0 %v973
    %v993 = vpop.f32.mrf.mxu0
    %v994 = vadd.f32 0.0, %v993
    %v995 = vpop.f32.mrf.mxu0
    %v996 = vadd.f32 0.0, %v995
    %997 = vmatmul.bf16.gmra.mxu0 %v976
    %v998 = vpop.f32.mrf.mxu0
    %v999 = vadd.f32 0.0, %v998
    %v1000 = vpop.f32.mrf.mxu0
    %v1001 = vadd.f32 0.0, %v1000
    %1002 = vmatmul.bf16.gmra.mxu0 %v979
    %v1003 = vpop.f32.mrf.mxu0
    %v1004 = vadd.f32 0.0, %v1003
    %v1005 = vpop.f32.mrf.mxu0
    %v1006 = vadd.f32 0.0, %v1005
    %1007 = vdwg.mxu0
    %v1008 = vadd.f32 %v798, %v994
    %v1009 = vadd.f32 %v799, %v996
    %v1010 = vadd.f32 %v800, %v999
    %v1011 = vadd.f32 %v801, %v1001
    %v1012 = vadd.f32 %v802, %v1004
    %v1013 = vadd.f32 %v803, %v1006
    %1014 = vrot.lane.b32.xlu0 %v382, 104
    %v1015 = vpop.permute.xlu0 %1014
    %1016 = vrot.lane.b32.xlu0 %v383, 104
    %v1017 = vpop.permute.xlu0 %1016
    %1018 = vrot.lane.b32.xlu0 %v384, 104
    %v1019 = vpop.permute.xlu0 %1018
    %1020 = vrot.lane.b32.xlu0 %v382, 72
    %v1021 = vpop.permute.xlu0 %1020
    %1022 = vrot.lane.b32.xlu0 %v383, 72
    %v1023 = vpop.permute.xlu0 %1022
    %1024 = vrot.lane.b32.xlu0 %v384, 72
    %v1025 = vpop.permute.xlu0 %1024
    %v1027 = vsel %vm394, %v1015, 0
    %v1030 = vsel %vm394, %v1017, 0
    %v1033 = vsel %vm394, %v1019, 0
    %v1036 = vsel %vm394, %v1021, 0
    %v1039 = vsel %vm394, %v1023, 0
    %v1042 = vsel %vm394, %v1025, 0
    %1044 = vmatpush.bf16.xpose.msra.mxu0 0
    %1045 = vmatpush.bf16.xpose.msra.mxu0 0
    %1046 = vmatpush.bf16.xpose.msra.mxu0 0
    %1047 = vmatpush.bf16.xpose.msra.mxu0 0
    %1048 = vmatpush.bf16.xpose.msra.mxu0 0
    %1049 = vmatpush.bf16.xpose.msra.mxu0 %v1042
    %1050 = vmatpush.bf16.xpose.msra.mxu0 %v1039
    %1051 = vmatpush.bf16.xpose.msra.mxu0 %v1036
    %1052 = vmatmul.bf16.gmra.mxu0 %v1027
    %v1053 = vpop.f32.mrf.mxu0
    %v1054 = vadd.f32 %v152, %v1053
    %v1055 = vpop.f32.mrf.mxu0
    %v1056 = vadd.f32 %v153, %v1055
    %1057 = vmatmul.bf16.gmra.mxu0 %v1030
    %v1058 = vpop.f32.mrf.mxu0
    %v1059 = vadd.f32 %v154, %v1058
    %v1060 = vpop.f32.mrf.mxu0
    %v1061 = vadd.f32 %v155, %v1060
    %1062 = vmatmul.bf16.gmra.mxu0 %v1033
    %v1063 = vpop.f32.mrf.mxu0
    %v1064 = vadd.f32 %v156, %v1063
    %v1065 = vpop.f32.mrf.mxu0
    %v1066 = vadd.f32 %v157, %v1065
    %1067 = vdwg.mxu0
    %v1068 = vsel %vm118, %v1054, -inf
    %1069 = vmax.xlane.f32.xlu0 %v1068
    %v1070 = vpop.xlane.xlu0 %1069
    %v1071 = vsel %vm118, %v1056, -inf
    %1072 = vmax.xlane.f32.xlu0 %v1071
    %v1073 = vpop.xlane.xlu0 %1072
    %v1074 = vsel %vm118, %v1059, -inf
    %1075 = vmax.xlane.f32.xlu0 %v1074
    %v1076 = vpop.xlane.xlu0 %1075
    %v1077 = vsel %vm118, %v1061, -inf
    %1078 = vmax.xlane.f32.xlu0 %v1077
    %v1079 = vpop.xlane.xlu0 %1078
    %v1080 = vsel %vm118, %v1064, -inf
    %1081 = vmax.xlane.f32.xlu0 %v1080
    %v1082 = vpop.xlane.xlu0 %1081
    %v1083 = vsel %vm118, %v1066, -inf
    %1084 = vmax.xlane.f32.xlu0 %v1083
    %v1085 = vpop.xlane.xlu0 %1084
    %v1086 = vsub.f32 %v1054, %v1070
    %v1087 = vsub.f32 %v1056, %v1073
    %v1088 = vsub.f32 %v1059, %v1076
    %v1089 = vsub.f32 %v1061, %v1079
    %v1090 = vsub.f32 %v1064, %v1082
    %v1091 = vsub.f32 %v1066, %v1085
    %v1092 = vmul.f32 %v1086, 1.442695
    %v1093 = vpow.pop %v1092
    %v1094 = vmul.f32 %v1087, 1.442695
    %v1095 = vpow.pop %v1094
    %v1096 = vmul.f32 %v1088, 1.442695
    %v1097 = vpow.pop %v1096
    %v1098 = vmul.f32 %v1089, 1.442695
    %v1099 = vpow.pop %v1098
    %v1100 = vmul.f32 %v1090, 1.442695
    %v1101 = vpow.pop %v1100
    %v1102 = vmul.f32 %v1091, 1.442695
    %v1103 = vpow.pop %v1102
    %v1104 = vsel %vm118, %v1093, 0.0
    %1105 = vadd.xlane.f32.xlu0 %v1104
    %v1106 = vpop.xlane.xlu0 %1105
    %v1107 = vsel %vm118, %v1095, 0.0
    %1108 = vadd.xlane.f32.xlu0 %v1107
    %v1109 = vpop.xlane.xlu0 %1108
    %v1110 = vsel %vm118, %v1097, 0.0
    %1111 = vadd.xlane.f32.xlu0 %v1110
    %v1112 = vpop.xlane.xlu0 %1111
    %v1113 = vsel %vm118, %v1099, 0.0
    %1114 = vadd.xlane.f32.xlu0 %v1113
    %v1115 = vpop.xlane.xlu0 %1114
    %v1116 = vsel %vm118, %v1101, 0.0
    %1117 = vadd.xlane.f32.xlu0 %v1116
    %v1118 = vpop.xlane.xlu0 %1117
    %v1119 = vsel %vm118, %v1103, 0.0
    %1120 = vadd.xlane.f32.xlu0 %v1119
    %v1121 = vpop.xlane.xlu0 %1120
    %v1122 = vrcp.pop %v1106
    %v1123 = vrcp.pop %v1109
    %v1124 = vrcp.pop %v1112
    %v1125 = vrcp.pop %v1115
    %v1126 = vrcp.pop %v1118
    %v1127 = vrcp.pop %v1121
    %v1128 = vmul.f32 %v1093, %v1122
    %v1129 = vmul.f32 %v1095, %v1123
    %v1130 = vmul.f32 %v1097, %v1124
    %v1131 = vmul.f32 %v1099, %v1125
    %v1132 = vmul.f32 %v1101, %v1126
    %v1133 = vmul.f32 %v1103, %v1127
    %v1134 = vpack.c.bf16 %v1129, %v1128
    %v1135 = vpack.c.bf16 %v1131, %v1130
    %v1136 = vpack.c.bf16 %v1133, %v1132
    %1137 = vrot.lane.b32.xlu0 %v382, 40
    %v1138 = vpop.permute.xlu0 %1137
    %1139 = vrot.lane.b32.xlu0 %v383, 40
    %v1140 = vpop.permute.xlu0 %1139
    %1141 = vrot.lane.b32.xlu0 %v384, 40
    %v1142 = vpop.permute.xlu0 %1141
    %v1147 = vsel %vm118, %v1134, 0
    %v1150 = vsel %vm118, %v1135, 0
    %v1153 = vsel %vm118, %v1136, 0
    %1155 = vmatpush.bf16.msra.mxu0 0
    %1156 = vmatpush.bf16.msra.mxu0 0
    %1157 = vmatpush.bf16.msra.mxu0 0
    %1158 = vmatpush.bf16.msra.mxu0 0
    %1159 = vmatpush.bf16.msra.mxu0 0
    %1160 = vmatpush.bf16.msra.mxu0 %v1142
    %1161 = vmatpush.bf16.msra.mxu0 %v1140
    %1162 = vmatpush.bf16.msra.mxu0 %v1138
    %1163 = vmatmul.bf16.gmra.mxu0 %v1147
    %v1164 = vpop.f32.mrf.mxu0
    %v1165 = vadd.f32 0.0, %v1164
    %v1166 = vpop.f32.mrf.mxu0
    %v1167 = vadd.f32 0.0, %v1166
    %1168 = vmatmul.bf16.gmra.mxu0 %v1150
    %v1169 = vpop.f32.mrf.mxu0
    %v1170 = vadd.f32 0.0, %v1169
    %v1171 = vpop.f32.mrf.mxu0
    %v1172 = vadd.f32 0.0, %v1171
    %1173 = vmatmul.bf16.gmra.mxu0 %v1153
    %v1174 = vpop.f32.mrf.mxu0
    %v1175 = vadd.f32 0.0, %v1174
    %v1176 = vpop.f32.mrf.mxu0
    %v1177 = vadd.f32 0.0, %v1176
    %1178 = vdwg.mxu0
    %v1179 = vpack.c.bf16 %v1167, %v1165
    %v1180 = vpack.c.bf16 %v1172, %v1170
    %v1181 = vpack.c.bf16 %v1177, %v1175
    %v1183 = vsel %vm394, %v1179, 0
    %v1186 = vsel %vm394, %v1180, 0
    %v1189 = vsel %vm394, %v1181, 0
    %v1192 = vsel %vm560, %v381, 0
    %1194 = vmatpush.bf16.msra.mxu0 0
    %1195 = vmatpush.bf16.msra.mxu0 0
    %1196 = vmatpush.bf16.msra.mxu0 0
    %1197 = vmatpush.bf16.msra.mxu0 0
    %1198 = vmatpush.bf16.msra.mxu0 0
    %1199 = vmatpush.bf16.msra.mxu0 0
    %1200 = vmatpush.bf16.msra.mxu0 0
    %1201 = vmatpush.bf16.msra.mxu0 %v1192
    %1202 = vmatmul.bf16.gmra.mxu0 %v1183
    %v1203 = vpop.f32.mrf.mxu0
    %v1204 = vadd.f32 0.0, %v1203
    %v1205 = vpop.f32.mrf.mxu0
    %v1206 = vadd.f32 0.0, %v1205
    %1207 = vmatmul.bf16.gmra.mxu0 %v1186
    %v1208 = vpop.f32.mrf.mxu0
    %v1209 = vadd.f32 0.0, %v1208
    %v1210 = vpop.f32.mrf.mxu0
    %v1211 = vadd.f32 0.0, %v1210
    %1212 = vmatmul.bf16.gmra.mxu0 %v1189
    %v1213 = vpop.f32.mrf.mxu0
    %v1214 = vadd.f32 0.0, %v1213
    %v1215 = vpop.f32.mrf.mxu0
    %v1216 = vadd.f32 0.0, %v1215
    %1217 = vdwg.mxu0
    %v1218 = vadd.f32 %v1008, %v1204
    %v1219 = vadd.f32 %v1009, %v1206
    %v1220 = vadd.f32 %v1010, %v1209
    %v1221 = vadd.f32 %v1011, %v1211
    %v1222 = vadd.f32 %v1012, %v1214
    %v1223 = vadd.f32 %v1013, %v1216
    %v1224 = vadd.f32 %v138, %v1218
    %v1225 = vadd.f32 %v140, %v1219
    %v1226 = vadd.f32 %v143, %v1220
    %v1227 = vadd.f32 %v145, %v1221
    %v1228 = vadd.f32 %v148, %v1222
    %v1229 = vadd.f32 %v150, %v1223
    %v1230 = vld [vmem:[%s10] sm:$0x1]
    %v1231 = vld [vmem:[%s11] sm:$0x1]
    %v1232 = vsel %vm160, %v1224, 0.0
    %1233 = vadd.xlane.f32.xlu0 %v1232
    %v1234 = vpop.xlane.xlu0 %1233
    %v1235 = vsel %vm160, %v1225, 0.0
    %1236 = vadd.xlane.f32.xlu0 %v1235
    %v1237 = vpop.xlane.xlu0 %1236
    %v1238 = vsel %vm160, %v1226, 0.0
    %1239 = vadd.xlane.f32.xlu0 %v1238
    %v1240 = vpop.xlane.xlu0 %1239
    %v1241 = vsel %vm160, %v1227, 0.0
    %1242 = vadd.xlane.f32.xlu0 %v1241
    %v1243 = vpop.xlane.xlu0 %1242
    %v1244 = vsel %vm160, %v1228, 0.0
    %1245 = vadd.xlane.f32.xlu0 %v1244
    %v1246 = vpop.xlane.xlu0 %1245
    %v1247 = vsel %vm160, %v1229, 0.0
    %1248 = vadd.xlane.f32.xlu0 %v1247
    %v1249 = vpop.xlane.xlu0 %1248
    %v1250 = vmul.f32 %v1234, %v185
    %v1251 = vmul.f32 %v1237, %v185
    %v1252 = vmul.f32 %v1240, %v185
    %v1253 = vmul.f32 %v1243, %v185
    %v1254 = vmul.f32 %v1246, %v185
    %v1255 = vmul.f32 %v1249, %v185
    %v1256 = vsub.f32 %v1224, %v1250
    %v1257 = vsub.f32 %v1225, %v1251
    %v1258 = vsub.f32 %v1226, %v1252
    %v1259 = vsub.f32 %v1227, %v1253
    %v1260 = vsub.f32 %v1228, %v1254
    %v1261 = vsub.f32 %v1229, %v1255
    %v1262 = vmul.f32 %v1256, %v1256
    %v1263 = vmul.f32 %v1257, %v1257
    %v1264 = vmul.f32 %v1258, %v1258
    %v1265 = vmul.f32 %v1259, %v1259
    %v1266 = vmul.f32 %v1260, %v1260
    %v1267 = vmul.f32 %v1261, %v1261
    %v1268 = vsel %vm160, %v1262, 0.0
    %1269 = vadd.xlane.f32.xlu0 %v1268
    %v1270 = vpop.xlane.xlu0 %1269
    %v1271 = vsel %vm160, %v1263, 0.0
    %1272 = vadd.xlane.f32.xlu0 %v1271
    %v1273 = vpop.xlane.xlu0 %1272
    %v1274 = vsel %vm160, %v1264, 0.0
    %1275 = vadd.xlane.f32.xlu0 %v1274
    %v1276 = vpop.xlane.xlu0 %1275
    %v1277 = vsel %vm160, %v1265, 0.0
    %1278 = vadd.xlane.f32.xlu0 %v1277
    %v1279 = vpop.xlane.xlu0 %1278
    %v1280 = vsel %vm160, %v1266, 0.0
    %1281 = vadd.xlane.f32.xlu0 %v1280
    %v1282 = vpop.xlane.xlu0 %1281
    %v1283 = vsel %vm160, %v1267, 0.0
    %1284 = vadd.xlane.f32.xlu0 %v1283
    %v1285 = vpop.xlane.xlu0 %1284
    %v1286 = vmul.f32 %v1270, %v185
    %v1287 = vmul.f32 %v1273, %v185
    %v1288 = vmul.f32 %v1276, %v185
    %v1289 = vmul.f32 %v1279, %v185
    %v1290 = vmul.f32 %v1282, %v185
    %v1291 = vmul.f32 %v1285, %v185
    %v1292 = vadd.f32 %v1286, 1e-06
    %v1293 = vadd.f32 %v1287, 1e-06
    %v1294 = vadd.f32 %v1288, 1e-06
    %v1295 = vadd.f32 %v1289, 1e-06
    %v1296 = vadd.f32 %v1290, 1e-06
    %v1297 = vadd.f32 %v1291, 1e-06
    %v1298 = vrsqrt.pop %v1292
    %v1299 = vmul.f32 %v1298, %v1292
    %v1300 = vmul.f32 %v1299, %v1298
    %v1301 = vmul.f32 0.5, %v1300
    %v1302 = vsub.f32 1.5, %v1301
    %v1303 = vmul.f32 %v1298, %v1302
    %vm1304 = vweird.f32 %v1292
    %vm1305 = vweird.f32 %v1298
    %vm1306 = vmor %vm1304, %vm1305
    %v1307 = vsel %vm1306, %v1298, %v1303
    %v1308 = vrsqrt.pop %v1293
    %v1309 = vmul.f32 %v1308, %v1293
    %v1310 = vmul.f32 %v1309, %v1308
    %v1311 = vmul.f32 0.5, %v1310
    %v1312 = vsub.f32 1.5, %v1311
    %v1313 = vmul.f32 %v1308, %v1312
    %vm1314 = vweird.f32 %v1293
    %vm1315 = vweird.f32 %v1308
    %vm1316 = vmor %vm1314, %vm1315
    %v1317 = vsel %vm1316, %v1308, %v1313
    %v1318 = vrsqrt.pop %v1294
    %v1319 = vmul.f32 %v1318, %v1294
    %v1320 = vmul.f32 %v1319, %v1318
    %v1321 = vmul.f32 0.5, %v1320
    %v1322 = vsub.f32 1.5, %v1321
    %v1323 = vmul.f32 %v1318, %v1322
    %vm1324 = vweird.f32 %v1294
    %vm1325 = vweird.f32 %v1318
    %vm1326 = vmor %vm1324, %vm1325
    %v1327 = vsel %vm1326, %v1318, %v1323
    %v1328 = vrsqrt.pop %v1295
    %v1329 = vmul.f32 %v1328, %v1295
    %v1330 = vmul.f32 %v1329, %v1328
    %v1331 = vmul.f32 0.5, %v1330
    %v1332 = vsub.f32 1.5, %v1331
    %v1333 = vmul.f32 %v1328, %v1332
    %vm1334 = vweird.f32 %v1295
    %vm1335 = vweird.f32 %v1328
    %vm1336 = vmor %vm1334, %vm1335
    %v1337 = vsel %vm1336, %v1328, %v1333
    %v1338 = vrsqrt.pop %v1296
    %v1339 = vmul.f32 %v1338, %v1296
    %v1340 = vmul.f32 %v1339, %v1338
    %v1341 = vmul.f32 0.5, %v1340
    %v1342 = vsub.f32 1.5, %v1341
    %v1343 = vmul.f32 %v1338, %v1342
    %vm1344 = vweird.f32 %v1296
    %vm1345 = vweird.f32 %v1338
    %vm1346 = vmor %vm1344, %vm1345
    %v1347 = vsel %vm1346, %v1338, %v1343
    %v1348 = vrsqrt.pop %v1297
    %v1349 = vmul.f32 %v1348, %v1297
    %v1350 = vmul.f32 %v1349, %v1348
    %v1351 = vmul.f32 0.5, %v1350
    %v1352 = vsub.f32 1.5, %v1351
    %v1353 = vmul.f32 %v1348, %v1352
    %vm1354 = vweird.f32 %v1297
    %vm1355 = vweird.f32 %v1348
    %vm1356 = vmor %vm1354, %vm1355
    %v1357 = vsel %vm1356, %v1348, %v1353
    %v1358 = vmul.f32 %v1256, %v1307
    %v1359 = vmul.f32 %v1257, %v1317
    %v1360 = vmul.f32 %v1258, %v1327
    %v1361 = vmul.f32 %v1259, %v1337
    %v1362 = vmul.f32 %v1260, %v1347
    %v1363 = vmul.f32 %v1261, %v1357
    %v1365 = vperm.slane %v1230, 0
    %v1367 = vmul.f32 %v1358, %v1365
    %v1368 = vmul.f32 %v1359, %v1365
    %v1369 = vmul.f32 %v1360, %v1365
    %v1370 = vmul.f32 %v1361, %v1365
    %v1371 = vmul.f32 %v1362, %v1365
    %v1372 = vmul.f32 %v1363, %v1365
    %v1374 = vperm.slane %v1231, 0
    %v1376 = vadd.f32 %v1367, %v1374
    %v1377 = vadd.f32 %v1368, %v1374
    %v1378 = vadd.f32 %v1369, %v1374
    %v1379 = vadd.f32 %v1370, %v1374
    %v1380 = vadd.f32 %v1371, %v1374
    %v1381 = vadd.f32 %v1372, %v1374
    %v1382 = vld [vmem:[%s12] sm:$0xf]
    %v1383 = vld [vmem:[%s12 + $0x4] sm:$0xf]
    %v1384 = vld [vmem:[%s12 + $0x8] sm:$0xf]
    %v1385 = vld [vmem:[%s12 + $0xc] sm:$0xf]
    %v1386 = vpack.c.bf16 %v1377, %v1376
    %v1387 = vpack.c.bf16 %v1379, %v1378
    %v1388 = vpack.c.bf16 %v1381, %v1380
    %v1389 = vld [vmem:[%s13] sm:$0x1]
    %v1391 = vperm.slane %v1389, 0
    %v1397 = vunpack.c.l.b16 %v1382
    %v1398 = vunpack.c.l.b16 %v1383
    %v1399 = vunpack.c.l.b16 %v1384
    %v1400 = vunpack.c.l.b16 %v1385
    %v1401 = vpack.c.b16 %v1398, %v1397
    %v1402 = vpack.c.b16 %v1400, %v1399
    %v1406 = vsel %vm160, %v1386, 0
    %v1409 = vsel %vm160, %v1387, 0
    %v1412 = vsel %vm160, %v1388, 0
    %1414 = vmatpush.bf16.msra.mxu0 0
    %1415 = vmatpush.bf16.msra.mxu0 0
    %1416 = vmatpush.bf16.msra.mxu0 0
    %1417 = vmatpush.bf16.msra.mxu0 0
    %1418 = vmatpush.bf16.msra.mxu0 0
    %1419 = vmatpush.bf16.msra.mxu0 0
    %1420 = vmatpush.bf16.msra.mxu0 %v1402
    %1421 = vmatpush.bf16.msra.mxu0 %v1401
    %1422 = vmatmul.bf16.gmra.mxu0 %v1406
    %v1423 = vpop.f32.mrf.mxu0
    %v1424 = vadd.f32 %v1391, %v1423
    %v1425 = vpop.f32.mrf.mxu0
    %v1426 = vadd.f32 %v1391, %v1425
    %1427 = vmatmul.bf16.gmra.mxu0 %v1409
    %v1428 = vpop.f32.mrf.mxu0
    %v1429 = vadd.f32 %v1391, %v1428
    %v1430 = vpop.f32.mrf.mxu0
    %v1431 = vadd.f32 %v1391, %v1430
    %1432 = vmatmul.bf16.gmra.mxu0 %v1412
    %v1433 = vpop.f32.mrf.mxu0
    %v1434 = vadd.f32 %v1391, %v1433
    %v1435 = vpop.f32.mrf.mxu0
    %v1436 = vadd.f32 %v1391, %v1435
    %1437 = vdwg.mxu0
    %v1438 = vmul.f32 %v1424, %v1424
    %v1439 = vmul.f32 %v1426, %v1426
    %v1440 = vmul.f32 %v1429, %v1429
    %v1441 = vmul.f32 %v1431, %v1431
    %v1442 = vmul.f32 %v1434, %v1434
    %v1443 = vmul.f32 %v1436, %v1436
    %v1444 = vmul.f32 %v1424, %v1438
    %v1445 = vmul.f32 %v1426, %v1439
    %v1446 = vmul.f32 %v1429, %v1440
    %v1447 = vmul.f32 %v1431, %v1441
    %v1448 = vmul.f32 %v1434, %v1442
    %v1449 = vmul.f32 %v1436, %v1443
    %v1450 = vmul.f32 %v1444, 0.044715
    %v1451 = vmul.f32 %v1445, 0.044715
    %v1452 = vmul.f32 %v1446, 0.044715
    %v1453 = vmul.f32 %v1447, 0.044715
    %v1454 = vmul.f32 %v1448, 0.044715
    %v1455 = vmul.f32 %v1449, 0.044715
    %v1456 = vadd.f32 %v1424, %v1450
    %v1457 = vadd.f32 %v1426, %v1451
    %v1458 = vadd.f32 %v1429, %v1452
    %v1459 = vadd.f32 %v1431, %v1453
    %v1460 = vadd.f32 %v1434, %v1454
    %v1461 = vadd.f32 %v1436, %v1455
    %v1462 = vmul.f32 %v1456, 0.7978846
    %v1463 = vmul.f32 %v1457, 0.7978846
    %v1464 = vmul.f32 %v1458, 0.7978846
    %v1465 = vmul.f32 %v1459, 0.7978846
    %v1466 = vmul.f32 %v1460, 0.7978846
    %v1467 = vmul.f32 %v1461, 0.7978846
    %v1468 = vtanh.pop %v1462
    %v1469 = vtanh.pop %v1463
    %v1470 = vtanh.pop %v1464
    %v1471 = vtanh.pop %v1465
    %v1472 = vtanh.pop %v1466
    %v1473 = vtanh.pop %v1467
    %v1474 = vadd.f32 %v1468, 1.0
    %v1475 = vadd.f32 %v1469, 1.0
    %v1476 = vadd.f32 %v1470, 1.0
    %v1477 = vadd.f32 %v1471, 1.0
    %v1478 = vadd.f32 %v1472, 1.0
    %v1479 = vadd.f32 %v1473, 1.0
    %v1480 = vmul.f32 %v1474, 0.5
    %v1481 = vmul.f32 %v1475, 0.5
    %v1482 = vmul.f32 %v1476, 0.5
    %v1483 = vmul.f32 %v1477, 0.5
    %v1484 = vmul.f32 %v1478, 0.5
    %v1485 = vmul.f32 %v1479, 0.5
    %v1486 = vmul.f32 %v1424, %v1480
    %v1487 = vmul.f32 %v1426, %v1481
    %v1488 = vmul.f32 %v1429, %v1482
    %v1489 = vmul.f32 %v1431, %v1483
    %v1490 = vmul.f32 %v1434, %v1484
    %v1491 = vmul.f32 %v1436, %v1485
    %v1492 = vld [vmem:[%s14] sm:$0xf]
    %v1493 = vld [vmem:[%s14 + $0x4] sm:$0xf]
    %v1494 = vld [vmem:[%s14 + $0x8] sm:$0xf]
    %v1495 = vld [vmem:[%s14 + $0xc] sm:$0xf]
    %v1496 = vld [vmem:[%s14 + $0x10] sm:$0xf]
    %v1497 = vld [vmem:[%s14 + $0x14] sm:$0xf]
    %v1498 = vld [vmem:[%s14 + $0x18] sm:$0xf]
    %v1499 = vld [vmem:[%s14 + $0x1c] sm:$0xf]
    %v1500 = vld [vmem:[%s14 + $0x20] sm:$0xf]
    %v1501 = vld [vmem:[%s14 + $0x24] sm:$0xf]
    %v1502 = vld [vmem:[%s14 + $0x28] sm:$0xf]
    %v1503 = vld [vmem:[%s14 + $0x2c] sm:$0xf]
    %v1504 = vld [vmem:[%s14 + $0x30] sm:$0xf]
    %v1505 = vld [vmem:[%s14 + $0x34] sm:$0xf]
    %v1506 = vld [vmem:[%s14 + $0x38] sm:$0xf]
    %v1507 = vld [vmem:[%s14 + $0x3c] sm:$0xf]
    %v1508 = vpack.c.bf16 %v1487, %v1486
    %v1509 = vpack.c.bf16 %v1489, %v1488
    %v1510 = vpack.c.bf16 %v1491, %v1490
    %v1527 = vunpack.c.l.b16 %v1492
    %v1528 = vunpack.c.l.b16 %v1493
    %v1529 = vunpack.c.l.b16 %v1494
    %v1530 = vunpack.c.l.b16 %v1495
    %v1531 = vunpack.c.l.b16 %v1496
    %v1532 = vunpack.c.l.b16 %v1497
    %v1533 = vunpack.c.l.b16 %v1498
    %v1534 = vunpack.c.l.b16 %v1499
    %v1535 = vunpack.c.l.b16 %v1500
    %v1536 = vunpack.c.l.b16 %v1501
    %v1537 = vunpack.c.l.b16 %v1502
    %v1538 = vunpack.c.l.b16 %v1503
    %v1539 = vunpack.c.l.b16 %v1504
    %v1540 = vunpack.c.l.b16 %v1505
    %v1541 = vunpack.c.l.b16 %v1506
    %v1542 = vunpack.c.l.b16 %v1507
    %v1543 = vpack.c.b16 %v1528, %v1527
    %v1544 = vpack.c.b16 %v1530, %v1529
    %v1545 = vpack.c.b16 %v1532, %v1531
    %v1546 = vpack.c.b16 %v1534, %v1533
    %v1547 = vpack.c.b16 %v1536, %v1535
    %v1548 = vpack.c.b16 %v1538, %v1537
    %v1549 = vpack.c.b16 %v1540, %v1539
    %v1550 = vpack.c.b16 %v1542, %v1541
    %1559 = vmatpush.bf16.msra.mxu0 %v1550
    %1560 = vmatpush.bf16.msra.mxu0 %v1549
    %1561 = vmatpush.bf16.msra.mxu0 %v1548
    %1562 = vmatpush.bf16.msra.mxu0 %v1547
    %1563 = vmatpush.bf16.msra.mxu0 %v1546
    %1564 = vmatpush.bf16.msra.mxu0 %v1545
    %1565 = vmatpush.bf16.msra.mxu0 %v1544
    %1566 = vmatpush.bf16.msra.mxu0 %v1543
    %1567 = vmatmul.bf16.gmra.mxu0 %v1508
    %v1568 = vpop.f32.mrf.mxu0
    %v1569 = vadd.f32 0.0, %v1568
    %v1570 = vpop.f32.mrf.mxu0
    %v1571 = vadd.f32 0.0, %v1570
    %1572 = vmatmul.bf16.gmra.mxu0 %v1509
    %v1573 = vpop.f32.mrf.mxu0
    %v1574 = vadd.f32 0.0, %v1573
    %v1575 = vpop.f32.mrf.mxu0
    %v1576 = vadd.f32 0.0, %v1575
    %1577 = vmatmul.bf16.gmra.mxu0 %v1510
    %v1578 = vpop.f32.mrf.mxu0
    %v1579 = vadd.f32 0.0, %v1578
    %v1580 = vpop.f32.mrf.mxu0
    %v1581 = vadd.f32 0.0, %v1580
    %1582 = vdwg.mxu0
    %v1583 = vadd.f32 %v1224, %v1569
    %v1584 = vadd.f32 %v1225, %v1571
    %v1585 = vadd.f32 %v1226, %v1574
    %v1586 = vadd.f32 %v1227, %v1576
    %v1587 = vadd.f32 %v1228, %v1579
    %v1588 = vadd.f32 %v1229, %v1581
    %v1589 = vld [vmem:[%s15] sm:$0x1]
    %v1591 = vperm.slane %v1589, 0
    %v1593 = vadd.f32 %v1583, %v1591
    %v1594 = vadd.f32 %v1584, %v1591
    %v1595 = vadd.f32 %v1585, %v1591
    %v1596 = vadd.f32 %v1586, %v1591
    %v1597 = vadd.f32 %v1587, %v1591
    %v1598 = vadd.f32 %v1588, %v1591
    %s1599 = scalar_lea.vmem %s4, 1
    %v1600 = vld [vmem:[%s1599] sm:$0x1]
    %s1601 = scalar_lea.vmem %s5, 1
    %v1602 = vld [vmem:[%s1601] sm:$0x1]
    %v1603 = vsel %vm160, %v1593, 0.0
    %1604 = vadd.xlane.f32.xlu0 %v1603
    %v1605 = vpop.xlane.xlu0 %1604
    %v1606 = vsel %vm160, %v1594, 0.0
    %1607 = vadd.xlane.f32.xlu0 %v1606
    %v1608 = vpop.xlane.xlu0 %1607
    %v1609 = vsel %vm160, %v1595, 0.0
    %1610 = vadd.xlane.f32.xlu0 %v1609
    %v1611 = vpop.xlane.xlu0 %1610
    %v1612 = vsel %vm160, %v1596, 0.0
    %1613 = vadd.xlane.f32.xlu0 %v1612
    %v1614 = vpop.xlane.xlu0 %1613
    %v1615 = vsel %vm160, %v1597, 0.0
    %1616 = vadd.xlane.f32.xlu0 %v1615
    %v1617 = vpop.xlane.xlu0 %1616
    %v1618 = vsel %vm160, %v1598, 0.0
    %1619 = vadd.xlane.f32.xlu0 %v1618
    %v1620 = vpop.xlane.xlu0 %1619
    %v1621 = vmul.f32 %v1605, %v185
    %v1622 = vmul.f32 %v1608, %v185
    %v1623 = vmul.f32 %v1611, %v185
    %v1624 = vmul.f32 %v1614, %v185
    %v1625 = vmul.f32 %v1617, %v185
    %v1626 = vmul.f32 %v1620, %v185
    %v1627 = vsub.f32 %v1593, %v1621
    %v1628 = vsub.f32 %v1594, %v1622
    %v1629 = vsub.f32 %v1595, %v1623
    %v1630 = vsub.f32 %v1596, %v1624
    %v1631 = vsub.f32 %v1597, %v1625
    %v1632 = vsub.f32 %v1598, %v1626
    %v1633 = vmul.f32 %v1627, %v1627
    %v1634 = vmul.f32 %v1628, %v1628
    %v1635 = vmul.f32 %v1629, %v1629
    %v1636 = vmul.f32 %v1630, %v1630
    %v1637 = vmul.f32 %v1631, %v1631
    %v1638 = vmul.f32 %v1632, %v1632
    %v1639 = vsel %vm160, %v1633, 0.0
    %1640 = vadd.xlane.f32.xlu0 %v1639
    %v1641 = vpop.xlane.xlu0 %1640
    %v1642 = vsel %vm160, %v1634, 0.0
    %1643 = vadd.xlane.f32.xlu0 %v1642
    %v1644 = vpop.xlane.xlu0 %1643
    %v1645 = vsel %vm160, %v1635, 0.0
    %1646 = vadd.xlane.f32.xlu0 %v1645
    %v1647 = vpop.xlane.xlu0 %1646
    %v1648 = vsel %vm160, %v1636, 0.0
    %1649 = vadd.xlane.f32.xlu0 %v1648
    %v1650 = vpop.xlane.xlu0 %1649
    %v1651 = vsel %vm160, %v1637, 0.0
    %1652 = vadd.xlane.f32.xlu0 %v1651
    %v1653 = vpop.xlane.xlu0 %1652
    %v1654 = vsel %vm160, %v1638, 0.0
    %1655 = vadd.xlane.f32.xlu0 %v1654
    %v1656 = vpop.xlane.xlu0 %1655
    %v1657 = vmul.f32 %v1641, %v185
    %v1658 = vmul.f32 %v1644, %v185
    %v1659 = vmul.f32 %v1647, %v185
    %v1660 = vmul.f32 %v1650, %v185
    %v1661 = vmul.f32 %v1653, %v185
    %v1662 = vmul.f32 %v1656, %v185
    %v1663 = vadd.f32 %v1657, 1e-06
    %v1664 = vadd.f32 %v1658, 1e-06
    %v1665 = vadd.f32 %v1659, 1e-06
    %v1666 = vadd.f32 %v1660, 1e-06
    %v1667 = vadd.f32 %v1661, 1e-06
    %v1668 = vadd.f32 %v1662, 1e-06
    %v1669 = vrsqrt.pop %v1663
    %v1670 = vmul.f32 %v1669, %v1663
    %v1671 = vmul.f32 %v1670, %v1669
    %v1672 = vmul.f32 0.5, %v1671
    %v1673 = vsub.f32 1.5, %v1672
    %v1674 = vmul.f32 %v1669, %v1673
    %vm1675 = vweird.f32 %v1663
    %vm1676 = vweird.f32 %v1669
    %vm1677 = vmor %vm1675, %vm1676
    %v1678 = vsel %vm1677, %v1669, %v1674
    %v1679 = vrsqrt.pop %v1664
    %v1680 = vmul.f32 %v1679, %v1664
    %v1681 = vmul.f32 %v1680, %v1679
    %v1682 = vmul.f32 0.5, %v1681
    %v1683 = vsub.f32 1.5, %v1682
    %v1684 = vmul.f32 %v1679, %v1683
    %vm1685 = vweird.f32 %v1664
    %vm1686 = vweird.f32 %v1679
    %vm1687 = vmor %vm1685, %vm1686
    %v1688 = vsel %vm1687, %v1679, %v1684
    %v1689 = vrsqrt.pop %v1665
    %v1690 = vmul.f32 %v1689, %v1665
    %v1691 = vmul.f32 %v1690, %v1689
    %v1692 = vmul.f32 0.5, %v1691
    %v1693 = vsub.f32 1.5, %v1692
    %v1694 = vmul.f32 %v1689, %v1693
    %vm1695 = vweird.f32 %v1665
    %vm1696 = vweird.f32 %v1689
    %vm1697 = vmor %vm1695, %vm1696
    %v1698 = vsel %vm1697, %v1689, %v1694
    %v1699 = vrsqrt.pop %v1666
    %v1700 = vmul.f32 %v1699, %v1666
    %v1701 = vmul.f32 %v1700, %v1699
    %v1702 = vmul.f32 0.5, %v1701
    %v1703 = vsub.f32 1.5, %v1702
    %v1704 = vmul.f32 %v1699, %v1703
    %vm1705 = vweird.f32 %v1666
    %vm1706 = vweird.f32 %v1699
    %vm1707 = vmor %vm1705, %vm1706
    %v1708 = vsel %vm1707, %v1699, %v1704
    %v1709 = vrsqrt.pop %v1667
    %v1710 = vmul.f32 %v1709, %v1667
    %v1711 = vmul.f32 %v1710, %v1709
    %v1712 = vmul.f32 0.5, %v1711
    %v1713 = vsub.f32 1.5, %v1712
    %v1714 = vmul.f32 %v1709, %v1713
    %vm1715 = vweird.f32 %v1667
    %vm1716 = vweird.f32 %v1709
    %vm1717 = vmor %vm1715, %vm1716
    %v1718 = vsel %vm1717, %v1709, %v1714
    %v1719 = vrsqrt.pop %v1668
    %v1720 = vmul.f32 %v1719, %v1668
    %v1721 = vmul.f32 %v1720, %v1719
    %v1722 = vmul.f32 0.5, %v1721
    %v1723 = vsub.f32 1.5, %v1722
    %v1724 = vmul.f32 %v1719, %v1723
    %vm1725 = vweird.f32 %v1668
    %vm1726 = vweird.f32 %v1719
    %vm1727 = vmor %vm1725, %vm1726
    %v1728 = vsel %vm1727, %v1719, %v1724
    %v1729 = vmul.f32 %v1627, %v1678
    %v1730 = vmul.f32 %v1628, %v1688
    %v1731 = vmul.f32 %v1629, %v1698
    %v1732 = vmul.f32 %v1630, %v1708
    %v1733 = vmul.f32 %v1631, %v1718
    %v1734 = vmul.f32 %v1632, %v1728
    %v1736 = vperm.slane %v1600, 0
    %v1738 = vmul.f32 %v1729, %v1736
    %v1739 = vmul.f32 %v1730, %v1736
    %v1740 = vmul.f32 %v1731, %v1736
    %v1741 = vmul.f32 %v1732, %v1736
    %v1742 = vmul.f32 %v1733, %v1736
    %v1743 = vmul.f32 %v1734, %v1736
    %v1745 = vperm.slane %v1602, 0
    %v1747 = vadd.f32 %v1738, %v1745
    %v1748 = vadd.f32 %v1739, %v1745
    %v1749 = vadd.f32 %v1740, %v1745
    %v1750 = vadd.f32 %v1741, %v1745
    %v1751 = vadd.f32 %v1742, %v1745
    %v1752 = vadd.f32 %v1743, %v1745
    %s1753 = scalar_lea.vmem %s6, 16
    %v1754 = vld [vmem:[%s1753] sm:$0xf]
    %v1755 = vld [vmem:[%s1753 + $0x4] sm:$0xf]
    %v1756 = vld [vmem:[%s1753 + $0x8] sm:$0xf]
    %v1757 = vld [vmem:[%s1753 + $0xc] sm:$0xf]
    %v1758 = vpack.c.bf16 %v1748, %v1747
    %v1759 = vpack.c.bf16 %v1750, %v1749
    %v1760 = vpack.c.bf16 %v1752, %v1751
    %s1761 = scalar_lea.vmem %s7, 1
    %v1762 = vld [vmem:[%s1761] sm:$0x1]
    %v1764 = vperm.slane %v1762, 0
    %v1770 = vunpack.c.l.b16 %v1754
    %v1771 = vunpack.c.l.b16 %v1755
    %v1772 = vunpack.c.l.b16 %v1756
    %v1773 = vunpack.c.l.b16 %v1757
    %v1774 = vpack.c.b16 %v1771, %v1770
    %v1775 = vpack.c.b16 %v1773, %v1772
    %v1779 = vsel %vm160, %v1758, 0
    %v1782 = vsel %vm160, %v1759, 0
    %v1785 = vsel %vm160, %v1760, 0
    %1787 = vmatpush.bf16.msra.mxu0 0
    %1788 = vmatpush.bf16.msra.mxu0 0
    %1789 = vmatpush.bf16.msra.mxu0 0
    %1790 = vmatpush.bf16.msra.mxu0 0
    %1791 = vmatpush.bf16.msra.mxu0 0
    %1792 = vmatpush.bf16.msra.mxu0 0
    %1793 = vmatpush.bf16.msra.mxu0 %v1775
    %1794 = vmatpush.bf16.msra.mxu0 %v1774
    %1795 = vmatmul.bf16.gmra.mxu0 %v1779
    %v1796 = vpop.f32.mrf.mxu0
    %v1797 = vadd.f32 %v1764, %v1796
    %v1798 = vpop.f32.mrf.mxu0
    %v1799 = vadd.f32 %v1764, %v1798
    %1800 = vmatmul.bf16.gmra.mxu0 %v1782
    %v1801 = vpop.f32.mrf.mxu0
    %v1802 = vadd.f32 %v1764, %v1801
    %v1803 = vpop.f32.mrf.mxu0
    %v1804 = vadd.f32 %v1764, %v1803
    %1805 = vmatmul.bf16.gmra.mxu0 %v1785
    %v1806 = vpop.f32.mrf.mxu0
    %v1807 = vadd.f32 %v1764, %v1806
    %v1808 = vpop.f32.mrf.mxu0
    %v1809 = vadd.f32 %v1764, %v1808
    %1810 = vdwg.mxu0
    %s1811 = scalar_lea.vmem %s9, 1
    %v1812 = vld [vmem:[%s1811] sm:$0x1]
    %v1814 = vperm.slane %v1812, 0
    %s1816 = scalar_lea.vmem %s8, 16
    %v1817 = vld [vmem:[%s1816] sm:$0xf]
    %v1818 = vld [vmem:[%s1816 + $0x4] sm:$0xf]
    %v1819 = vld [vmem:[%s1816 + $0x8] sm:$0xf]
    %v1820 = vld [vmem:[%s1816 + $0xc] sm:$0xf]
    %v1821 = vpack.c.bf16 %v1799, %v1797
    %v1822 = vpack.c.bf16 %v1804, %v1802
    %v1823 = vpack.c.bf16 %v1809, %v1807
    %1827 = vrot.lane.b32.xlu0 %v1821, 96
    %v1828 = vpop.permute.xlu0 %1827
    %1829 = vrot.lane.b32.xlu0 %v1822, 96
    %v1830 = vpop.permute.xlu0 %1829
    %1831 = vrot.lane.b32.xlu0 %v1823, 96
    %v1832 = vpop.permute.xlu0 %1831
    %v1834 = vsel %vm394, %v1821, 0
    %v1837 = vsel %vm394, %v1822, 0
    %v1840 = vsel %vm394, %v1823, 0
    %v1843 = vsel %vm394, %v1828, 0
    %v1846 = vsel %vm394, %v1830, 0
    %v1849 = vsel %vm394, %v1832, 0
    %1851 = vmatpush.bf16.xpose.msra.mxu0 0
    %1852 = vmatpush.bf16.xpose.msra.mxu0 0
    %1853 = vmatpush.bf16.xpose.msra.mxu0 0
    %1854 = vmatpush.bf16.xpose.msra.mxu0 0
    %1855 = vmatpush.bf16.xpose.msra.mxu0 0
    %1856 = vmatpush.bf16.xpose.msra.mxu0 %v1849
    %1857 = vmatpush.bf16.xpose.msra.mxu0 %v1846
    %1858 = vmatpush.bf16.xpose.msra.mxu0 %v1843
    %1859 = vmatmul.bf16.gmra.mxu0 %v1834
    %v1860 = vpop.f32.mrf.mxu0
    %v1861 = vadd.f32 %v152, %v1860
    %v1862 = vpop.f32.mrf.mxu0
    %v1863 = vadd.f32 %v153, %v1862
    %1864 = vmatmul.bf16.gmra.mxu0 %v1837
    %v1865 = vpop.f32.mrf.mxu0
    %v1866 = vadd.f32 %v154, %v1865
    %v1867 = vpop.f32.mrf.mxu0
    %v1868 = vadd.f32 %v155, %v1867
    %1869 = vmatmul.bf16.gmra.mxu0 %v1840
    %v1870 = vpop.f32.mrf.mxu0
    %v1871 = vadd.f32 %v156, %v1870
    %v1872 = vpop.f32.mrf.mxu0
    %v1873 = vadd.f32 %v157, %v1872
    %1874 = vdwg.mxu0
    %v1875 = vsel %vm118, %v1861, -inf
    %1876 = vmax.xlane.f32.xlu0 %v1875
    %v1877 = vpop.xlane.xlu0 %1876
    %v1878 = vsel %vm118, %v1863, -inf
    %1879 = vmax.xlane.f32.xlu0 %v1878
    %v1880 = vpop.xlane.xlu0 %1879
    %v1881 = vsel %vm118, %v1866, -inf
    %1882 = vmax.xlane.f32.xlu0 %v1881
    %v1883 = vpop.xlane.xlu0 %1882
    %v1884 = vsel %vm118, %v1868, -inf
    %1885 = vmax.xlane.f32.xlu0 %v1884
    %v1886 = vpop.xlane.xlu0 %1885
    %v1887 = vsel %vm118, %v1871, -inf
    %1888 = vmax.xlane.f32.xlu0 %v1887
    %v1889 = vpop.xlane.xlu0 %1888
    %v1890 = vsel %vm118, %v1873, -inf
    %1891 = vmax.xlane.f32.xlu0 %v1890
    %v1892 = vpop.xlane.xlu0 %1891
    %v1893 = vsub.f32 %v1861, %v1877
    %v1894 = vsub.f32 %v1863, %v1880
    %v1895 = vsub.f32 %v1866, %v1883
    %v1896 = vsub.f32 %v1868, %v1886
    %v1897 = vsub.f32 %v1871, %v1889
    %v1898 = vsub.f32 %v1873, %v1892
    %v1899 = vmul.f32 %v1893, 1.442695
    %v1900 = vpow.pop %v1899
    %v1901 = vmul.f32 %v1894, 1.442695
    %v1902 = vpow.pop %v1901
    %v1903 = vmul.f32 %v1895, 1.442695
    %v1904 = vpow.pop %v1903
    %v1905 = vmul.f32 %v1896, 1.442695
    %v1906 = vpow.pop %v1905
    %v1907 = vmul.f32 %v1897, 1.442695
    %v1908 = vpow.pop %v1907
    %v1909 = vmul.f32 %v1898, 1.442695
    %v1910 = vpow.pop %v1909
    %v1911 = vsel %vm118, %v1900, 0.0
    %1912 = vadd.xlane.f32.xlu0 %v1911
    %v1913 = vpop.xlane.xlu0 %1912
    %v1914 = vsel %vm118, %v1902, 0.0
    %1915 = vadd.xlane.f32.xlu0 %v1914
    %v1916 = vpop.xlane.xlu0 %1915
    %v1917 = vsel %vm118, %v1904, 0.0
    %1918 = vadd.xlane.f32.xlu0 %v1917
    %v1919 = vpop.xlane.xlu0 %1918
    %v1920 = vsel %vm118, %v1906, 0.0
    %1921 = vadd.xlane.f32.xlu0 %v1920
    %v1922 = vpop.xlane.xlu0 %1921
    %v1923 = vsel %vm118, %v1908, 0.0
    %1924 = vadd.xlane.f32.xlu0 %v1923
    %v1925 = vpop.xlane.xlu0 %1924
    %v1926 = vsel %vm118, %v1910, 0.0
    %1927 = vadd.xlane.f32.xlu0 %v1926
    %v1928 = vpop.xlane.xlu0 %1927
    %v1929 = vrcp.pop %v1913
    %v1930 = vrcp.pop %v1916
    %v1931 = vrcp.pop %v1919
    %v1932 = vrcp.pop %v1922
    %v1933 = vrcp.pop %v1925
    %v1934 = vrcp.pop %v1928
    %v1935 = vmul.f32 %v1900, %v1929
    %v1936 = vmul.f32 %v1902, %v1930
    %v1937 = vmul.f32 %v1904, %v1931
    %v1938 = vmul.f32 %v1906, %v1932
    %v1939 = vmul.f32 %v1908, %v1933
    %v1940 = vmul.f32 %v1910, %v1934
    %v1941 = vpack.c.bf16 %v1936, %v1935
    %v1942 = vpack.c.bf16 %v1938, %v1937
    %v1943 = vpack.c.bf16 %v1940, %v1939
    %1944 = vrot.lane.b32.xlu0 %v1821, 64
    %v1945 = vpop.permute.xlu0 %1944
    %1946 = vrot.lane.b32.xlu0 %v1822, 64
    %v1947 = vpop.permute.xlu0 %1946
    %1948 = vrot.lane.b32.xlu0 %v1823, 64
    %v1949 = vpop.permute.xlu0 %1948
    %v1954 = vsel %vm118, %v1941, 0
    %v1957 = vsel %vm118, %v1942, 0
    %v1960 = vsel %vm118, %v1943, 0
    %1962 = vmatpush.bf16.msra.mxu0 0
    %1963 = vmatpush.bf16.msra.mxu0 0
    %1964 = vmatpush.bf16.msra.mxu0 0
    %1965 = vmatpush.bf16.msra.mxu0 0
    %1966 = vmatpush.bf16.msra.mxu0 0
    %1967 = vmatpush.bf16.msra.mxu0 %v1949
    %1968 = vmatpush.bf16.msra.mxu0 %v1947
    %1969 = vmatpush.bf16.msra.mxu0 %v1945
    %1970 = vmatmul.bf16.gmra.mxu0 %v1954
    %v1971 = vpop.f32.mrf.mxu0
    %v1972 = vadd.f32 0.0, %v1971
    %v1973 = vpop.f32.mrf.mxu0
    %v1974 = vadd.f32 0.0, %v1973
    %1975 = vmatmul.bf16.gmra.mxu0 %v1957
    %v1976 = vpop.f32.mrf.mxu0
    %v1977 = vadd.f32 0.0, %v1976
    %v1978 = vpop.f32.mrf.mxu0
    %v1979 = vadd.f32 0.0, %v1978
    %1980 = vmatmul.bf16.gmra.mxu0 %v1960
    %v1981 = vpop.f32.mrf.mxu0
    %v1982 = vadd.f32 0.0, %v1981
    %v1983 = vpop.f32.mrf.mxu0
    %v1984 = vadd.f32 0.0, %v1983
    %1985 = vdwg.mxu0
    %v1986 = vpack.c.bf16 %v1974, %v1972
    %v1987 = vpack.c.bf16 %v1979, %v1977
    %v1988 = vpack.c.bf16 %v1984, %v1982
    %v1990 = vsel %vm394, %v1986, 0
    %v1993 = vsel %vm394, %v1987, 0
    %v1996 = vsel %vm394, %v1988, 0
    %v1999 = vsel %vm560, %v1817, 0
    %2001 = vmatpush.bf16.msra.mxu0 0
    %2002 = vmatpush.bf16.msra.mxu0 0
    %2003 = vmatpush.bf16.msra.mxu0 0
    %2004 = vmatpush.bf16.msra.mxu0 0
    %2005 = vmatpush.bf16.msra.mxu0 0
    %2006 = vmatpush.bf16.msra.mxu0 0
    %2007 = vmatpush.bf16.msra.mxu0 0
    %2008 = vmatpush.bf16.msra.mxu0 %v1999
    %2009 = vmatmul.bf16.gmra.mxu0 %v1990
    %v2010 = vpop.f32.mrf.mxu0
    %v2011 = vadd.f32 0.0, %v2010
    %v2012 = vpop.f32.mrf.mxu0
    %v2013 = vadd.f32 0.0, %v2012
    %2014 = vmatmul.bf16.gmra.mxu0 %v1993
    %v2015 = vpop.f32.mrf.mxu0
    %v2016 = vadd.f32 0.0, %v2015
    %v2017 = vpop.f32.mrf.mxu0
    %v2018 = vadd.f32 0.0, %v2017
    %2019 = vmatmul.bf16.gmra.mxu0 %v1996
    %v2020 = vpop.f32.mrf.mxu0
    %v2021 = vadd.f32 0.0, %v2020
    %v2022 = vpop.f32.mrf.mxu0
    %v2023 = vadd.f32 0.0, %v2022
    %2024 = vdwg.mxu0
    %v2025 = vadd.f32 %v1814, %v2011
    %v2026 = vadd.f32 %v1814, %v2013
    %v2027 = vadd.f32 %v1814, %v2016
    %v2028 = vadd.f32 %v1814, %v2018
    %v2029 = vadd.f32 %v1814, %v2021
    %v2030 = vadd.f32 %v1814, %v2023
    %2031 = vrot.lane.b32.xlu0 %v1821, 120
    %v2032 = vpop.permute.xlu0 %2031
    %2033 = vrot.lane.b32.xlu0 %v1822, 120
    %v2034 = vpop.permute.xlu0 %2033
    %2035 = vrot.lane.b32.xlu0 %v1823, 120
    %v2036 = vpop.permute.xlu0 %2035
    %2037 = vrot.lane.b32.xlu0 %v1821, 88
    %v2038 = vpop.permute.xlu0 %2037
    %2039 = vrot.lane.b32.xlu0 %v1822, 88
    %v2040 = vpop.permute.xlu0 %2039
    %2041 = vrot.lane.b32.xlu0 %v1823, 88
    %v2042 = vpop.permute.xlu0 %2041
    %v2044 = vsel %vm394, %v2032, 0
    %v2047 = vsel %vm394, %v2034, 0
    %v2050 = vsel %vm394, %v2036, 0
    %v2053 = vsel %vm394, %v2038, 0
    %v2056 = vsel %vm394, %v2040, 0
    %v2059 = vsel %vm394, %v2042, 0
    %2061 = vmatpush.bf16.xpose.msra.mxu0 0
    %2062 = vmatpush.bf16.xpose.msra.mxu0 0
    %2063 = vmatpush.bf16.xpose.msra.mxu0 0
    %2064 = vmatpush.bf16.xpose.msra.mxu0 0
    %2065 = vmatpush.bf16.xpose.msra.mxu0 0
    %2066 = vmatpush.bf16.xpose.msra.mxu0 %v2059
    %2067 = vmatpush.bf16.xpose.msra.mxu0 %v2056
    %2068 = vmatpush.bf16.xpose.msra.mxu0 %v2053
    %2069 = vmatmul.bf16.gmra.mxu0 %v2044
    %v2070 = vpop.f32.mrf.mxu0
    %v2071 = vadd.f32 %v152, %v2070
    %v2072 = vpop.f32.mrf.mxu0
    %v2073 = vadd.f32 %v153, %v2072
    %2074 = vmatmul.bf16.gmra.mxu0 %v2047
    %v2075 = vpop.f32.mrf.mxu0
    %v2076 = vadd.f32 %v154, %v2075
    %v2077 = vpop.f32.mrf.mxu0
    %v2078 = vadd.f32 %v155, %v2077
    %2079 = vmatmul.bf16.gmra.mxu0 %v2050
    %v2080 = vpop.f32.mrf.mxu0
    %v2081 = vadd.f32 %v156, %v2080
    %v2082 = vpop.f32.mrf.mxu0
    %v2083 = vadd.f32 %v157, %v2082
    %2084 = vdwg.mxu0
    %v2085 = vsel %vm118, %v2071, -inf
    %2086 = vmax.xlane.f32.xlu0 %v2085
    %v2087 = vpop.xlane.xlu0 %2086
    %v2088 = vsel %vm118, %v2073, -inf
    %2089 = vmax.xlane.f32.xlu0 %v2088
    %v2090 = vpop.xlane.xlu0 %2089
    %v2091 = vsel %vm118, %v2076, -inf
    %2092 = vmax.xlane.f32.xlu0 %v2091
    %v2093 = vpop.xlane.xlu0 %2092
    %v2094 = vsel %vm118, %v2078, -inf
    %2095 = vmax.xlane.f32.xlu0 %v2094
    %v2096 = vpop.xlane.xlu0 %2095
    %v2097 = vsel %vm118, %v2081, -inf
    %2098 = vmax.xlane.f32.xlu0 %v2097
    %v2099 = vpop.xlane.xlu0 %2098
    %v2100 = vsel %vm118, %v2083, -inf
    %2101 = vmax.xlane.f32.xlu0 %v2100
    %v2102 = vpop.xlane.xlu0 %2101
    %v2103 = vsub.f32 %v2071, %v2087
    %v2104 = vsub.f32 %v2073, %v2090
    %v2105 = vsub.f32 %v2076, %v2093
    %v2106 = vsub.f32 %v2078, %v2096
    %v2107 = vsub.f32 %v2081, %v2099
    %v2108 = vsub.f32 %v2083, %v2102
    %v2109 = vmul.f32 %v2103, 1.442695
    %v2110 = vpow.pop %v2109
    %v2111 = vmul.f32 %v2104, 1.442695
    %v2112 = vpow.pop %v2111
    %v2113 = vmul.f32 %v2105, 1.442695
    %v2114 = vpow.pop %v2113
    %v2115 = vmul.f32 %v2106, 1.442695
    %v2116 = vpow.pop %v2115
    %v2117 = vmul.f32 %v2107, 1.442695
    %v2118 = vpow.pop %v2117
    %v2119 = vmul.f32 %v2108, 1.442695
    %v2120 = vpow.pop %v2119
    %v2121 = vsel %vm118, %v2110, 0.0
    %2122 = vadd.xlane.f32.xlu0 %v2121
    %v2123 = vpop.xlane.xlu0 %2122
    %v2124 = vsel %vm118, %v2112, 0.0
    %2125 = vadd.xlane.f32.xlu0 %v2124
    %v2126 = vpop.xlane.xlu0 %2125
    %v2127 = vsel %vm118, %v2114, 0.0
    %2128 = vadd.xlane.f32.xlu0 %v2127
    %v2129 = vpop.xlane.xlu0 %2128
    %v2130 = vsel %vm118, %v2116, 0.0
    %2131 = vadd.xlane.f32.xlu0 %v2130
    %v2132 = vpop.xlane.xlu0 %2131
    %v2133 = vsel %vm118, %v2118, 0.0
    %2134 = vadd.xlane.f32.xlu0 %v2133
    %v2135 = vpop.xlane.xlu0 %2134
    %v2136 = vsel %vm118, %v2120, 0.0
    %2137 = vadd.xlane.f32.xlu0 %v2136
    %v2138 = vpop.xlane.xlu0 %2137
    %v2139 = vrcp.pop %v2123
    %v2140 = vrcp.pop %v2126
    %v2141 = vrcp.pop %v2129
    %v2142 = vrcp.pop %v2132
    %v2143 = vrcp.pop %v2135
    %v2144 = vrcp.pop %v2138
    %v2145 = vmul.f32 %v2110, %v2139
    %v2146 = vmul.f32 %v2112, %v2140
    %v2147 = vmul.f32 %v2114, %v2141
    %v2148 = vmul.f32 %v2116, %v2142
    %v2149 = vmul.f32 %v2118, %v2143
    %v2150 = vmul.f32 %v2120, %v2144
    %v2151 = vpack.c.bf16 %v2146, %v2145
    %v2152 = vpack.c.bf16 %v2148, %v2147
    %v2153 = vpack.c.bf16 %v2150, %v2149
    %2154 = vrot.lane.b32.xlu0 %v1821, 56
    %v2155 = vpop.permute.xlu0 %2154
    %2156 = vrot.lane.b32.xlu0 %v1822, 56
    %v2157 = vpop.permute.xlu0 %2156
    %2158 = vrot.lane.b32.xlu0 %v1823, 56
    %v2159 = vpop.permute.xlu0 %2158
    %v2164 = vsel %vm118, %v2151, 0
    %v2167 = vsel %vm118, %v2152, 0
    %v2170 = vsel %vm118, %v2153, 0
    %2172 = vmatpush.bf16.msra.mxu0 0
    %2173 = vmatpush.bf16.msra.mxu0 0
    %2174 = vmatpush.bf16.msra.mxu0 0
    %2175 = vmatpush.bf16.msra.mxu0 0
    %2176 = vmatpush.bf16.msra.mxu0 0
    %2177 = vmatpush.bf16.msra.mxu0 %v2159
    %2178 = vmatpush.bf16.msra.mxu0 %v2157
    %2179 = vmatpush.bf16.msra.mxu0 %v2155
    %2180 = vmatmul.bf16.gmra.mxu0 %v2164
    %v2181 = vpop.f32.mrf.mxu0
    %v2182 = vadd.f32 0.0, %v2181
    %v2183 = vpop.f32.mrf.mxu0
    %v2184 = vadd.f32 0.0, %v2183
    %2185 = vmatmul.bf16.gmra.mxu0 %v2167
    %v2186 = vpop.f32.mrf.mxu0
    %v2187 = vadd.f32 0.0, %v2186
    %v2188 = vpop.f32.mrf.mxu0
    %v2189 = vadd.f32 0.0, %v2188
    %2190 = vmatmul.bf16.gmra.mxu0 %v2170
    %v2191 = vpop.f32.mrf.mxu0
    %v2192 = vadd.f32 0.0, %v2191
    %v2193 = vpop.f32.mrf.mxu0
    %v2194 = vadd.f32 0.0, %v2193
    %2195 = vdwg.mxu0
    %v2196 = vpack.c.bf16 %v2184, %v2182
    %v2197 = vpack.c.bf16 %v2189, %v2187
    %v2198 = vpack.c.bf16 %v2194, %v2192
    %v2200 = vsel %vm394, %v2196, 0
    %v2203 = vsel %vm394, %v2197, 0
    %v2206 = vsel %vm394, %v2198, 0
    %v2209 = vsel %vm560, %v1818, 0
    %2211 = vmatpush.bf16.msra.mxu0 0
    %2212 = vmatpush.bf16.msra.mxu0 0
    %2213 = vmatpush.bf16.msra.mxu0 0
    %2214 = vmatpush.bf16.msra.mxu0 0
    %2215 = vmatpush.bf16.msra.mxu0 0
    %2216 = vmatpush.bf16.msra.mxu0 0
    %2217 = vmatpush.bf16.msra.mxu0 0
    %2218 = vmatpush.bf16.msra.mxu0 %v2209
    %2219 = vmatmul.bf16.gmra.mxu0 %v2200
    %v2220 = vpop.f32.mrf.mxu0
    %v2221 = vadd.f32 0.0, %v2220
    %v2222 = vpop.f32.mrf.mxu0
    %v2223 = vadd.f32 0.0, %v2222
    %2224 = vmatmul.bf16.gmra.mxu0 %v2203
    %v2225 = vpop.f32.mrf.mxu0
    %v2226 = vadd.f32 0.0, %v2225
    %v2227 = vpop.f32.mrf.mxu0
    %v2228 = vadd.f32 0.0, %v2227
    %2229 = vmatmul.bf16.gmra.mxu0 %v2206
    %v2230 = vpop.f32.mrf.mxu0
    %v2231 = vadd.f32 0.0, %v2230
    %v2232 = vpop.f32.mrf.mxu0
    %v2233 = vadd.f32 0.0, %v2232
    %2234 = vdwg.mxu0
    %v2235 = vadd.f32 %v2025, %v2221
    %v2236 = vadd.f32 %v2026, %v2223
    %v2237 = vadd.f32 %v2027, %v2226
    %v2238 = vadd.f32 %v2028, %v2228
    %v2239 = vadd.f32 %v2029, %v2231
    %v2240 = vadd.f32 %v2030, %v2233
    %2241 = vrot.lane.b32.xlu0 %v1821, 112
    %v2242 = vpop.permute.xlu0 %2241
    %2243 = vrot.lane.b32.xlu0 %v1822, 112
    %v2244 = vpop.permute.xlu0 %2243
    %2245 = vrot.lane.b32.xlu0 %v1823, 112
    %v2246 = vpop.permute.xlu0 %2245
    %2247 = vrot.lane.b32.xlu0 %v1821, 80
    %v2248 = vpop.permute.xlu0 %2247
    %2249 = vrot.lane.b32.xlu0 %v1822, 80
    %v2250 = vpop.permute.xlu0 %2249
    %2251 = vrot.lane.b32.xlu0 %v1823, 80
    %v2252 = vpop.permute.xlu0 %2251
    %v2254 = vsel %vm394, %v2242, 0
    %v2257 = vsel %vm394, %v2244, 0
    %v2260 = vsel %vm394, %v2246, 0
    %v2263 = vsel %vm394, %v2248, 0
    %v2266 = vsel %vm394, %v2250, 0
    %v2269 = vsel %vm394, %v2252, 0
    %2271 = vmatpush.bf16.xpose.msra.mxu0 0
    %2272 = vmatpush.bf16.xpose.msra.mxu0 0
    %2273 = vmatpush.bf16.xpose.msra.mxu0 0
    %2274 = vmatpush.bf16.xpose.msra.mxu0 0
    %2275 = vmatpush.bf16.xpose.msra.mxu0 0
    %2276 = vmatpush.bf16.xpose.msra.mxu0 %v2269
    %2277 = vmatpush.bf16.xpose.msra.mxu0 %v2266
    %2278 = vmatpush.bf16.xpose.msra.mxu0 %v2263
    %2279 = vmatmul.bf16.gmra.mxu0 %v2254
    %v2280 = vpop.f32.mrf.mxu0
    %v2281 = vadd.f32 %v152, %v2280
    %v2282 = vpop.f32.mrf.mxu0
    %v2283 = vadd.f32 %v153, %v2282
    %2284 = vmatmul.bf16.gmra.mxu0 %v2257
    %v2285 = vpop.f32.mrf.mxu0
    %v2286 = vadd.f32 %v154, %v2285
    %v2287 = vpop.f32.mrf.mxu0
    %v2288 = vadd.f32 %v155, %v2287
    %2289 = vmatmul.bf16.gmra.mxu0 %v2260
    %v2290 = vpop.f32.mrf.mxu0
    %v2291 = vadd.f32 %v156, %v2290
    %v2292 = vpop.f32.mrf.mxu0
    %v2293 = vadd.f32 %v157, %v2292
    %2294 = vdwg.mxu0
    %v2295 = vsel %vm118, %v2281, -inf
    %2296 = vmax.xlane.f32.xlu0 %v2295
    %v2297 = vpop.xlane.xlu0 %2296
    %v2298 = vsel %vm118, %v2283, -inf
    %2299 = vmax.xlane.f32.xlu0 %v2298
    %v2300 = vpop.xlane.xlu0 %2299
    %v2301 = vsel %vm118, %v2286, -inf
    %2302 = vmax.xlane.f32.xlu0 %v2301
    %v2303 = vpop.xlane.xlu0 %2302
    %v2304 = vsel %vm118, %v2288, -inf
    %2305 = vmax.xlane.f32.xlu0 %v2304
    %v2306 = vpop.xlane.xlu0 %2305
    %v2307 = vsel %vm118, %v2291, -inf
    %2308 = vmax.xlane.f32.xlu0 %v2307
    %v2309 = vpop.xlane.xlu0 %2308
    %v2310 = vsel %vm118, %v2293, -inf
    %2311 = vmax.xlane.f32.xlu0 %v2310
    %v2312 = vpop.xlane.xlu0 %2311
    %v2313 = vsub.f32 %v2281, %v2297
    %v2314 = vsub.f32 %v2283, %v2300
    %v2315 = vsub.f32 %v2286, %v2303
    %v2316 = vsub.f32 %v2288, %v2306
    %v2317 = vsub.f32 %v2291, %v2309
    %v2318 = vsub.f32 %v2293, %v2312
    %v2319 = vmul.f32 %v2313, 1.442695
    %v2320 = vpow.pop %v2319
    %v2321 = vmul.f32 %v2314, 1.442695
    %v2322 = vpow.pop %v2321
    %v2323 = vmul.f32 %v2315, 1.442695
    %v2324 = vpow.pop %v2323
    %v2325 = vmul.f32 %v2316, 1.442695
    %v2326 = vpow.pop %v2325
    %v2327 = vmul.f32 %v2317, 1.442695
    %v2328 = vpow.pop %v2327
    %v2329 = vmul.f32 %v2318, 1.442695
    %v2330 = vpow.pop %v2329
    %v2331 = vsel %vm118, %v2320, 0.0
    %2332 = vadd.xlane.f32.xlu0 %v2331
    %v2333 = vpop.xlane.xlu0 %2332
    %v2334 = vsel %vm118, %v2322, 0.0
    %2335 = vadd.xlane.f32.xlu0 %v2334
    %v2336 = vpop.xlane.xlu0 %2335
    %v2337 = vsel %vm118, %v2324, 0.0
    %2338 = vadd.xlane.f32.xlu0 %v2337
    %v2339 = vpop.xlane.xlu0 %2338
    %v2340 = vsel %vm118, %v2326, 0.0
    %2341 = vadd.xlane.f32.xlu0 %v2340
    %v2342 = vpop.xlane.xlu0 %2341
    %v2343 = vsel %vm118, %v2328, 0.0
    %2344 = vadd.xlane.f32.xlu0 %v2343
    %v2345 = vpop.xlane.xlu0 %2344
    %v2346 = vsel %vm118, %v2330, 0.0
    %2347 = vadd.xlane.f32.xlu0 %v2346
    %v2348 = vpop.xlane.xlu0 %2347
    %v2349 = vrcp.pop %v2333
    %v2350 = vrcp.pop %v2336
    %v2351 = vrcp.pop %v2339
    %v2352 = vrcp.pop %v2342
    %v2353 = vrcp.pop %v2345
    %v2354 = vrcp.pop %v2348
    %v2355 = vmul.f32 %v2320, %v2349
    %v2356 = vmul.f32 %v2322, %v2350
    %v2357 = vmul.f32 %v2324, %v2351
    %v2358 = vmul.f32 %v2326, %v2352
    %v2359 = vmul.f32 %v2328, %v2353
    %v2360 = vmul.f32 %v2330, %v2354
    %v2361 = vpack.c.bf16 %v2356, %v2355
    %v2362 = vpack.c.bf16 %v2358, %v2357
    %v2363 = vpack.c.bf16 %v2360, %v2359
    %2364 = vrot.lane.b32.xlu0 %v1821, 48
    %v2365 = vpop.permute.xlu0 %2364
    %2366 = vrot.lane.b32.xlu0 %v1822, 48
    %v2367 = vpop.permute.xlu0 %2366
    %2368 = vrot.lane.b32.xlu0 %v1823, 48
    %v2369 = vpop.permute.xlu0 %2368
    %v2374 = vsel %vm118, %v2361, 0
    %v2377 = vsel %vm118, %v2362, 0
    %v2380 = vsel %vm118, %v2363, 0
    %2382 = vmatpush.bf16.msra.mxu0 0
    %2383 = vmatpush.bf16.msra.mxu0 0
    %2384 = vmatpush.bf16.msra.mxu0 0
    %2385 = vmatpush.bf16.msra.mxu0 0
    %2386 = vmatpush.bf16.msra.mxu0 0
    %2387 = vmatpush.bf16.msra.mxu0 %v2369
    %2388 = vmatpush.bf16.msra.mxu0 %v2367
    %2389 = vmatpush.bf16.msra.mxu0 %v2365
    %2390 = vmatmul.bf16.gmra.mxu0 %v2374
    %v2391 = vpop.f32.mrf.mxu0
    %v2392 = vadd.f32 0.0, %v2391
    %v2393 = vpop.f32.mrf.mxu0
    %v2394 = vadd.f32 0.0, %v2393
    %2395 = vmatmul.bf16.gmra.mxu0 %v2377
    %v2396 = vpop.f32.mrf.mxu0
    %v2397 = vadd.f32 0.0, %v2396
    %v2398 = vpop.f32.mrf.mxu0
    %v2399 = vadd.f32 0.0, %v2398
    %2400 = vmatmul.bf16.gmra.mxu0 %v2380
    %v2401 = vpop.f32.mrf.mxu0
    %v2402 = vadd.f32 0.0, %v2401
    %v2403 = vpop.f32.mrf.mxu0
    %v2404 = vadd.f32 0.0, %v2403
    %2405 = vdwg.mxu0
    %v2406 = vpack.c.bf16 %v2394, %v2392
    %v2407 = vpack.c.bf16 %v2399, %v2397
    %v2408 = vpack.c.bf16 %v2404, %v2402
    %v2410 = vsel %vm394, %v2406, 0
    %v2413 = vsel %vm394, %v2407, 0
    %v2416 = vsel %vm394, %v2408, 0
    %v2419 = vsel %vm560, %v1819, 0
    %2421 = vmatpush.bf16.msra.mxu0 0
    %2422 = vmatpush.bf16.msra.mxu0 0
    %2423 = vmatpush.bf16.msra.mxu0 0
    %2424 = vmatpush.bf16.msra.mxu0 0
    %2425 = vmatpush.bf16.msra.mxu0 0
    %2426 = vmatpush.bf16.msra.mxu0 0
    %2427 = vmatpush.bf16.msra.mxu0 0
    %2428 = vmatpush.bf16.msra.mxu0 %v2419
    %2429 = vmatmul.bf16.gmra.mxu0 %v2410
    %v2430 = vpop.f32.mrf.mxu0
    %v2431 = vadd.f32 0.0, %v2430
    %v2432 = vpop.f32.mrf.mxu0
    %v2433 = vadd.f32 0.0, %v2432
    %2434 = vmatmul.bf16.gmra.mxu0 %v2413
    %v2435 = vpop.f32.mrf.mxu0
    %v2436 = vadd.f32 0.0, %v2435
    %v2437 = vpop.f32.mrf.mxu0
    %v2438 = vadd.f32 0.0, %v2437
    %2439 = vmatmul.bf16.gmra.mxu0 %v2416
    %v2440 = vpop.f32.mrf.mxu0
    %v2441 = vadd.f32 0.0, %v2440
    %v2442 = vpop.f32.mrf.mxu0
    %v2443 = vadd.f32 0.0, %v2442
    %2444 = vdwg.mxu0
    %v2445 = vadd.f32 %v2235, %v2431
    %v2446 = vadd.f32 %v2236, %v2433
    %v2447 = vadd.f32 %v2237, %v2436
    %v2448 = vadd.f32 %v2238, %v2438
    %v2449 = vadd.f32 %v2239, %v2441
    %v2450 = vadd.f32 %v2240, %v2443
    %2451 = vrot.lane.b32.xlu0 %v1821, 104
    %v2452 = vpop.permute.xlu0 %2451
    %2453 = vrot.lane.b32.xlu0 %v1822, 104
    %v2454 = vpop.permute.xlu0 %2453
    %2455 = vrot.lane.b32.xlu0 %v1823, 104
    %v2456 = vpop.permute.xlu0 %2455
    %2457 = vrot.lane.b32.xlu0 %v1821, 72
    %v2458 = vpop.permute.xlu0 %2457
    %2459 = vrot.lane.b32.xlu0 %v1822, 72
    %v2460 = vpop.permute.xlu0 %2459
    %2461 = vrot.lane.b32.xlu0 %v1823, 72
    %v2462 = vpop.permute.xlu0 %2461
    %v2464 = vsel %vm394, %v2452, 0
    %v2467 = vsel %vm394, %v2454, 0
    %v2470 = vsel %vm394, %v2456, 0
    %v2473 = vsel %vm394, %v2458, 0
    %v2476 = vsel %vm394, %v2460, 0
    %v2479 = vsel %vm394, %v2462, 0
    %2481 = vmatpush.bf16.xpose.msra.mxu0 0
    %2482 = vmatpush.bf16.xpose.msra.mxu0 0
    %2483 = vmatpush.bf16.xpose.msra.mxu0 0
    %2484 = vmatpush.bf16.xpose.msra.mxu0 0
    %2485 = vmatpush.bf16.xpose.msra.mxu0 0
    %2486 = vmatpush.bf16.xpose.msra.mxu0 %v2479
    %2487 = vmatpush.bf16.xpose.msra.mxu0 %v2476
    %2488 = vmatpush.bf16.xpose.msra.mxu0 %v2473
    %2489 = vmatmul.bf16.gmra.mxu0 %v2464
    %v2490 = vpop.f32.mrf.mxu0
    %v2491 = vadd.f32 %v152, %v2490
    %v2492 = vpop.f32.mrf.mxu0
    %v2493 = vadd.f32 %v153, %v2492
    %2494 = vmatmul.bf16.gmra.mxu0 %v2467
    %v2495 = vpop.f32.mrf.mxu0
    %v2496 = vadd.f32 %v154, %v2495
    %v2497 = vpop.f32.mrf.mxu0
    %v2498 = vadd.f32 %v155, %v2497
    %2499 = vmatmul.bf16.gmra.mxu0 %v2470
    %v2500 = vpop.f32.mrf.mxu0
    %v2501 = vadd.f32 %v156, %v2500
    %v2502 = vpop.f32.mrf.mxu0
    %v2503 = vadd.f32 %v157, %v2502
    %2504 = vdwg.mxu0
    %v2505 = vsel %vm118, %v2491, -inf
    %2506 = vmax.xlane.f32.xlu0 %v2505
    %v2507 = vpop.xlane.xlu0 %2506
    %v2508 = vsel %vm118, %v2493, -inf
    %2509 = vmax.xlane.f32.xlu0 %v2508
    %v2510 = vpop.xlane.xlu0 %2509
    %v2511 = vsel %vm118, %v2496, -inf
    %2512 = vmax.xlane.f32.xlu0 %v2511
    %v2513 = vpop.xlane.xlu0 %2512
    %v2514 = vsel %vm118, %v2498, -inf
    %2515 = vmax.xlane.f32.xlu0 %v2514
    %v2516 = vpop.xlane.xlu0 %2515
    %v2517 = vsel %vm118, %v2501, -inf
    %2518 = vmax.xlane.f32.xlu0 %v2517
    %v2519 = vpop.xlane.xlu0 %2518
    %v2520 = vsel %vm118, %v2503, -inf
    %2521 = vmax.xlane.f32.xlu0 %v2520
    %v2522 = vpop.xlane.xlu0 %2521
    %v2523 = vsub.f32 %v2491, %v2507
    %v2524 = vsub.f32 %v2493, %v2510
    %v2525 = vsub.f32 %v2496, %v2513
    %v2526 = vsub.f32 %v2498, %v2516
    %v2527 = vsub.f32 %v2501, %v2519
    %v2528 = vsub.f32 %v2503, %v2522
    %v2529 = vmul.f32 %v2523, 1.442695
    %v2530 = vpow.pop %v2529
    %v2531 = vmul.f32 %v2524, 1.442695
    %v2532 = vpow.pop %v2531
    %v2533 = vmul.f32 %v2525, 1.442695
    %v2534 = vpow.pop %v2533
    %v2535 = vmul.f32 %v2526, 1.442695
    %v2536 = vpow.pop %v2535
    %v2537 = vmul.f32 %v2527, 1.442695
    %v2538 = vpow.pop %v2537
    %v2539 = vmul.f32 %v2528, 1.442695
    %v2540 = vpow.pop %v2539
    %v2541 = vsel %vm118, %v2530, 0.0
    %2542 = vadd.xlane.f32.xlu0 %v2541
    %v2543 = vpop.xlane.xlu0 %2542
    %v2544 = vsel %vm118, %v2532, 0.0
    %2545 = vadd.xlane.f32.xlu0 %v2544
    %v2546 = vpop.xlane.xlu0 %2545
    %v2547 = vsel %vm118, %v2534, 0.0
    %2548 = vadd.xlane.f32.xlu0 %v2547
    %v2549 = vpop.xlane.xlu0 %2548
    %v2550 = vsel %vm118, %v2536, 0.0
    %2551 = vadd.xlane.f32.xlu0 %v2550
    %v2552 = vpop.xlane.xlu0 %2551
    %v2553 = vsel %vm118, %v2538, 0.0
    %2554 = vadd.xlane.f32.xlu0 %v2553
    %v2555 = vpop.xlane.xlu0 %2554
    %v2556 = vsel %vm118, %v2540, 0.0
    %2557 = vadd.xlane.f32.xlu0 %v2556
    %v2558 = vpop.xlane.xlu0 %2557
    %v2559 = vrcp.pop %v2543
    %v2560 = vrcp.pop %v2546
    %v2561 = vrcp.pop %v2549
    %v2562 = vrcp.pop %v2552
    %v2563 = vrcp.pop %v2555
    %v2564 = vrcp.pop %v2558
    %v2565 = vmul.f32 %v2530, %v2559
    %v2566 = vmul.f32 %v2532, %v2560
    %v2567 = vmul.f32 %v2534, %v2561
    %v2568 = vmul.f32 %v2536, %v2562
    %v2569 = vmul.f32 %v2538, %v2563
    %v2570 = vmul.f32 %v2540, %v2564
    %v2571 = vpack.c.bf16 %v2566, %v2565
    %v2572 = vpack.c.bf16 %v2568, %v2567
    %v2573 = vpack.c.bf16 %v2570, %v2569
    %2574 = vrot.lane.b32.xlu0 %v1821, 40
    %v2575 = vpop.permute.xlu0 %2574
    %2576 = vrot.lane.b32.xlu0 %v1822, 40
    %v2577 = vpop.permute.xlu0 %2576
    %2578 = vrot.lane.b32.xlu0 %v1823, 40
    %v2579 = vpop.permute.xlu0 %2578
    %v2584 = vsel %vm118, %v2571, 0
    %v2587 = vsel %vm118, %v2572, 0
    %v2590 = vsel %vm118, %v2573, 0
    %2592 = vmatpush.bf16.msra.mxu0 0
    %2593 = vmatpush.bf16.msra.mxu0 0
    %2594 = vmatpush.bf16.msra.mxu0 0
    %2595 = vmatpush.bf16.msra.mxu0 0
    %2596 = vmatpush.bf16.msra.mxu0 0
    %2597 = vmatpush.bf16.msra.mxu0 %v2579
    %2598 = vmatpush.bf16.msra.mxu0 %v2577
    %2599 = vmatpush.bf16.msra.mxu0 %v2575
    %2600 = vmatmul.bf16.gmra.mxu0 %v2584
    %v2601 = vpop.f32.mrf.mxu0
    %v2602 = vadd.f32 0.0, %v2601
    %v2603 = vpop.f32.mrf.mxu0
    %v2604 = vadd.f32 0.0, %v2603
    %2605 = vmatmul.bf16.gmra.mxu0 %v2587
    %v2606 = vpop.f32.mrf.mxu0
    %v2607 = vadd.f32 0.0, %v2606
    %v2608 = vpop.f32.mrf.mxu0
    %v2609 = vadd.f32 0.0, %v2608
    %2610 = vmatmul.bf16.gmra.mxu0 %v2590
    %v2611 = vpop.f32.mrf.mxu0
    %v2612 = vadd.f32 0.0, %v2611
    %v2613 = vpop.f32.mrf.mxu0
    %v2614 = vadd.f32 0.0, %v2613
    %2615 = vdwg.mxu0
    %v2616 = vpack.c.bf16 %v2604, %v2602
    %v2617 = vpack.c.bf16 %v2609, %v2607
    %v2618 = vpack.c.bf16 %v2614, %v2612
    %v2620 = vsel %vm394, %v2616, 0
    %v2623 = vsel %vm394, %v2617, 0
    %v2626 = vsel %vm394, %v2618, 0
    %v2629 = vsel %vm560, %v1820, 0
    %2631 = vmatpush.bf16.msra.mxu0 0
    %2632 = vmatpush.bf16.msra.mxu0 0
    %2633 = vmatpush.bf16.msra.mxu0 0
    %2634 = vmatpush.bf16.msra.mxu0 0
    %2635 = vmatpush.bf16.msra.mxu0 0
    %2636 = vmatpush.bf16.msra.mxu0 0
    %2637 = vmatpush.bf16.msra.mxu0 0
    %2638 = vmatpush.bf16.msra.mxu0 %v2629
    %2639 = vmatmul.bf16.gmra.mxu0 %v2620
    %v2640 = vpop.f32.mrf.mxu0
    %v2641 = vadd.f32 0.0, %v2640
    %v2642 = vpop.f32.mrf.mxu0
    %v2643 = vadd.f32 0.0, %v2642
    %2644 = vmatmul.bf16.gmra.mxu0 %v2623
    %v2645 = vpop.f32.mrf.mxu0
    %v2646 = vadd.f32 0.0, %v2645
    %v2647 = vpop.f32.mrf.mxu0
    %v2648 = vadd.f32 0.0, %v2647
    %2649 = vmatmul.bf16.gmra.mxu0 %v2626
    %v2650 = vpop.f32.mrf.mxu0
    %v2651 = vadd.f32 0.0, %v2650
    %v2652 = vpop.f32.mrf.mxu0
    %v2653 = vadd.f32 0.0, %v2652
    %2654 = vdwg.mxu0
    %v2655 = vadd.f32 %v2445, %v2641
    %v2656 = vadd.f32 %v2446, %v2643
    %v2657 = vadd.f32 %v2447, %v2646
    %v2658 = vadd.f32 %v2448, %v2648
    %v2659 = vadd.f32 %v2449, %v2651
    %v2660 = vadd.f32 %v2450, %v2653
    %v2661 = vadd.f32 %v1593, %v2655
    %v2662 = vadd.f32 %v1594, %v2656
    %v2663 = vadd.f32 %v1595, %v2657
    %v2664 = vadd.f32 %v1596, %v2658
    %v2665 = vadd.f32 %v1597, %v2659
    %v2666 = vadd.f32 %v1598, %v2660
    %s2667 = scalar_lea.vmem %s10, 1
    %v2668 = vld [vmem:[%s2667] sm:$0x1]
    %s2669 = scalar_lea.vmem %s11, 1
    %v2670 = vld [vmem:[%s2669] sm:$0x1]
    %v2671 = vsel %vm160, %v2661, 0.0
    %2672 = vadd.xlane.f32.xlu0 %v2671
    %v2673 = vpop.xlane.xlu0 %2672
    %v2674 = vsel %vm160, %v2662, 0.0
    %2675 = vadd.xlane.f32.xlu0 %v2674
    %v2676 = vpop.xlane.xlu0 %2675
    %v2677 = vsel %vm160, %v2663, 0.0
    %2678 = vadd.xlane.f32.xlu0 %v2677
    %v2679 = vpop.xlane.xlu0 %2678
    %v2680 = vsel %vm160, %v2664, 0.0
    %2681 = vadd.xlane.f32.xlu0 %v2680
    %v2682 = vpop.xlane.xlu0 %2681
    %v2683 = vsel %vm160, %v2665, 0.0
    %2684 = vadd.xlane.f32.xlu0 %v2683
    %v2685 = vpop.xlane.xlu0 %2684
    %v2686 = vsel %vm160, %v2666, 0.0
    %2687 = vadd.xlane.f32.xlu0 %v2686
    %v2688 = vpop.xlane.xlu0 %2687
    %v2689 = vmul.f32 %v2673, %v185
    %v2690 = vmul.f32 %v2676, %v185
    %v2691 = vmul.f32 %v2679, %v185
    %v2692 = vmul.f32 %v2682, %v185
    %v2693 = vmul.f32 %v2685, %v185
    %v2694 = vmul.f32 %v2688, %v185
    %v2695 = vsub.f32 %v2661, %v2689
    %v2696 = vsub.f32 %v2662, %v2690
    %v2697 = vsub.f32 %v2663, %v2691
    %v2698 = vsub.f32 %v2664, %v2692
    %v2699 = vsub.f32 %v2665, %v2693
    %v2700 = vsub.f32 %v2666, %v2694
    %v2701 = vmul.f32 %v2695, %v2695
    %v2702 = vmul.f32 %v2696, %v2696
    %v2703 = vmul.f32 %v2697, %v2697
    %v2704 = vmul.f32 %v2698, %v2698
    %v2705 = vmul.f32 %v2699, %v2699
    %v2706 = vmul.f32 %v2700, %v2700
    %v2707 = vsel %vm160, %v2701, 0.0
    %2708 = vadd.xlane.f32.xlu0 %v2707
    %v2709 = vpop.xlane.xlu0 %2708
    %v2710 = vsel %vm160, %v2702, 0.0
    %2711 = vadd.xlane.f32.xlu0 %v2710
    %v2712 = vpop.xlane.xlu0 %2711
    %v2713 = vsel %vm160, %v2703, 0.0
    %2714 = vadd.xlane.f32.xlu0 %v2713
    %v2715 = vpop.xlane.xlu0 %2714
    %v2716 = vsel %vm160, %v2704, 0.0
    %2717 = vadd.xlane.f32.xlu0 %v2716
    %v2718 = vpop.xlane.xlu0 %2717
    %v2719 = vsel %vm160, %v2705, 0.0
    %2720 = vadd.xlane.f32.xlu0 %v2719
    %v2721 = vpop.xlane.xlu0 %2720
    %v2722 = vsel %vm160, %v2706, 0.0
    %2723 = vadd.xlane.f32.xlu0 %v2722
    %v2724 = vpop.xlane.xlu0 %2723
    %v2725 = vmul.f32 %v2709, %v185
    %v2726 = vmul.f32 %v2712, %v185
    %v2727 = vmul.f32 %v2715, %v185
    %v2728 = vmul.f32 %v2718, %v185
    %v2729 = vmul.f32 %v2721, %v185
    %v2730 = vmul.f32 %v2724, %v185
    %v2731 = vadd.f32 %v2725, 1e-06
    %v2732 = vadd.f32 %v2726, 1e-06
    %v2733 = vadd.f32 %v2727, 1e-06
    %v2734 = vadd.f32 %v2728, 1e-06
    %v2735 = vadd.f32 %v2729, 1e-06
    %v2736 = vadd.f32 %v2730, 1e-06
    %v2737 = vrsqrt.pop %v2731
    %v2738 = vmul.f32 %v2737, %v2731
    %v2739 = vmul.f32 %v2738, %v2737
    %v2740 = vmul.f32 0.5, %v2739
    %v2741 = vsub.f32 1.5, %v2740
    %v2742 = vmul.f32 %v2737, %v2741
    %vm2743 = vweird.f32 %v2731
    %vm2744 = vweird.f32 %v2737
    %vm2745 = vmor %vm2743, %vm2744
    %v2746 = vsel %vm2745, %v2737, %v2742
    %v2747 = vrsqrt.pop %v2732
    %v2748 = vmul.f32 %v2747, %v2732
    %v2749 = vmul.f32 %v2748, %v2747
    %v2750 = vmul.f32 0.5, %v2749
    %v2751 = vsub.f32 1.5, %v2750
    %v2752 = vmul.f32 %v2747, %v2751
    %vm2753 = vweird.f32 %v2732
    %vm2754 = vweird.f32 %v2747
    %vm2755 = vmor %vm2753, %vm2754
    %v2756 = vsel %vm2755, %v2747, %v2752
    %v2757 = vrsqrt.pop %v2733
    %v2758 = vmul.f32 %v2757, %v2733
    %v2759 = vmul.f32 %v2758, %v2757
    %v2760 = vmul.f32 0.5, %v2759
    %v2761 = vsub.f32 1.5, %v2760
    %v2762 = vmul.f32 %v2757, %v2761
    %vm2763 = vweird.f32 %v2733
    %vm2764 = vweird.f32 %v2757
    %vm2765 = vmor %vm2763, %vm2764
    %v2766 = vsel %vm2765, %v2757, %v2762
    %v2767 = vrsqrt.pop %v2734
    %v2768 = vmul.f32 %v2767, %v2734
    %v2769 = vmul.f32 %v2768, %v2767
    %v2770 = vmul.f32 0.5, %v2769
    %v2771 = vsub.f32 1.5, %v2770
    %v2772 = vmul.f32 %v2767, %v2771
    %vm2773 = vweird.f32 %v2734
    %vm2774 = vweird.f32 %v2767
    %vm2775 = vmor %vm2773, %vm2774
    %v2776 = vsel %vm2775, %v2767, %v2772
    %v2777 = vrsqrt.pop %v2735
    %v2778 = vmul.f32 %v2777, %v2735
    %v2779 = vmul.f32 %v2778, %v2777
    %v2780 = vmul.f32 0.5, %v2779
    %v2781 = vsub.f32 1.5, %v2780
    %v2782 = vmul.f32 %v2777, %v2781
    %vm2783 = vweird.f32 %v2735
    %vm2784 = vweird.f32 %v2777
    %vm2785 = vmor %vm2783, %vm2784
    %v2786 = vsel %vm2785, %v2777, %v2782
    %v2787 = vrsqrt.pop %v2736
    %v2788 = vmul.f32 %v2787, %v2736
    %v2789 = vmul.f32 %v2788, %v2787
    %v2790 = vmul.f32 0.5, %v2789
    %v2791 = vsub.f32 1.5, %v2790
    %v2792 = vmul.f32 %v2787, %v2791
    %vm2793 = vweird.f32 %v2736
    %vm2794 = vweird.f32 %v2787
    %vm2795 = vmor %vm2793, %vm2794
    %v2796 = vsel %vm2795, %v2787, %v2792
    %v2797 = vmul.f32 %v2695, %v2746
    %v2798 = vmul.f32 %v2696, %v2756
    %v2799 = vmul.f32 %v2697, %v2766
    %v2800 = vmul.f32 %v2698, %v2776
    %v2801 = vmul.f32 %v2699, %v2786
    %v2802 = vmul.f32 %v2700, %v2796
    %v2804 = vperm.slane %v2668, 0
    %v2806 = vmul.f32 %v2797, %v2804
    %v2807 = vmul.f32 %v2798, %v2804
    %v2808 = vmul.f32 %v2799, %v2804
    %v2809 = vmul.f32 %v2800, %v2804
    %v2810 = vmul.f32 %v2801, %v2804
    %v2811 = vmul.f32 %v2802, %v2804
    %v2813 = vperm.slane %v2670, 0
    %v2815 = vadd.f32 %v2806, %v2813
    %v2816 = vadd.f32 %v2807, %v2813
    %v2817 = vadd.f32 %v2808, %v2813
    %v2818 = vadd.f32 %v2809, %v2813
    %v2819 = vadd.f32 %v2810, %v2813
    %v2820 = vadd.f32 %v2811, %v2813
    %s2821 = scalar_lea.vmem %s12, 16
    %v2822 = vld [vmem:[%s2821] sm:$0xf]
    %v2823 = vld [vmem:[%s2821 + $0x4] sm:$0xf]
    %v2824 = vld [vmem:[%s2821 + $0x8] sm:$0xf]
    %v2825 = vld [vmem:[%s2821 + $0xc] sm:$0xf]
    %v2826 = vpack.c.bf16 %v2816, %v2815
    %v2827 = vpack.c.bf16 %v2818, %v2817
    %v2828 = vpack.c.bf16 %v2820, %v2819
    %s2829 = scalar_lea.vmem %s13, 1
    %v2830 = vld [vmem:[%s2829] sm:$0x1]
    %v2832 = vperm.slane %v2830, 0
    %v2838 = vunpack.c.l.b16 %v2822
    %v2839 = vunpack.c.l.b16 %v2823
    %v2840 = vunpack.c.l.b16 %v2824
    %v2841 = vunpack.c.l.b16 %v2825
    %v2842 = vpack.c.b16 %v2839, %v2838
    %v2843 = vpack.c.b16 %v2841, %v2840
    %v2847 = vsel %vm160, %v2826, 0
    %v2850 = vsel %vm160, %v2827, 0
    %v2853 = vsel %vm160, %v2828, 0
    %2855 = vmatpush.bf16.msra.mxu0 0
    %2856 = vmatpush.bf16.msra.mxu0 0
    %2857 = vmatpush.bf16.msra.mxu0 0
    %2858 = vmatpush.bf16.msra.mxu0 0
    %2859 = vmatpush.bf16.msra.mxu0 0
    %2860 = vmatpush.bf16.msra.mxu0 0
    %2861 = vmatpush.bf16.msra.mxu0 %v2843
    %2862 = vmatpush.bf16.msra.mxu0 %v2842
    %2863 = vmatmul.bf16.gmra.mxu0 %v2847
    %v2864 = vpop.f32.mrf.mxu0
    %v2865 = vadd.f32 %v2832, %v2864
    %v2866 = vpop.f32.mrf.mxu0
    %v2867 = vadd.f32 %v2832, %v2866
    %2868 = vmatmul.bf16.gmra.mxu0 %v2850
    %v2869 = vpop.f32.mrf.mxu0
    %v2870 = vadd.f32 %v2832, %v2869
    %v2871 = vpop.f32.mrf.mxu0
    %v2872 = vadd.f32 %v2832, %v2871
    %2873 = vmatmul.bf16.gmra.mxu0 %v2853
    %v2874 = vpop.f32.mrf.mxu0
    %v2875 = vadd.f32 %v2832, %v2874
    %v2876 = vpop.f32.mrf.mxu0
    %v2877 = vadd.f32 %v2832, %v2876
    %2878 = vdwg.mxu0
    %v2879 = vmul.f32 %v2865, %v2865
    %v2880 = vmul.f32 %v2867, %v2867
    %v2881 = vmul.f32 %v2870, %v2870
    %v2882 = vmul.f32 %v2872, %v2872
    %v2883 = vmul.f32 %v2875, %v2875
    %v2884 = vmul.f32 %v2877, %v2877
    %v2885 = vmul.f32 %v2865, %v2879
    %v2886 = vmul.f32 %v2867, %v2880
    %v2887 = vmul.f32 %v2870, %v2881
    %v2888 = vmul.f32 %v2872, %v2882
    %v2889 = vmul.f32 %v2875, %v2883
    %v2890 = vmul.f32 %v2877, %v2884
    %v2891 = vmul.f32 %v2885, 0.044715
    %v2892 = vmul.f32 %v2886, 0.044715
    %v2893 = vmul.f32 %v2887, 0.044715
    %v2894 = vmul.f32 %v2888, 0.044715
    %v2895 = vmul.f32 %v2889, 0.044715
    %v2896 = vmul.f32 %v2890, 0.044715
    %v2897 = vadd.f32 %v2865, %v2891
    %v2898 = vadd.f32 %v2867, %v2892
    %v2899 = vadd.f32 %v2870, %v2893
    %v2900 = vadd.f32 %v2872, %v2894
    %v2901 = vadd.f32 %v2875, %v2895
    %v2902 = vadd.f32 %v2877, %v2896
    %v2903 = vmul.f32 %v2897, 0.7978846
    %v2904 = vmul.f32 %v2898, 0.7978846
    %v2905 = vmul.f32 %v2899, 0.7978846
    %v2906 = vmul.f32 %v2900, 0.7978846
    %v2907 = vmul.f32 %v2901, 0.7978846
    %v2908 = vmul.f32 %v2902, 0.7978846
    %v2909 = vtanh.pop %v2903
    %v2910 = vtanh.pop %v2904
    %v2911 = vtanh.pop %v2905
    %v2912 = vtanh.pop %v2906
    %v2913 = vtanh.pop %v2907
    %v2914 = vtanh.pop %v2908
    %v2915 = vadd.f32 %v2909, 1.0
    %v2916 = vadd.f32 %v2910, 1.0
    %v2917 = vadd.f32 %v2911, 1.0
    %v2918 = vadd.f32 %v2912, 1.0
    %v2919 = vadd.f32 %v2913, 1.0
    %v2920 = vadd.f32 %v2914, 1.0
    %v2921 = vmul.f32 %v2915, 0.5
    %v2922 = vmul.f32 %v2916, 0.5
    %v2923 = vmul.f32 %v2917, 0.5
    %v2924 = vmul.f32 %v2918, 0.5
    %v2925 = vmul.f32 %v2919, 0.5
    %v2926 = vmul.f32 %v2920, 0.5
    %v2927 = vmul.f32 %v2865, %v2921
    %v2928 = vmul.f32 %v2867, %v2922
    %v2929 = vmul.f32 %v2870, %v2923
    %v2930 = vmul.f32 %v2872, %v2924
    %v2931 = vmul.f32 %v2875, %v2925
    %v2932 = vmul.f32 %v2877, %v2926
    %s2933 = scalar_lea.vmem %s14, 64
    %v2934 = vld [vmem:[%s2933] sm:$0xf]
    %v2935 = vld [vmem:[%s2933 + $0x4] sm:$0xf]
    %v2936 = vld [vmem:[%s2933 + $0x8] sm:$0xf]
    %v2937 = vld [vmem:[%s2933 + $0xc] sm:$0xf]
    %v2938 = vld [vmem:[%s2933 + $0x10] sm:$0xf]
    %v2939 = vld [vmem:[%s2933 + $0x14] sm:$0xf]
    %v2940 = vld [vmem:[%s2933 + $0x18] sm:$0xf]
    %v2941 = vld [vmem:[%s2933 + $0x1c] sm:$0xf]
    %v2942 = vld [vmem:[%s2933 + $0x20] sm:$0xf]
    %v2943 = vld [vmem:[%s2933 + $0x24] sm:$0xf]
    %v2944 = vld [vmem:[%s2933 + $0x28] sm:$0xf]
    %v2945 = vld [vmem:[%s2933 + $0x2c] sm:$0xf]
    %v2946 = vld [vmem:[%s2933 + $0x30] sm:$0xf]
    %v2947 = vld [vmem:[%s2933 + $0x34] sm:$0xf]
    %v2948 = vld [vmem:[%s2933 + $0x38] sm:$0xf]
    %v2949 = vld [vmem:[%s2933 + $0x3c] sm:$0xf]
    %v2950 = vpack.c.bf16 %v2928, %v2927
    %v2951 = vpack.c.bf16 %v2930, %v2929
    %v2952 = vpack.c.bf16 %v2932, %v2931
    %v2969 = vunpack.c.l.b16 %v2934
    %v2970 = vunpack.c.l.b16 %v2935
    %v2971 = vunpack.c.l.b16 %v2936
    %v2972 = vunpack.c.l.b16 %v2937
    %v2973 = vunpack.c.l.b16 %v2938
    %v2974 = vunpack.c.l.b16 %v2939
    %v2975 = vunpack.c.l.b16 %v2940
    %v2976 = vunpack.c.l.b16 %v2941
    %v2977 = vunpack.c.l.b16 %v2942
    %v2978 = vunpack.c.l.b16 %v2943
    %v2979 = vunpack.c.l.b16 %v2944
    %v2980 = vunpack.c.l.b16 %v2945
    %v2981 = vunpack.c.l.b16 %v2946
    %v2982 = vunpack.c.l.b16 %v2947
    %v2983 = vunpack.c.l.b16 %v2948
    %v2984 = vunpack.c.l.b16 %v2949
    %v2985 = vpack.c.b16 %v2970, %v2969
    %v2986 = vpack.c.b16 %v2972, %v2971
    %v2987 = vpack.c.b16 %v2974, %v2973
    %v2988 = vpack.c.b16 %v2976, %v2975
    %v2989 = vpack.c.b16 %v2978, %v2977
    %v2990 = vpack.c.b16 %v2980, %v2979
    %v2991 = vpack.c.b16 %v2982, %v2981
    %v2992 = vpack.c.b16 %v2984, %v2983
    %3001 = vmatpush.bf16.msra.mxu0 %v2992
    %3002 = vmatpush.bf16.msra.mxu0 %v2991
    %3003 = vmatpush.bf16.msra.mxu0 %v2990
    %3004 = vmatpush.bf16.msra.mxu0 %v2989
    %3005 = vmatpush.bf16.msra.mxu0 %v2988
    %3006 = vmatpush.bf16.msra.mxu0 %v2987
    %3007 = vmatpush.bf16.msra.mxu0 %v2986
    %3008 = vmatpush.bf16.msra.mxu0 %v2985
    %3009 = vmatmul.bf16.gmra.mxu0 %v2950
    %v3010 = vpop.f32.mrf.mxu0
    %v3011 = vpop.f32.mrf.mxu0
    %3012 = vmatmul.bf16.gmra.mxu0 %v2951
    %v3013 = vpop.f32.mrf.mxu0
    %v3014 = vadd.f32 0.0, %v3013
    %v3015 = vpop.f32.mrf.mxu0
    %3016 = vmatmul.bf16.gmra.mxu0 %v2952
    %v3017 = vpop.f32.mrf.mxu0
    %v3018 = vpop.f32.mrf.mxu0
    %v3019 = vadd.f32 0.0, %v3018
    %3020 = vdwg.mxu0
    %v3021 = vadd.f32 %v2663, %v3014
    %v3022 = vadd.f32 %v2666, %v3019
    %s3023 = scalar_lea.vmem %s15, 1
    %v3024 = vld [vmem:[%s3023] sm:$0x1]
    %v3026 = vperm.slane %v3024, 0
    %v3028 = vadd.f32 %v3021, %v3026
    %v3029 = vadd.f32 %v3022, %v3026
    %v3031 = vrot.slane %v3029, 7
    %vm3033 = vcmask 1040384
    %v3034 = vsel %vm3033, %v3028, %v3031
    %v3035 = vld [vmem:[%s16] sm:$0x1]
    %v3036 = vld [vmem:[%s17] sm:$0x1]
    %vm3037 = vcmask 254976
    %v3038 = vsel %vm3037, %v3034, 0.0
    %3039 = vadd.xlane.f32.xlu0 %v3038
    %v3040 = vpop.xlane.xlu0 %3039
    %v3041 = vmul.f32 %v3040, %v185
    %v3042 = vsub.f32 %v3034, %v3041
    %v3043 = vmul.f32 %v3042, %v3042
    %v3044 = vsel %vm3037, %v3043, 0.0
    %3045 = vadd.xlane.f32.xlu0 %v3044
    %v3046 = vpop.xlane.xlu0 %3045
    %v3047 = vmul.f32 %v3046, %v185
    %v3048 = vadd.f32 %v3047, 1e-06
    %v3049 = vrsqrt.pop %v3048
    %v3050 = vmul.f32 %v3049, %v3048
    %v3051 = vmul.f32 %v3050, %v3049
    %v3052 = vmul.f32 0.5, %v3051
    %v3053 = vsub.f32 1.5, %v3052
    %v3054 = vmul.f32 %v3049, %v3053
    %vm3055 = vweird.f32 %v3048
    %vm3056 = vweird.f32 %v3049
    %vm3057 = vmor %vm3055, %vm3056
    %v3058 = vsel %vm3057, %v3049, %v3054
    %v3059 = vmul.f32 %v3042, %v3058
    %v3061 = vperm.slane %v3035, 0
    %v3063 = vmul.f32 %v3059, %v3061
    %v3065 = vperm.slane %v3036, 0
    %v3067 = vadd.f32 %v3063, %v3065
    %v3068 = vld [vmem:[%s18] sm:$0xf]
    %v3069 = vld [vmem:[%s18 + $0x4] sm:$0xf]
    %v3070 = vld [vmem:[%s18 + $0x8] sm:$0xf]
    %v3071 = vld [vmem:[%s18 + $0xc] sm:$0xf]
    %v3072 = vpack.c.bf16 %v3067, %v3067
    %v3073 = vld [vmem:[%s19] sm:$0x1]
    %v3075 = vperm.slane %v3073, 0
    %v3081 = vunpack.c.l.b16 %v3068
    %v3082 = vunpack.c.l.b16 %v3069
    %v3083 = vunpack.c.l.b16 %v3070
    %v3084 = vunpack.c.l.b16 %v3071
    %v3085 = vpack.c.b16 %v3082, %v3081
    %v3086 = vpack.c.b16 %v3084, %v3083
    %v3090 = vsel %vm160, %v3072, 0
    %3092 = vmatpush.bf16.msra.mxu0 0
    %3093 = vmatpush.bf16.msra.mxu0 0
    %3094 = vmatpush.bf16.msra.mxu0 0
    %3095 = vmatpush.bf16.msra.mxu0 0
    %3096 = vmatpush.bf16.msra.mxu0 0
    %3097 = vmatpush.bf16.msra.mxu0 0
    %3098 = vmatpush.bf16.msra.mxu0 %v3086
    %3099 = vmatpush.bf16.msra.mxu0 %v3085
    %3100 = vmatmul.bf16.gmra.mxu0 %v3090
    %v3101 = vpop.f32.mrf.mxu0
    %v3102 = vadd.f32 %v3075, %v3101
    %v3103 = vpop.f32.mrf.mxu0
    %3104 = vdwg.mxu0
    %3105 = vst [vmem:[#allocation2] sm:$0x3] %v3102
    // Predicated region
    $region82: #{vit_forward.1} parent=1 // pred_check
      _
    $region83: #{vit_forward.1} parent=1 // pred_check_branch
      %3107 = sbr.rel (0) target = $region85
    $region84: #{vit_forward.1} parent=1 // pred_region
      %3109 = vsyncadd [#allocation3], 0
      %s3111 = sshll.u32 [#allocation2], 4
      %s3112 = int_to_ptr.vmem [resolvable:$true] %s3111
      %s3113 = sshll.u32 %s20, 4
      %s3114 = int_to_ptr.hbm [resolvable:$true] %s3113
      %3116 = dma.vmem_to_hbm [thread:$0]  %s3112, 32, %s3114, [#allocation3]
    $region85: #{vit_forward.1} parent=1 // pred_fallthru
      _
    // Predicated region
    $region86: #{vit_forward.1} parent=1 // pred_check
      _
    $region87: #{vit_forward.1} parent=1 // pred_check_branch
      %3118 = sbr.rel (0) target = $region89
    $region88: #{vit_forward.1} parent=1 // pred_region
      %3120 = dma.done [#allocation3], 32
    $region89: #{vit_forward.1} parent=1 // pred_fallthru
      _
    %3121 = vsyncpa [#allocation3], 1

</llo_original>
